<compile_context>
chip_gen: v7x
topology: tpu7x:2x2x1
jax: 0.10.0
libtpu: 0.0.40
codegen_flags: <defaults>
</compile_context>

<pallas_src>
import functools

import jax
import jax.numpy as jnp
from jax.experimental import pallas as pl
from jax.experimental.pallas import tpu as pltpu

# --- model config (small, consistent with the module) -----------------------
EMBED_DIM = 32          # config.embedding_dim
NHEAD = 4               # config.transformer_nhead
DIM_FF = 64             # config.transformer_dim_feedforward
NUM_LAYERS = 2          # config.transformer_num_layers
HEAD_DIM = EMBED_DIM // NHEAD

BATCH = 2
SEQ = 8


def _backbone_kernel(x_ref, wqkv_ref, bqkv_ref, wo_ref, bo_ref,
                     w1_ref, b1_ref, w2_ref, b2_ref, out_ref,
                     *, num_layers, nhead, head_dim, seq):
    """One batch element (one sequence) per grid step: all layers + seq mean."""
    H, Dh, S = nhead, head_dim, seq
    D = H * Dh
    f32 = jnp.float32
    bf16 = jnp.bfloat16

    x = x_ref[0].astype(f32)                               # (S, D) residual stream, f32

    for l in range(num_layers):                            # static layer loop (depth=2)
        # ---- multi-head self-attention --------------------------------------
        # Fused QKV projection: one lane-dense bf16 MXU matmul, f32 accumulate.
        qkv = jnp.dot(x.astype(bf16), wqkv_ref[l],
                      preferred_element_type=f32) + bqkv_ref[l]        # (S, 3D)

        # Per-head layout only transiently, inside the score/context einsums.
        q3 = qkv[:, 0:D].reshape(S, H, Dh)                 # scale already folded into Wq/bq
        k3 = qkv[:, D:2 * D].reshape(S, H, Dh)
        v3 = qkv[:, 2 * D:3 * D].reshape(S, H, Dh)

        s = jnp.einsum('qhd,khd->hqk', q3.astype(bf16), k3.astype(bf16),
                       preferred_element_type=f32)          # (H, S, S) in f32
        s = s - jnp.max(s, axis=-1, keepdims=True)
        p = jnp.exp(s)
        p = p * pl.reciprocal(jnp.sum(p, axis=-1, keepdims=True), approx=True)

        ctx = jnp.einsum('hqk,khd->qhd', p.astype(bf16), v3.astype(bf16),
                         preferred_element_type=f32)         # (S, H, Dh)
        ctx = ctx.reshape(S, D)                              # lane-dense (S, D)

        attn = jnp.dot(ctx.astype(bf16), wo_ref[l],
                       preferred_element_type=f32) + bo_ref[l]          # (S, D)

        # residual (dropout1 = identity in eval)
        x = x + attn

        # ---- feed-forward ----------------------------------------------------
        h1 = jnp.dot(x.astype(bf16), w1_ref[l],
                     preferred_element_type=f32) + b1_ref[l]            # (S, F)
        h1 = jnp.maximum(h1, 0.0)                                       # relu
        ff = jnp.dot(h1.astype(bf16), w2_ref[l],
                     preferred_element_type=f32) + b2_ref[l]            # (S, D)

        # residual (dropout2 = identity in eval)
        x = x + ff

    # mean over the sequence dimension
    out_ref[0] = jnp.mean(x, axis=0, keepdims=True).astype(out_ref.dtype)


def pack_params(params):
    """Host-side packing: transpose to x@W layout, fold 1/sqrt(Dh) into Q, bf16 weights."""
    wqkv, bqkv, wo, bo, w1, b1, w2, b2 = params
    D = EMBED_DIM
    scale = 1.0 / (HEAD_DIM ** 0.5)

    # x @ Wqkv^T  ->  store Wqkv^T as (L, D, 3D); fold attention scale into Q cols/bias.
    col_scale = jnp.concatenate([jnp.full((D,), scale, jnp.float32),
                                 jnp.ones((2 * D,), jnp.float32)])      # (3D,)
    wqkv_t = jnp.swapaxes(wqkv, 1, 2) * col_scale[None, None, :]        # (L, D, 3D)
    bqkv_s = bqkv * col_scale[None, :]                                  # (L, 3D)

    wo_t = jnp.swapaxes(wo, 1, 2)                                       # (L, D, D)
    w1_t = jnp.swapaxes(w1, 1, 2)                                       # (L, D, F)
    w2_t = jnp.swapaxes(w2, 1, 2)                                       # (L, F, D)

    bf = lambda a: a.astype(jnp.bfloat16)                               # MXU-native operands
    b3 = lambda a: a[:, None, :].astype(jnp.float32)                    # (L, 1, dim) f32 biases

    return (bf(wqkv_t), b3(bqkv_s), bf(wo_t), b3(bo),
            bf(w1_t), b3(b1), bf(w2_t), b3(b2))


def transformer_backbone(x, params):
    """x: (B, S, D) float32 -> (B, D) float32."""
    B, S, D = x.shape
    packed = pack_params(params)

    kernel = functools.partial(
        _backbone_kernel,
        num_layers=NUM_LAYERS, nhead=NHEAD, head_dim=HEAD_DIM, seq=S)

    def const_spec(a):
        ndim = a.ndim
        return pl.BlockSpec(a.shape, lambda b, _n=ndim: (0,) * _n)

    out = pl.pallas_call(
        kernel,
        out_shape=jax.ShapeDtypeStruct((B, 1, D), jnp.float32),
        grid=(B,),                                         # batch-parallel grid, no mask
        in_specs=[pl.BlockSpec((1, S, D), lambda b: (b, 0, 0))]
                 + [const_spec(a) for a in packed],        # weights VMEM-resident
        out_specs=pl.BlockSpec((1, 1, D), lambda b: (b, 0, 0)),
        compiler_params=pltpu.CompilerParams(
            dimension_semantics=("parallel",)),
    )(x, *packed)
    return out.reshape(B, D)


def init_params(key):
    """Deterministic synthetic weights, PyTorch layout W[out, in]."""
    ks = jax.random.split(key, 8)
    s = 0.05
    wqkv = s * jax.random.normal(ks[0], (NUM_LAYERS, 3 * EMBED_DIM, EMBED_DIM), jnp.float32)
    bqkv = s * jax.random.normal(ks[1], (NUM_LAYERS, 3 * EMBED_DIM), jnp.float32)
    wo = s * jax.random.normal(ks[2], (NUM_LAYERS, EMBED_DIM, EMBED_DIM), jnp.float32)
    bo = s * jax.random.normal(ks[3], (NUM_LAYERS, EMBED_DIM), jnp.float32)
    w1 = s * jax.random.normal(ks[4], (NUM_LAYERS, DIM_FF, EMBED_DIM), jnp.float32)
    b1 = s * jax.random.normal(ks[5], (NUM_LAYERS, DIM_FF), jnp.float32)
    w2 = s * jax.random.normal(ks[6], (NUM_LAYERS, EMBED_DIM, DIM_FF), jnp.float32)
    b2 = s * jax.random.normal(ks[7], (NUM_LAYERS, EMBED_DIM), jnp.float32)
    return (wqkv, bqkv, wo, bo, w1, b1, w2, b2)


def reference(x, params):
    """Pure-JAX f32 reference of the PyTorch forward (eval mode)."""
    wqkv, bqkv, wo, bo, w1, b1, w2, b2 = params
    B, S, D = x.shape
    scale = 1.0 / (HEAD_DIM ** 0.5)
    for l in range(NUM_LAYERS):
        qkv = jnp.einsum('bsd,ed->bse', x, wqkv[l]) + bqkv[l]
        q, k, v = qkv[..., :D], qkv[..., D:2 * D], qkv[..., 2 * D:]
        rs = lambda t: t.reshape(B, S, NHEAD, HEAD_DIM).transpose(0, 2, 1, 3)
        qh, kh, vh = rs(q) * scale, rs(k), rs(v)
        sc = jnp.einsum('bhqd,bhkd->bhqk', qh, kh)
        p = jax.nn.softmax(sc, axis=-1)
        a = jnp.einsum('bhqk,bhkd->bhqd', p, vh)
        a = a.transpose(0, 2, 1, 3).reshape(B, S, D)
        a = jnp.einsum('bsd,ed->bse', a, wo[l]) + bo[l]
        x = x + a
        h1 = jnp.maximum(jnp.einsum('bsd,fd->bsf', x, w1[l]) + b1[l], 0.0)
        ff = jnp.einsum('bsf,df->bsd', h1, w2[l]) + b2[l]
        x = x + ff
    return jnp.mean(x, axis=1)


if __name__ == "__main__":
    key = jax.random.PRNGKey(0)
    kx, kp = jax.random.split(key)
    x = jax.random.normal(kx, (BATCH, SEQ, EMBED_DIM), jnp.float32)
    params = init_params(kp)

    out = transformer_backbone(x, params)
    out = jax.block_until_ready(out)

    ref = reference(x, params)
    assert out.shape == (BATCH, EMBED_DIM)
    # bf16 matmul operands + approx reciprocal in softmax -> loosened tolerance
    # (f32 accumulation keeps the error well inside this bound at these scales).
    max_err = float(jnp.max(jnp.abs(out - ref)))
    assert jnp.allclose(out, ref, atol=2e-2, rtol=2e-2), max_err

    print("KERNEL_OK")
</pallas_src>

<mosaic_0001>
module attributes {stable_mosaic.version = 11 : i64} {
  func.func @_backbone_kernel(%arg0: i32, %arg1: memref<1x8x32xf32, #tpu.memory_space<vmem>>, %arg2: memref<2x32x96xbf16, #tpu.memory_space<vmem>>, %arg3: memref<2x1x96xf32, #tpu.memory_space<vmem>>, %arg4: memref<2x32x32xbf16, #tpu.memory_space<vmem>>, %arg5: memref<2x1x32xf32, #tpu.memory_space<vmem>>, %arg6: memref<2x32x64xbf16, #tpu.memory_space<vmem>>, %arg7: memref<2x1x64xf32, #tpu.memory_space<vmem>>, %arg8: memref<2x64x32xbf16, #tpu.memory_space<vmem>>, %arg9: memref<2x1x32xf32, #tpu.memory_space<vmem>>, %arg10: memref<1x1x32xf32, #tpu.memory_space<vmem>>) attributes {dimension_semantics = [#tpu.dimension_semantics<parallel>], iteration_bounds = array<i64: 2>, scalar_prefetch = 0 : i64, scratch_operands = 0 : i64, tpu.core_type = #tpu.core_type<tc>, window_params = [{transform_indices = @transform_0, window_bounds = array<i64: 1, 8, 32>}, {pipeline_mode = #tpu.pipeline_mode<synchronous>, transform_indices = @transform_1, window_bounds = array<i64: 2, 32, 96>}, {pipeline_mode = #tpu.pipeline_mode<synchronous>, transform_indices = @transform_2, window_bounds = array<i64: 2, 1, 96>}, {pipeline_mode = #tpu.pipeline_mode<synchronous>, transform_indices = @transform_3, window_bounds = array<i64: 2, 32, 32>}, {pipeline_mode = #tpu.pipeline_mode<synchronous>, transform_indices = @transform_4, window_bounds = array<i64: 2, 1, 32>}, {pipeline_mode = #tpu.pipeline_mode<synchronous>, transform_indices = @transform_5, window_bounds = array<i64: 2, 32, 64>}, {pipeline_mode = #tpu.pipeline_mode<synchronous>, transform_indices = @transform_6, window_bounds = array<i64: 2, 1, 64>}, {pipeline_mode = #tpu.pipeline_mode<synchronous>, transform_indices = @transform_7, window_bounds = array<i64: 2, 64, 32>}, {pipeline_mode = #tpu.pipeline_mode<synchronous>, transform_indices = @transform_8, window_bounds = array<i64: 2, 1, 32>}, {transform_indices = @transform_9, window_bounds = array<i64: 1, 1, 32>}]} {
    %c0 = arith.constant 0 : index
    %c0_0 = arith.constant 0 : index
    %c0_1 = arith.constant 0 : index
    %0 = vector.load %arg1[%c0, %c0_0, %c0_1] : memref<1x8x32xf32, #tpu.memory_space<vmem>>, vector<1x8x32xf32>
    %1 = vector.shape_cast %0 : vector<1x8x32xf32> to vector<8x32xf32>
    %2 = arith.truncf %1 : vector<8x32xf32> to vector<8x32xbf16>
    %c0_2 = arith.constant 0 : index
    %c0_3 = arith.constant 0 : index
    %c0_4 = arith.constant 0 : index
    %3 = vector.load %arg2[%c0_2, %c0_3, %c0_4] : memref<2x32x96xbf16, #tpu.memory_space<vmem>>, vector<1x32x96xbf16>
    %4 = vector.shape_cast %3 : vector<1x32x96xbf16> to vector<32x96xbf16>
    %cst = arith.constant dense<0.000000e+00> : vector<8x96xf32>
    %5 = tpu.matmul %2, %4, %cst {dimension_numbers = #tpu.dot_dimension_numbers<[1], [0], [0], [1], [0, 0, 1, 1], [], []>} : vector<8x32xbf16>, vector<32x96xbf16>, vector<8x96xf32> -> vector<8x96xf32>
    %c0_5 = arith.constant 0 : index
    %c0_6 = arith.constant 0 : index
    %c0_7 = arith.constant 0 : index
    %6 = vector.load %arg3[%c0_5, %c0_6, %c0_7] : memref<2x1x96xf32, #tpu.memory_space<vmem>>, vector<1x1x96xf32>
    %7 = vector.shape_cast %6 : vector<1x1x96xf32> to vector<1x96xf32>
    %8 = vector.broadcast %7 : vector<1x96xf32> to vector<8x96xf32>
    %9 = arith.addf %5, %8 : vector<8x96xf32>
    %10 = vector.extract_strided_slice %9 {offsets = [0, 0], sizes = [8, 32], strides = [1, 1]} : vector<8x96xf32> to vector<8x32xf32>
    %11 = vector.shape_cast %10 : vector<8x32xf32> to vector<8x4x8xf32>
    %12 = vector.extract_strided_slice %9 {offsets = [0, 32], sizes = [8, 32], strides = [1, 1]} : vector<8x96xf32> to vector<8x32xf32>
    %13 = vector.shape_cast %12 : vector<8x32xf32> to vector<8x4x8xf32>
    %14 = vector.extract_strided_slice %9 {offsets = [0, 64], sizes = [8, 32], strides = [1, 1]} : vector<8x96xf32> to vector<8x32xf32>
    %15 = vector.shape_cast %14 : vector<8x32xf32> to vector<8x4x8xf32>
    %16 = arith.truncf %11 : vector<8x4x8xf32> to vector<8x4x8xbf16>
    %17 = arith.truncf %13 : vector<8x4x8xf32> to vector<8x4x8xbf16>
    "tpu.trace_start"() <{level = 10 : i32, message = "qhd,khd->hqk"}> : () -> ()
    %cst_8 = arith.constant dense<0.000000e+00> : vector<4x8x8xf32>
    %18 = tpu.matmul %16, %17, %cst_8 {dimension_numbers = #tpu.dot_dimension_numbers<[2], [2], [0], [0], [0, 1, 0, 0, 1, 0], [1], [1]>} : vector<8x4x8xbf16>, vector<8x4x8xbf16>, vector<4x8x8xf32> -> vector<4x8x8xf32>
    "tpu.trace_stop"() : () -> ()
    %cst_9 = arith.constant dense<0xFF800000> : vector<4x8xf32>
    %19 = vector.multi_reduction <maximumf>, %18, %cst_9 [2] : vector<4x8x8xf32> to vector<4x8xf32>
    %20 = vector.shape_cast %19 : vector<4x8xf32> to vector<4x8x1xf32>
    %21 = vector.broadcast %20 : vector<4x8x1xf32> to vector<4x8x8xf32>
    %22 = arith.subf %18, %21 : vector<4x8x8xf32>
    %23 = math.exp %22 : vector<4x8x8xf32>
    %cst_10 = arith.constant dense<0.000000e+00> : vector<4x8xf32>
    %24 = vector.multi_reduction <add>, %23, %cst_10 [2] : vector<4x8x8xf32> to vector<4x8xf32>
    %25 = vector.shape_cast %24 : vector<4x8xf32> to vector<4x8x1xf32>
    %26 = tpu.reciprocal %25 {approx = true} : vector<4x8x1xf32> -> vector<4x8x1xf32>
    %27 = vector.broadcast %26 : vector<4x8x1xf32> to vector<4x8x8xf32>
    %28 = arith.mulf %23, %27 : vector<4x8x8xf32>
    %29 = arith.truncf %28 : vector<4x8x8xf32> to vector<4x8x8xbf16>
    %30 = arith.truncf %15 : vector<8x4x8xf32> to vector<8x4x8xbf16>
    "tpu.trace_start"() <{level = 10 : i32, message = "hqk,khd->qhd"}> : () -> ()
    %cst_11 = arith.constant dense<0.000000e+00> : vector<4x8x8xf32>
    %31 = tpu.matmul %30, %29, %cst_11 {dimension_numbers = #tpu.dot_dimension_numbers<[0], [2], [2], [1], [0, 1, 0, 2, 1, 1], [1], [0]>} : vector<8x4x8xbf16>, vector<4x8x8xbf16>, vector<4x8x8xf32> -> vector<4x8x8xf32>
    %32 = tpu.transpose %31, [2, 0, 1] : vector<4x8x8xf32> -> vector<8x4x8xf32>
    "tpu.trace_stop"() : () -> ()
    %33 = vector.shape_cast %32 : vector<8x4x8xf32> to vector<8x32xf32>
    %34 = arith.truncf %33 : vector<8x32xf32> to vector<8x32xbf16>
    %c0_12 = arith.constant 0 : index
    %c0_13 = arith.constant 0 : index
    %c0_14 = arith.constant 0 : index
    %35 = vector.load %arg4[%c0_12, %c0_13, %c0_14] : memref<2x32x32xbf16, #tpu.memory_space<vmem>>, vector<1x32x32xbf16>
    %36 = vector.shape_cast %35 : vector<1x32x32xbf16> to vector<32x32xbf16>
    %cst_15 = arith.constant dense<0.000000e+00> : vector<8x32xf32>
    %37 = tpu.matmul %34, %36, %cst_15 {dimension_numbers = #tpu.dot_dimension_numbers<[1], [0], [0], [1], [0, 0, 1, 1], [], []>} : vector<8x32xbf16>, vector<32x32xbf16>, vector<8x32xf32> -> vector<8x32xf32>
    %c0_16 = arith.constant 0 : index
    %c0_17 = arith.constant 0 : index
    %c0_18 = arith.constant 0 : index
    %38 = vector.load %arg5[%c0_16, %c0_17, %c0_18] : memref<2x1x32xf32, #tpu.memory_space<vmem>>, vector<1x1x32xf32>
    %39 = vector.shape_cast %38 : vector<1x1x32xf32> to vector<1x32xf32>
    %40 = vector.broadcast %39 : vector<1x32xf32> to vector<8x32xf32>
    %41 = arith.addf %37, %40 : vector<8x32xf32>
    %42 = arith.addf %1, %41 : vector<8x32xf32>
    %43 = arith.truncf %42 : vector<8x32xf32> to vector<8x32xbf16>
    %c0_19 = arith.constant 0 : index
    %c0_20 = arith.constant 0 : index
    %c0_21 = arith.constant 0 : index
    %44 = vector.load %arg6[%c0_19, %c0_20, %c0_21] : memref<2x32x64xbf16, #tpu.memory_space<vmem>>, vector<1x32x64xbf16>
    %45 = vector.shape_cast %44 : vector<1x32x64xbf16> to vector<32x64xbf16>
    %cst_22 = arith.constant dense<0.000000e+00> : vector<8x64xf32>
    %46 = tpu.matmul %43, %45, %cst_22 {dimension_numbers = #tpu.dot_dimension_numbers<[1], [0], [0], [1], [0, 0, 1, 1], [], []>} : vector<8x32xbf16>, vector<32x64xbf16>, vector<8x64xf32> -> vector<8x64xf32>
    %c0_23 = arith.constant 0 : index
    %c0_24 = arith.constant 0 : index
    %c0_25 = arith.constant 0 : index
    %47 = vector.load %arg7[%c0_23, %c0_24, %c0_25] : memref<2x1x64xf32, #tpu.memory_space<vmem>>, vector<1x1x64xf32>
    %48 = vector.shape_cast %47 : vector<1x1x64xf32> to vector<1x64xf32>
    %49 = vector.broadcast %48 : vector<1x64xf32> to vector<8x64xf32>
    %50 = arith.addf %46, %49 : vector<8x64xf32>
    %cst_26 = arith.constant 0.000000e+00 : f32
    %51 = vector.broadcast %cst_26 : f32 to vector<8x64xf32>
    %52 = arith.maximumf %50, %51 : vector<8x64xf32>
    %53 = arith.truncf %52 : vector<8x64xf32> to vector<8x64xbf16>
    %c0_27 = arith.constant 0 : index
    %c0_28 = arith.constant 0 : index
    %c0_29 = arith.constant 0 : index
    %54 = vector.load %arg8[%c0_27, %c0_28, %c0_29] : memref<2x64x32xbf16, #tpu.memory_space<vmem>>, vector<1x64x32xbf16>
    %55 = vector.shape_cast %54 : vector<1x64x32xbf16> to vector<64x32xbf16>
    %cst_30 = arith.constant dense<0.000000e+00> : vector<8x32xf32>
    %56 = tpu.matmul %53, %55, %cst_30 {dimension_numbers = #tpu.dot_dimension_numbers<[1], [0], [0], [1], [0, 0, 1, 1], [], []>} : vector<8x64xbf16>, vector<64x32xbf16>, vector<8x32xf32> -> vector<8x32xf32>
    %c0_31 = arith.constant 0 : index
    %c0_32 = arith.constant 0 : index
    %c0_33 = arith.constant 0 : index
    %57 = vector.load %arg9[%c0_31, %c0_32, %c0_33] : memref<2x1x32xf32, #tpu.memory_space<vmem>>, vector<1x1x32xf32>
    %58 = vector.shape_cast %57 : vector<1x1x32xf32> to vector<1x32xf32>
    %59 = vector.broadcast %58 : vector<1x32xf32> to vector<8x32xf32>
    %60 = arith.addf %56, %59 : vector<8x32xf32>
    %61 = arith.addf %42, %60 : vector<8x32xf32>
    %62 = arith.truncf %61 : vector<8x32xf32> to vector<8x32xbf16>
    %c1 = arith.constant 1 : index
    %c0_34 = arith.constant 0 : index
    %c0_35 = arith.constant 0 : index
    %63 = vector.load %arg2[%c1, %c0_34, %c0_35] : memref<2x32x96xbf16, #tpu.memory_space<vmem>>, vector<1x32x96xbf16>
    %64 = vector.shape_cast %63 : vector<1x32x96xbf16> to vector<32x96xbf16>
    %cst_36 = arith.constant dense<0.000000e+00> : vector<8x96xf32>
    %65 = tpu.matmul %62, %64, %cst_36 {dimension_numbers = #tpu.dot_dimension_numbers<[1], [0], [0], [1], [0, 0, 1, 1], [], []>} : vector<8x32xbf16>, vector<32x96xbf16>, vector<8x96xf32> -> vector<8x96xf32>
    %c1_37 = arith.constant 1 : index
    %c0_38 = arith.constant 0 : index
    %c0_39 = arith.constant 0 : index
    %66 = vector.load %arg3[%c1_37, %c0_38, %c0_39] : memref<2x1x96xf32, #tpu.memory_space<vmem>>, vector<1x1x96xf32>
    %67 = vector.shape_cast %66 : vector<1x1x96xf32> to vector<1x96xf32>
    %68 = vector.broadcast %67 : vector<1x96xf32> to vector<8x96xf32>
    %69 = arith.addf %65, %68 : vector<8x96xf32>
    %70 = vector.extract_strided_slice %69 {offsets = [0, 0], sizes = [8, 32], strides = [1, 1]} : vector<8x96xf32> to vector<8x32xf32>
    %71 = vector.shape_cast %70 : vector<8x32xf32> to vector<8x4x8xf32>
    %72 = vector.extract_strided_slice %69 {offsets = [0, 32], sizes = [8, 32], strides = [1, 1]} : vector<8x96xf32> to vector<8x32xf32>
    %73 = vector.shape_cast %72 : vector<8x32xf32> to vector<8x4x8xf32>
    %74 = vector.extract_strided_slice %69 {offsets = [0, 64], sizes = [8, 32], strides = [1, 1]} : vector<8x96xf32> to vector<8x32xf32>
    %75 = vector.shape_cast %74 : vector<8x32xf32> to vector<8x4x8xf32>
    %76 = arith.truncf %71 : vector<8x4x8xf32> to vector<8x4x8xbf16>
    %77 = arith.truncf %73 : vector<8x4x8xf32> to vector<8x4x8xbf16>
    "tpu.trace_start"() <{level = 10 : i32, message = "qhd,khd->hqk"}> : () -> ()
    %cst_40 = arith.constant dense<0.000000e+00> : vector<4x8x8xf32>
    %78 = tpu.matmul %76, %77, %cst_40 {dimension_numbers = #tpu.dot_dimension_numbers<[2], [2], [0], [0], [0, 1, 0, 0, 1, 0], [1], [1]>} : vector<8x4x8xbf16>, vector<8x4x8xbf16>, vector<4x8x8xf32> -> vector<4x8x8xf32>
    "tpu.trace_stop"() : () -> ()
    %cst_41 = arith.constant dense<0xFF800000> : vector<4x8xf32>
    %79 = vector.multi_reduction <maximumf>, %78, %cst_41 [2] : vector<4x8x8xf32> to vector<4x8xf32>
    %80 = vector.shape_cast %79 : vector<4x8xf32> to vector<4x8x1xf32>
    %81 = vector.broadcast %80 : vector<4x8x1xf32> to vector<4x8x8xf32>
    %82 = arith.subf %78, %81 : vector<4x8x8xf32>
    %83 = math.exp %82 : vector<4x8x8xf32>
    %cst_42 = arith.constant dense<0.000000e+00> : vector<4x8xf32>
    %84 = vector.multi_reduction <add>, %83, %cst_42 [2] : vector<4x8x8xf32> to vector<4x8xf32>
    %85 = vector.shape_cast %84 : vector<4x8xf32> to vector<4x8x1xf32>
    %86 = tpu.reciprocal %85 {approx = true} : vector<4x8x1xf32> -> vector<4x8x1xf32>
    %87 = vector.broadcast %86 : vector<4x8x1xf32> to vector<4x8x8xf32>
    %88 = arith.mulf %83, %87 : vector<4x8x8xf32>
    %89 = arith.truncf %88 : vector<4x8x8xf32> to vector<4x8x8xbf16>
    %90 = arith.truncf %75 : vector<8x4x8xf32> to vector<8x4x8xbf16>
    "tpu.trace_start"() <{level = 10 : i32, message = "hqk,khd->qhd"}> : () -> ()
    %cst_43 = arith.constant dense<0.000000e+00> : vector<4x8x8xf32>
    %91 = tpu.matmul %90, %89, %cst_43 {dimension_numbers = #tpu.dot_dimension_numbers<[0], [2], [2], [1], [0, 1, 0, 2, 1, 1], [1], [0]>} : vector<8x4x8xbf16>, vector<4x8x8xbf16>, vector<4x8x8xf32> -> vector<4x8x8xf32>
    %92 = tpu.transpose %91, [2, 0, 1] : vector<4x8x8xf32> -> vector<8x4x8xf32>
    "tpu.trace_stop"() : () -> ()
    %93 = vector.shape_cast %92 : vector<8x4x8xf32> to vector<8x32xf32>
    %94 = arith.truncf %93 : vector<8x32xf32> to vector<8x32xbf16>
    %c1_44 = arith.constant 1 : index
    %c0_45 = arith.constant 0 : index
    %c0_46 = arith.constant 0 : index
    %95 = vector.load %arg4[%c1_44, %c0_45, %c0_46] : memref<2x32x32xbf16, #tpu.memory_space<vmem>>, vector<1x32x32xbf16>
    %96 = vector.shape_cast %95 : vector<1x32x32xbf16> to vector<32x32xbf16>
    %cst_47 = arith.constant dense<0.000000e+00> : vector<8x32xf32>
    %97 = tpu.matmul %94, %96, %cst_47 {dimension_numbers = #tpu.dot_dimension_numbers<[1], [0], [0], [1], [0, 0, 1, 1], [], []>} : vector<8x32xbf16>, vector<32x32xbf16>, vector<8x32xf32> -> vector<8x32xf32>
    %c1_48 = arith.constant 1 : index
    %c0_49 = arith.constant 0 : index
    %c0_50 = arith.constant 0 : index
    %98 = vector.load %arg5[%c1_48, %c0_49, %c0_50] : memref<2x1x32xf32, #tpu.memory_space<vmem>>, vector<1x1x32xf32>
    %99 = vector.shape_cast %98 : vector<1x1x32xf32> to vector<1x32xf32>
    %100 = vector.broadcast %99 : vector<1x32xf32> to vector<8x32xf32>
    %101 = arith.addf %97, %100 : vector<8x32xf32>
    %102 = arith.addf %61, %101 : vector<8x32xf32>
    %103 = arith.truncf %102 : vector<8x32xf32> to vector<8x32xbf16>
    %c1_51 = arith.constant 1 : index
    %c0_52 = arith.constant 0 : index
    %c0_53 = arith.constant 0 : index
    %104 = vector.load %arg6[%c1_51, %c0_52, %c0_53] : memref<2x32x64xbf16, #tpu.memory_space<vmem>>, vector<1x32x64xbf16>
    %105 = vector.shape_cast %104 : vector<1x32x64xbf16> to vector<32x64xbf16>
    %cst_54 = arith.constant dense<0.000000e+00> : vector<8x64xf32>
    %106 = tpu.matmul %103, %105, %cst_54 {dimension_numbers = #tpu.dot_dimension_numbers<[1], [0], [0], [1], [0, 0, 1, 1], [], []>} : vector<8x32xbf16>, vector<32x64xbf16>, vector<8x64xf32> -> vector<8x64xf32>
    %c1_55 = arith.constant 1 : index
    %c0_56 = arith.constant 0 : index
    %c0_57 = arith.constant 0 : index
    %107 = vector.load %arg7[%c1_55, %c0_56, %c0_57] : memref<2x1x64xf32, #tpu.memory_space<vmem>>, vector<1x1x64xf32>
    %108 = vector.shape_cast %107 : vector<1x1x64xf32> to vector<1x64xf32>
    %109 = vector.broadcast %108 : vector<1x64xf32> to vector<8x64xf32>
    %110 = arith.addf %106, %109 : vector<8x64xf32>
    %cst_58 = arith.constant 0.000000e+00 : f32
    %111 = vector.broadcast %cst_58 : f32 to vector<8x64xf32>
    %112 = arith.maximumf %110, %111 : vector<8x64xf32>
    %113 = arith.truncf %112 : vector<8x64xf32> to vector<8x64xbf16>
    %c1_59 = arith.constant 1 : index
    %c0_60 = arith.constant 0 : index
    %c0_61 = arith.constant 0 : index
    %114 = vector.load %arg8[%c1_59, %c0_60, %c0_61] : memref<2x64x32xbf16, #tpu.memory_space<vmem>>, vector<1x64x32xbf16>
    %115 = vector.shape_cast %114 : vector<1x64x32xbf16> to vector<64x32xbf16>
    %cst_62 = arith.constant dense<0.000000e+00> : vector<8x32xf32>
    %116 = tpu.matmul %113, %115, %cst_62 {dimension_numbers = #tpu.dot_dimension_numbers<[1], [0], [0], [1], [0, 0, 1, 1], [], []>} : vector<8x64xbf16>, vector<64x32xbf16>, vector<8x32xf32> -> vector<8x32xf32>
    %c1_63 = arith.constant 1 : index
    %c0_64 = arith.constant 0 : index
    %c0_65 = arith.constant 0 : index
    %117 = vector.load %arg9[%c1_63, %c0_64, %c0_65] : memref<2x1x32xf32, #tpu.memory_space<vmem>>, vector<1x1x32xf32>
    %118 = vector.shape_cast %117 : vector<1x1x32xf32> to vector<1x32xf32>
    %119 = vector.broadcast %118 : vector<1x32xf32> to vector<8x32xf32>
    %120 = arith.addf %116, %119 : vector<8x32xf32>
    %121 = arith.addf %102, %120 : vector<8x32xf32>
    %cst_66 = arith.constant dense<0.000000e+00> : vector<32xf32>
    %122 = vector.multi_reduction <add>, %121, %cst_66 [0] : vector<8x32xf32> to vector<32xf32>
    %123 = vector.shape_cast %122 : vector<32xf32> to vector<1x32xf32>
    %cst_67 = arith.constant 8.000000e+00 : f32
    %124 = vector.broadcast %cst_67 : f32 to vector<1x32xf32>
    %125 = arith.divf %123, %124 : vector<1x32xf32>
    %c0_68 = arith.constant 0 : index
    %c0_69 = arith.constant 0 : index
    %c0_70 = arith.constant 0 : index
    %126 = vector.load %arg10[%c0_68, %c0_69, %c0_70] : memref<1x1x32xf32, #tpu.memory_space<vmem>>, vector<1x1x32xf32>
    %127 = vector.shape_cast %126 : vector<1x1x32xf32> to vector<1x32xf32>
    %128 = vector.shape_cast %125 : vector<1x32xf32> to vector<1x1x32xf32>
    tpu.vector_store %arg10[%c0_68, %c0_69, %c0_70], %128 {strides = array<i32>} : memref<1x1x32xf32, #tpu.memory_space<vmem>>, vector<1x1x32xf32>,
    return
  }
  func.func @transform_0(%arg0: i32) -> (i32, i32, i32) {
    %c0_i32 = arith.constant 0 : i32
    %c0_i32_0 = arith.constant 0 : i32
    %c0_i32_1 = arith.constant 0 : i32
    return %arg0, %c0_i32, %c0_i32_0 : i32, i32, i32
  }
  func.func @transform_1(%arg0: i32) -> (i32, i32, i32) {
    %c0_i32 = arith.constant 0 : i32
    %c0_i32_0 = arith.constant 0 : i32
    %c0_i32_1 = arith.constant 0 : i32
    %c0_i32_2 = arith.constant 0 : i32
    return %c0_i32, %c0_i32_0, %c0_i32_1 : i32, i32, i32
  }
  func.func @transform_2(%arg0: i32) -> (i32, i32, i32) {
    %c0_i32 = arith.constant 0 : i32
    %c0_i32_0 = arith.constant 0 : i32
    %c0_i32_1 = arith.constant 0 : i32
    %c0_i32_2 = arith.constant 0 : i32
    return %c0_i32, %c0_i32_0, %c0_i32_1 : i32, i32, i32
  }
  func.func @transform_3(%arg0: i32) -> (i32, i32, i32) {
    %c0_i32 = arith.constant 0 : i32
    %c0_i32_0 = arith.constant 0 : i32
    %c0_i32_1 = arith.constant 0 : i32
    %c0_i32_2 = arith.constant 0 : i32
    return %c0_i32, %c0_i32_0, %c0_i32_1 : i32, i32, i32
  }
  func.func @transform_4(%arg0: i32) -> (i32, i32, i32) {
    %c0_i32 = arith.constant 0 : i32
    %c0_i32_0 = arith.constant 0 : i32
    %c0_i32_1 = arith.constant 0 : i32
    %c0_i32_2 = arith.constant 0 : i32
    return %c0_i32, %c0_i32_0, %c0_i32_1 : i32, i32, i32
  }
  func.func @transform_5(%arg0: i32) -> (i32, i32, i32) {
    %c0_i32 = arith.constant 0 : i32
    %c0_i32_0 = arith.constant 0 : i32
    %c0_i32_1 = arith.constant 0 : i32
    %c0_i32_2 = arith.constant 0 : i32
    return %c0_i32, %c0_i32_0, %c0_i32_1 : i32, i32, i32
  }
  func.func @transform_6(%arg0: i32) -> (i32, i32, i32) {
    %c0_i32 = arith.constant 0 : i32
    %c0_i32_0 = arith.constant 0 : i32
    %c0_i32_1 = arith.constant 0 : i32
    %c0_i32_2 = arith.constant 0 : i32
    return %c0_i32, %c0_i32_0, %c0_i32_1 : i32, i32, i32
  }
  func.func @transform_7(%arg0: i32) -> (i32, i32, i32) {
    %c0_i32 = arith.constant 0 : i32
    %c0_i32_0 = arith.constant 0 : i32
    %c0_i32_1 = arith.constant 0 : i32
    %c0_i32_2 = arith.constant 0 : i32
    return %c0_i32, %c0_i32_0, %c0_i32_1 : i32, i32, i32
  }
  func.func @transform_8(%arg0: i32) -> (i32, i32, i32) {
    %c0_i32 = arith.constant 0 : i32
    %c0_i32_0 = arith.constant 0 : i32
    %c0_i32_1 = arith.constant 0 : i32
    %c0_i32_2 = arith.constant 0 : i32
    return %c0_i32, %c0_i32_0, %c0_i32_1 : i32, i32, i32
  }
  func.func @transform_9(%arg0: i32) -> (i32, i32, i32) {
    %c0_i32 = arith.constant 0 : i32
    %c0_i32_0 = arith.constant 0 : i32
    %c0_i32_1 = arith.constant 0 : i32
    return %arg0, %c0_i32, %c0_i32_0 : i32, i32, i32
  }
}

</mosaic_0001>

<llo_original>
// kernel: tpu_custom_call.1
$region0: #{tpu_custom_call.1}
  #allocation0 [shape = 'u32[]', space=smem, size = 0x4, offset = 0x4, fixed_abs, tag = 'smem constant byte address 0x4 - core index']
  #allocation1 [shape = 'u32[144,128]{1,0:T(1,128)}', space=vmem, size = 0x12000, scoped, tag = 'internal scratch']
  %s0 = inlined_call_operand.hbm [shape: f32[2,8,32], index: 0, kind: input, shape index: {}]
  %s1 = inlined_call_operand.vmem [shape: bf16[2,32,96], index: 1, kind: input, shape index: {}]
  %s2 = inlined_call_operand.vmem [shape: f32[2,1,96], index: 2, kind: input, shape index: {}]
  %s3 = inlined_call_operand.vmem [shape: bf16[2,32,32], index: 3, kind: input, shape index: {}]
  %s4 = inlined_call_operand.vmem [shape: f32[2,1,32], index: 4, kind: input, shape index: {}]
  %s5 = inlined_call_operand.vmem [shape: bf16[2,32,64], index: 5, kind: input, shape index: {}]
  %s6 = inlined_call_operand.vmem [shape: f32[2,1,64], index: 6, kind: input, shape index: {}]
  %s7 = inlined_call_operand.vmem [shape: bf16[2,64,32], index: 7, kind: input, shape index: {}]
  %s8 = inlined_call_operand.vmem [shape: f32[2,1,32], index: 8, kind: input, shape index: {}]
  %s9 = inlined_call_operand.hbm [shape: f32[2,1,32], index: 9, kind: output, shape index: {}]
  %s10 = sld [smem:[#allocation0]]
  $region73: #{tpu_custom_call.1} parent=0
    _
  %s12 = ssub.s32 1, %s10
  %s13 = scalar_select 0, %s12, %s10
  $region1: #{tpu_custom_call.1} parent=0
    #allocation2 [shape = 'u8[8192]{0}', space=vmem, size = 0x2000, scoped, tag = 'input window, operand 0']
    #allocation3 [shape = 's32[2]{0}', space=sflag, size = 0x8, scoped, tag = 'scoped memory for tpu_custom_call.1']
    #allocation4 [shape = 's32[2]{0}', space=sflag, size = 0x8, scoped, tag = 'scoped memory for tpu_custom_call.1']
    #allocation5 [shape = 'u8[1024]{0}', space=vmem, size = 0x400, scoped, tag = 'output window, operand 0']
    %14 = vsyncpa [#allocation3], 0
    %s15 = scalar_lea.sflag [#allocation3], 1
    %16 = vsyncpa %s15, 0
    %17 = vsyncpa [#allocation4], 0
    %s18 = scalar_lea.sflag [#allocation4], 1
    %19 = vsyncpa %s18, 0
    loop: start=0, step=1, limit=4
    $region2: #{tpu_custom_call.1} parent=1 // loop_pre_header
      _
    $region3: #{tpu_custom_call.1} parent=1 // loop_header
      %s21 = sphi 0, %s25
      %p22 = scmp.ge.s32.totalorder %s21, 4
      %s31 = sphi 0, %s33
      %s34 = sphi 0, %s31
      %s35 = sphi 0, %s34
      %s51 = sphi 0, %s35
      %s55 = sphi 0, %s55
      %s57 = sphi 0, %s55
      %s58 = sphi 0, %s57
      %s72 = sphi 0, %s58
      %s76 = sphi 0, %s76
      %s78 = sphi 0, %s76
      %s79 = sphi 0, %s78
      %s93 = sphi 0, %s79
      %s97 = sphi 0, %s97
      %s99 = sphi 0, %s97
      %s100 = sphi 0, %s99
      %s114 = sphi 0, %s100
      %s118 = sphi 0, %s118
      %s120 = sphi 0, %s118
      %s121 = sphi 0, %s120
      %s135 = sphi 0, %s121
      %s139 = sphi 0, %s139
      %s141 = sphi 0, %s139
      %s142 = sphi 0, %s141
      %s156 = sphi 0, %s142
      %s160 = sphi 0, %s160
      %s162 = sphi 0, %s160
      %s163 = sphi 0, %s162
      %s177 = sphi 0, %s163
      %s181 = sphi 0, %s181
      %s183 = sphi 0, %s181
      %s184 = sphi 0, %s183
      %s198 = sphi 0, %s184
      %s202 = sphi 0, %s202
      %s204 = sphi 0, %s202
      %s205 = sphi 0, %s204
      %s219 = sphi 0, %s205
      %s225 = sphi 0, %s227
      %s228 = sphi 0, %s225
      %s229 = sphi 0, %s228
      %s245 = sphi 0, %s229
    $region4: #{tpu_custom_call.1} parent=1 // loop_header_branch
      %24 = sbr.rel (%p22) target = $region8
    $region5: #{tpu_custom_call.1} parent=1 // loop_body
      %s26 = ssub.s32 %s21, 1
      %s27 = ssub.s32 %s21, 2
      %s28 = sadd.s32 %s21, 1
      %s29 = ssub.s32 %s21, %s28
      %p30 = scmp.eq.s32.totalorder %s29, 0
      %s32 = sadd.s32 %s31, 1
      %s33 = scalar_select %p30, %s31, %s32
      %p36 = pneg %p30
      %p37 = scmp.eq.s32.totalorder %s21, 1
      %p38 = por %p36, %p37
      %p39 = scmp.ne.s32.totalorder %s31, %s34
      %p40 = scmp.eq.s32.totalorder %s21, 0
      %p41 = por %p39, %p40
      %p42 = scmp.ne.s32.totalorder %s31, %s34
      %p43 = scmp.eq.s32.totalorder %s26, 1
      %p44 = por %p42, %p43
      %p45 = scmp.ne.s32.totalorder %s34, %s35
      %p46 = scmp.eq.s32.totalorder %s26, 0
      %p47 = por %p45, %p46
      %p48 = scmp.ne.s32.totalorder %s34, %s35
      %p49 = scmp.eq.s32.totalorder %s27, 1
      %p50 = por %p48, %p49
      %p52 = scmp.ne.s32.totalorder %s35, %s51
      %p53 = scmp.eq.s32.totalorder %s27, 0
      %p54 = por %p52, %p53
      %s56 = sadd.s32 %s55, 1
      %p59 = scmp.eq.s32.totalorder %s21, 1
      %p60 = scmp.ne.s32.totalorder %s55, %s57
      %p61 = scmp.eq.s32.totalorder %s21, 0
      %p62 = por %p60, %p61
      %p63 = scmp.ne.s32.totalorder %s55, %s57
      %p64 = scmp.eq.s32.totalorder %s26, 1
      %p65 = por %p63, %p64
      %p66 = scmp.ne.s32.totalorder %s57, %s58
      %p67 = scmp.eq.s32.totalorder %s26, 0
      %p68 = por %p66, %p67
      %p69 = scmp.ne.s32.totalorder %s57, %s58
      %p70 = scmp.eq.s32.totalorder %s27, 1
      %p71 = por %p69, %p70
      %p73 = scmp.ne.s32.totalorder %s58, %s72
      %p74 = scmp.eq.s32.totalorder %s27, 0
      %p75 = por %p73, %p74
      %s77 = sadd.s32 %s76, 1
      %p80 = scmp.eq.s32.totalorder %s21, 1
      %p81 = scmp.ne.s32.totalorder %s76, %s78
      %p82 = scmp.eq.s32.totalorder %s21, 0
      %p83 = por %p81, %p82
      %p84 = scmp.ne.s32.totalorder %s76, %s78
      %p85 = scmp.eq.s32.totalorder %s26, 1
      %p86 = por %p84, %p85
      %p87 = scmp.ne.s32.totalorder %s78, %s79
      %p88 = scmp.eq.s32.totalorder %s26, 0
      %p89 = por %p87, %p88
      %p90 = scmp.ne.s32.totalorder %s78, %s79
      %p91 = scmp.eq.s32.totalorder %s27, 1
      %p92 = por %p90, %p91
      %p94 = scmp.ne.s32.totalorder %s79, %s93
      %p95 = scmp.eq.s32.totalorder %s27, 0
      %p96 = por %p94, %p95
      %s98 = sadd.s32 %s97, 1
      %p101 = scmp.eq.s32.totalorder %s21, 1
      %p102 = scmp.ne.s32.totalorder %s97, %s99
      %p103 = scmp.eq.s32.totalorder %s21, 0
      %p104 = por %p102, %p103
      %p105 = scmp.ne.s32.totalorder %s97, %s99
      %p106 = scmp.eq.s32.totalorder %s26, 1
      %p107 = por %p105, %p106
      %p108 = scmp.ne.s32.totalorder %s99, %s100
      %p109 = scmp.eq.s32.totalorder %s26, 0
      %p110 = por %p108, %p109
      %p111 = scmp.ne.s32.totalorder %s99, %s100
      %p112 = scmp.eq.s32.totalorder %s27, 1
      %p113 = por %p111, %p112
      %p115 = scmp.ne.s32.totalorder %s100, %s114
      %p116 = scmp.eq.s32.totalorder %s27, 0
      %p117 = por %p115, %p116
      %s119 = sadd.s32 %s118, 1
      %p122 = scmp.eq.s32.totalorder %s21, 1
      %p123 = scmp.ne.s32.totalorder %s118, %s120
      %p124 = scmp.eq.s32.totalorder %s21, 0
      %p125 = por %p123, %p124
      %p126 = scmp.ne.s32.totalorder %s118, %s120
      %p127 = scmp.eq.s32.totalorder %s26, 1
      %p128 = por %p126, %p127
      %p129 = scmp.ne.s32.totalorder %s120, %s121
      %p130 = scmp.eq.s32.totalorder %s26, 0
      %p131 = por %p129, %p130
      %p132 = scmp.ne.s32.totalorder %s120, %s121
      %p133 = scmp.eq.s32.totalorder %s27, 1
      %p134 = por %p132, %p133
      %p136 = scmp.ne.s32.totalorder %s121, %s135
      %p137 = scmp.eq.s32.totalorder %s27, 0
      %p138 = por %p136, %p137
      %s140 = sadd.s32 %s139, 1
      %p143 = scmp.eq.s32.totalorder %s21, 1
      %p144 = scmp.ne.s32.totalorder %s139, %s141
      %p145 = scmp.eq.s32.totalorder %s21, 0
      %p146 = por %p144, %p145
      %p147 = scmp.ne.s32.totalorder %s139, %s141
      %p148 = scmp.eq.s32.totalorder %s26, 1
      %p149 = por %p147, %p148
      %p150 = scmp.ne.s32.totalorder %s141, %s142
      %p151 = scmp.eq.s32.totalorder %s26, 0
      %p152 = por %p150, %p151
      %p153 = scmp.ne.s32.totalorder %s141, %s142
      %p154 = scmp.eq.s32.totalorder %s27, 1
      %p155 = por %p153, %p154
      %p157 = scmp.ne.s32.totalorder %s142, %s156
      %p158 = scmp.eq.s32.totalorder %s27, 0
      %p159 = por %p157, %p158
      %s161 = sadd.s32 %s160, 1
      %p164 = scmp.eq.s32.totalorder %s21, 1
      %p165 = scmp.ne.s32.totalorder %s160, %s162
      %p166 = scmp.eq.s32.totalorder %s21, 0
      %p167 = por %p165, %p166
      %p168 = scmp.ne.s32.totalorder %s160, %s162
      %p169 = scmp.eq.s32.totalorder %s26, 1
      %p170 = por %p168, %p169
      %p171 = scmp.ne.s32.totalorder %s162, %s163
      %p172 = scmp.eq.s32.totalorder %s26, 0
      %p173 = por %p171, %p172
      %p174 = scmp.ne.s32.totalorder %s162, %s163
      %p175 = scmp.eq.s32.totalorder %s27, 1
      %p176 = por %p174, %p175
      %p178 = scmp.ne.s32.totalorder %s163, %s177
      %p179 = scmp.eq.s32.totalorder %s27, 0
      %p180 = por %p178, %p179
      %s182 = sadd.s32 %s181, 1
      %p185 = scmp.eq.s32.totalorder %s21, 1
      %p186 = scmp.ne.s32.totalorder %s181, %s183
      %p187 = scmp.eq.s32.totalorder %s21, 0
      %p188 = por %p186, %p187
      %p189 = scmp.ne.s32.totalorder %s181, %s183
      %p190 = scmp.eq.s32.totalorder %s26, 1
      %p191 = por %p189, %p190
      %p192 = scmp.ne.s32.totalorder %s183, %s184
      %p193 = scmp.eq.s32.totalorder %s26, 0
      %p194 = por %p192, %p193
      %p195 = scmp.ne.s32.totalorder %s183, %s184
      %p196 = scmp.eq.s32.totalorder %s27, 1
      %p197 = por %p195, %p196
      %p199 = scmp.ne.s32.totalorder %s184, %s198
      %p200 = scmp.eq.s32.totalorder %s27, 0
      %p201 = por %p199, %p200
      %s203 = sadd.s32 %s202, 1
      %p206 = scmp.eq.s32.totalorder %s21, 1
      %p207 = scmp.ne.s32.totalorder %s202, %s204
      %p208 = scmp.eq.s32.totalorder %s21, 0
      %p209 = por %p207, %p208
      %p210 = scmp.ne.s32.totalorder %s202, %s204
      %p211 = scmp.eq.s32.totalorder %s26, 1
      %p212 = por %p210, %p211
      %p213 = scmp.ne.s32.totalorder %s204, %s205
      %p214 = scmp.eq.s32.totalorder %s26, 0
      %p215 = por %p213, %p214
      %p216 = scmp.ne.s32.totalorder %s204, %s205
      %p217 = scmp.eq.s32.totalorder %s27, 1
      %p218 = por %p216, %p217
      %p220 = scmp.ne.s32.totalorder %s205, %s219
      %p221 = scmp.eq.s32.totalorder %s27, 0
      %p222 = por %p220, %p221
      %s223 = ssub.s32 %s21, %s28
      %p224 = scmp.eq.s32.totalorder %s223, 0
      %s226 = sadd.s32 %s225, 1
      %s227 = scalar_select %p224, %s225, %s226
      %p230 = pneg %p224
      %p231 = scmp.eq.s32.totalorder %s21, 1
      %p232 = por %p230, %p231
      %p233 = scmp.ne.s32.totalorder %s225, %s228
      %p234 = scmp.eq.s32.totalorder %s21, 0
      %p235 = por %p233, %p234
      %p236 = scmp.ne.s32.totalorder %s225, %s228
      %p237 = scmp.eq.s32.totalorder %s26, 1
      %p238 = por %p236, %p237
      %p239 = scmp.ne.s32.totalorder %s228, %s229
      %p240 = scmp.eq.s32.totalorder %s26, 0
      %p241 = por %p239, %p240
      %p242 = scmp.ne.s32.totalorder %s228, %s229
      %p243 = scmp.eq.s32.totalorder %s27, 1
      %p244 = por %p242, %p243
      %p246 = scmp.ne.s32.totalorder %s229, %s245
      %p247 = scmp.eq.s32.totalorder %s27, 0
      %p248 = por %p246, %p247
      %p249 = scmp.le.s32.totalorder 1, %s21
      %p250 = scmp.lt.s32.totalorder %s21, 3
      %p251 = pnand %p249, %p250
      %p252 = pneg %p251
      // Predicated region
      $region9: #{tpu_custom_call.1} parent=5 // pred_check
        _
      $region10: #{tpu_custom_call.1} parent=5 // pred_check_branch
        %254 = sbr.rel (%p251) target = $region12
      $region11: #{tpu_custom_call.1} parent=5 // pred_region
        %s255 = ssub.s32 %s21, 1
        // Predicated region
        $region13: #{tpu_custom_call.1} parent=11 // pred_check
          %p256 = pneg %p68
        $region14: #{tpu_custom_call.1} parent=11 // pred_check_branch
          %258 = sbr.rel (%p256) target = $region16
        $region15: #{tpu_custom_call.1} parent=11 // pred_region
          _
        $region16: #{tpu_custom_call.1} parent=11 // pred_fallthru
          _
        // Predicated region
        $region17: #{tpu_custom_call.1} parent=11 // pred_check
          %p259 = pneg %p89
        $region18: #{tpu_custom_call.1} parent=11 // pred_check_branch
          %261 = sbr.rel (%p259) target = $region20
        $region19: #{tpu_custom_call.1} parent=11 // pred_region
          _
        $region20: #{tpu_custom_call.1} parent=11 // pred_fallthru
          _
        // Predicated region
        $region21: #{tpu_custom_call.1} parent=11 // pred_check
          %p262 = pneg %p110
        $region22: #{tpu_custom_call.1} parent=11 // pred_check_branch
          %264 = sbr.rel (%p262) target = $region24
        $region23: #{tpu_custom_call.1} parent=11 // pred_region
          _
        $region24: #{tpu_custom_call.1} parent=11 // pred_fallthru
          _
        // Predicated region
        $region25: #{tpu_custom_call.1} parent=11 // pred_check
          %p265 = pneg %p131
        $region26: #{tpu_custom_call.1} parent=11 // pred_check_branch
          %267 = sbr.rel (%p265) target = $region28
        $region27: #{tpu_custom_call.1} parent=11 // pred_region
          _
        $region28: #{tpu_custom_call.1} parent=11 // pred_fallthru
          _
        // Predicated region
        $region29: #{tpu_custom_call.1} parent=11 // pred_check
          %p268 = pneg %p152
        $region30: #{tpu_custom_call.1} parent=11 // pred_check_branch
          %270 = sbr.rel (%p268) target = $region32
        $region31: #{tpu_custom_call.1} parent=11 // pred_region
          _
        $region32: #{tpu_custom_call.1} parent=11 // pred_fallthru
          _
        // Predicated region
        $region33: #{tpu_custom_call.1} parent=11 // pred_check
          %p271 = pneg %p173
        $region34: #{tpu_custom_call.1} parent=11 // pred_check_branch
          %273 = sbr.rel (%p271) target = $region36
        $region35: #{tpu_custom_call.1} parent=11 // pred_region
          _
        $region36: #{tpu_custom_call.1} parent=11 // pred_fallthru
          _
        // Predicated region
        $region37: #{tpu_custom_call.1} parent=11 // pred_check
          %p274 = pneg %p194
        $region38: #{tpu_custom_call.1} parent=11 // pred_check_branch
          %276 = sbr.rel (%p274) target = $region40
        $region39: #{tpu_custom_call.1} parent=11 // pred_region
          _
        $region40: #{tpu_custom_call.1} parent=11 // pred_fallthru
          _
        // Predicated region
        $region41: #{tpu_custom_call.1} parent=11 // pred_check
          %p277 = pneg %p215
        $region42: #{tpu_custom_call.1} parent=11 // pred_check_branch
          %279 = sbr.rel (%p277) target = $region44
        $region43: #{tpu_custom_call.1} parent=11 // pred_region
          _
        $region44: #{tpu_custom_call.1} parent=11 // pred_fallthru
          _
      $region12: #{tpu_custom_call.1} parent=5 // pred_fallthru
        _
      %p280 = scmp.lt.s32.totalorder %s21, 2
      // Predicated region
      $region45: #{tpu_custom_call.1} parent=5 // pred_check
        %p281 = pneg %p280
      $region46: #{tpu_custom_call.1} parent=5 // pred_check_branch
        %283 = sbr.rel (%p281) target = $region48
      $region47: #{tpu_custom_call.1} parent=5 // pred_region
        // Predicated region
        $region49: #{tpu_custom_call.1} parent=47 // pred_check
          %p284 = pneg %p41
        $region50: #{tpu_custom_call.1} parent=47 // pred_check_branch
          %286 = sbr.rel (%p284) target = $region52
        $region51: #{tpu_custom_call.1} parent=47 // pred_region
          %s287 = sand.u32 %s31, 1
          %s288 = scalar_lea.sflag [#allocation3], %s287
          %s289 = sand.u32 %s31, 1
          %s290 = smul.addr %s289, 8
          %s291 = scalar_lea.vmem [#allocation2], %s290
          %s293 = ssub.s32 128, 128
          %294 = vsyncadd %s288, %s293
          %s295 = smul.addr %s21, 128
          %s296 = scalar_lea.hbm %s0, %s295
          %s298 = sshll.u32 %s291, 4
          %s299 = int_to_ptr.vmem [resolvable:$true] %s298
          %301 = dma.hbm_to_vmem [thread:$0]  %s296, 128, %s299, %s288
        $region52: #{tpu_custom_call.1} parent=47 // pred_fallthru
          _
      $region48: #{tpu_custom_call.1} parent=5 // pred_fallthru
        _
      %p302 = scmp.le.s32.totalorder 1, %s21
      %p303 = scmp.lt.s32.totalorder %s21, 3
      %p304 = pnand %p302, %p303
      %p305 = pneg %p304
      // Predicated region
      $region53: #{tpu_custom_call.1} parent=5 // pred_check
        _
      $region54: #{tpu_custom_call.1} parent=5 // pred_check_branch
        %307 = sbr.rel (%p304) target = $region56
      $region55: #{tpu_custom_call.1} parent=5 // pred_region
        %s308 = ssub.s32 %s21, 1
        %s309 = sand.u32 %s34, 1
        %s310 = scalar_lea.sflag [#allocation3], %s309
        %s311 = sand.u32 %s34, 1
        %s312 = smul.addr %s311, 8
        %s313 = scalar_lea.vmem [#allocation2], %s312
        // Predicated region
        $region57: #{tpu_custom_call.1} parent=55 // pred_check
          %p314 = pneg %p47
        $region58: #{tpu_custom_call.1} parent=55 // pred_check_branch
          %316 = sbr.rel (%p314) target = $region60
        $region59: #{tpu_custom_call.1} parent=55 // pred_region
          %317 = dma.done %s310, 128
        $region60: #{tpu_custom_call.1} parent=55 // pred_fallthru
          _
        %s318 = sand.u32 %s34, 1
        %s319 = scalar_lea.sflag [#allocation3], %s318
        %s320 = sand.u32 %s34, 1
        %s321 = smul.addr %s320, 8
        %s322 = scalar_lea.vmem [#allocation2], %s321
        %p323 = pneg %p47
        %p324 = pneg %p44
        %p325 = pneg %p68
        %p326 = pneg %p65
        %p327 = pneg %p89
        %p328 = pneg %p86
        %p329 = pneg %p110
        %p330 = pneg %p107
        %p331 = pneg %p131
        %p332 = pneg %p128
        %p333 = pneg %p152
        %p334 = pneg %p149
        %p335 = pneg %p173
        %p336 = pneg %p170
        %p337 = pneg %p194
        %p338 = pneg %p191
        %p339 = pneg %p215
        %p340 = pneg %p212
        %p341 = pneg %p241
        %p342 = pneg %p238
        %s343 = sand.u32 %s228, 1
        %s344 = scalar_lea.sflag [#allocation4], %s343
        %s345 = sand.u32 %s228, 1
        %s346 = scalar_lea.vmem [#allocation5], %s345
        %v348 = vld [vmem:[%s313] sm:$0xff]
        %v349 = vpack.c.bf16 %v348, %v348
        %v350 = vld [vmem:[%s1] sm:$0xf]
        %v351 = vld [vmem:[%s1 + $0x4] sm:$0xf]
        %v352 = vld [vmem:[%s1 + $0x8] sm:$0xf]
        %v353 = vld [vmem:[%s1 + $0xc] sm:$0xf]
        %v354 = vld [vmem:[%s2] sm:$0x1]
        %v356 = vlaneseq
        %v357 = vshrl.u32 %v356, 7
        %v358 = vsub.s32 0, %v357
        %v359 = vrot.slane %v354, %v358
        %v365 = vunpack.c.l.b16 %v350
        %v366 = vunpack.c.l.b16 %v351
        %v367 = vunpack.c.l.b16 %v352
        %v368 = vunpack.c.l.b16 %v353
        %v369 = vpack.c.b16 %v366, %v365
        %v370 = vpack.c.b16 %v368, %v367
        %vm373 = vcmask 261120
        %v375 = vsel %vm373, %v349, 0
        %377 = vmatprep.subr.bf16.mxu0 0
        %378 = vmatpush1.bf16.msra.mxu0 %v369
        %379 = vmatprep.subr.bf16.mxu0 0
        %380 = vmatpush1.bf16.msra.mxu0 %v370
        %381 = vmatprep.subr.bf16.mxu0 0
        %382 = vmatpush1.bf16.msra.mxu0 0
        %383 = vmatprep.subr.bf16.mxu0 0
        %384 = vmatpush1.bf16.msra.mxu0 0
        %385 = vmatprep.subr.bf16.mxu0 0
        %386 = vmatpush1.bf16.msra.mxu0 0
        %387 = vmatprep.subr.bf16.mxu0 0
        %388 = vmatpush1.bf16.msra.mxu0 0
        %389 = vmatprep.subr.bf16.mxu0 0
        %390 = vmatpush1.bf16.msra.mxu0 0
        %391 = vmatprep.subr.bf16.mxu0 0
        %392 = vmatpush1.bf16.msra.mxu0 0
        %393 = vmatprep.subr.bf16.mxu0 0
        %394 = vmatpush1.bf16.msra.mxu0 0
        %395 = vmatprep.subr.bf16.mxu0 0
        %396 = vmatpush1.bf16.msra.mxu0 0
        %397 = vmatprep.subr.bf16.mxu0 0
        %398 = vmatpush1.bf16.msra.mxu0 0
        %399 = vmatprep.subr.bf16.mxu0 0
        %400 = vmatpush1.bf16.msra.mxu0 0
        %401 = vmatprep.subr.bf16.mxu0 0
        %402 = vmatpush1.bf16.msra.mxu0 0
        %403 = vmatprep.subr.bf16.mxu0 0
        %404 = vmatpush1.bf16.msra.mxu0 0
        %405 = vmatprep.subr.bf16.mxu0 0
        %406 = vmatpush1.bf16.msra.mxu0 0
        %407 = vmatprep.subr.bf16.mxu0 0
        %408 = vmatpush1.bf16.msra.mxu0 0
        %409 = vmatprep.mubr.bf16.mxu0 0
        %410 = vmatmul.mubr.bf16.gmra.mrb[0].mxu0 %v375
        %v411 = vpop.f32.mrb[0].mxu0
        %v412 = vadd.f32 %v359, %v411
        %v413 = vpop.f32.mrb[0].mxu0
        %v414 = vpop.f32.mrb[0].mxu0
        %v415 = vpop.f32.mrb[0].mxu0
        %416 = vdwg.mxu0
        %418 = vrot.lane.b32.xlu0 %v412, 120
        %v419 = vpop.permute.xlu0 %418
        %421 = vrot.lane.b32.xlu0 %v412, 112
        %v422 = vpop.permute.xlu0 %421
        %424 = vrot.lane.b32.xlu0 %v412, 104
        %v425 = vpop.permute.xlu0 %424
        %v427 = vcombine.low %v412, %v422
        %v428 = vcombine.high %v412, %v422
        %v430 = vunpack.c.l.s4 1983009808
        %v431 = vunpack.c.0.s8 %v430
        %v432 = vlaneseq
        %v433 = vshrl.u32 %v432, 7
        %v434 = vsub.s32 %v431, %v433
        %v435 = vrot.slane %v427, %v434
        %v437 = vunpack.c.l.s4 1983009808
        %v438 = vunpack.c.0.s8 %v437
        %v439 = vlaneseq
        %v440 = vshrl.u32 %v439, 7
        %v441 = vsub.s32 %v438, %v440
        %v442 = vrot.slane %v428, %v441
        %v443 = vcombine.low %v419, %v425
        %v444 = vcombine.high %v419, %v425
        %v446 = vunpack.c.l.s4 1983009808
        %v447 = vunpack.c.0.s8 %v446
        %v448 = vlaneseq
        %v449 = vshrl.u32 %v448, 7
        %v450 = vsub.s32 %v447, %v449
        %v451 = vrot.slane %v443, %v450
        %v453 = vunpack.c.l.s4 1983009808
        %v454 = vunpack.c.0.s8 %v453
        %v455 = vlaneseq
        %v456 = vshrl.u32 %v455, 7
        %v457 = vsub.s32 %v454, %v456
        %v458 = vrot.slane %v444, %v457
        %v459 = vcombine.low %v435, %v451
        %v460 = vcombine.high %v435, %v451
        %v462 = vunpack.c.l.s4 1934713408
        %v463 = vunpack.c.0.s8 %v462
        %v464 = vlaneseq
        %v465 = vshrl.u32 %v464, 7
        %v466 = vsub.s32 %v463, %v465
        %v467 = vrot.slane %v459, %v466
        %v469 = vunpack.c.l.s4 1934713408
        %v470 = vunpack.c.0.s8 %v469
        %v471 = vlaneseq
        %v472 = vshrl.u32 %v471, 7
        %v473 = vsub.s32 %v470, %v472
        %v474 = vrot.slane %v460, %v473
        %v475 = vcombine.low %v442, %v458
        %v476 = vcombine.high %v442, %v458
        %v478 = vunpack.c.l.s4 1934713408
        %v479 = vunpack.c.0.s8 %v478
        %v480 = vlaneseq
        %v481 = vshrl.u32 %v480, 7
        %v482 = vsub.s32 %v479, %v481
        %v483 = vrot.slane %v475, %v482
        %v485 = vunpack.c.l.s4 1934713408
        %v486 = vunpack.c.0.s8 %v485
        %v487 = vlaneseq
        %v488 = vshrl.u32 %v487, 7
        %v489 = vsub.s32 %v486, %v488
        %v490 = vrot.slane %v476, %v489
        %v491 = vcombine.high %v467, 0.0
        %v492 = vcombine.high %v474, 0.0
        %v493 = vcombine.high %v483, 0.0
        %v494 = vcombine.high %v490, 0.0
        %495 = vrot.lane.b32.xlu0 %v412, 96
        %v496 = vpop.permute.xlu0 %495
        %497 = vrot.lane.b32.xlu0 %v419, 96
        %v498 = vpop.permute.xlu0 %497
        %499 = vrot.lane.b32.xlu0 %v422, 96
        %v500 = vpop.permute.xlu0 %499
        %501 = vrot.lane.b32.xlu0 %v425, 96
        %v502 = vpop.permute.xlu0 %501
        %v507 = vcombine.low %v496, %v500
        %v508 = vcombine.high %v496, %v500
        %v510 = vunpack.c.l.s4 1983009808
        %v511 = vunpack.c.0.s8 %v510
        %v512 = vlaneseq
        %v513 = vshrl.u32 %v512, 7
        %v514 = vsub.s32 %v511, %v513
        %v515 = vrot.slane %v507, %v514
        %v517 = vunpack.c.l.s4 1983009808
        %v518 = vunpack.c.0.s8 %v517
        %v519 = vlaneseq
        %v520 = vshrl.u32 %v519, 7
        %v521 = vsub.s32 %v518, %v520
        %v522 = vrot.slane %v508, %v521
        %v523 = vcombine.low %v498, %v502
        %v524 = vcombine.high %v498, %v502
        %v526 = vunpack.c.l.s4 1983009808
        %v527 = vunpack.c.0.s8 %v526
        %v528 = vlaneseq
        %v529 = vshrl.u32 %v528, 7
        %v530 = vsub.s32 %v527, %v529
        %v531 = vrot.slane %v523, %v530
        %v533 = vunpack.c.l.s4 1983009808
        %v534 = vunpack.c.0.s8 %v533
        %v535 = vlaneseq
        %v536 = vshrl.u32 %v535, 7
        %v537 = vsub.s32 %v534, %v536
        %v538 = vrot.slane %v524, %v537
        %v539 = vcombine.low %v515, %v531
        %v540 = vcombine.high %v515, %v531
        %v542 = vunpack.c.l.s4 1934713408
        %v543 = vunpack.c.0.s8 %v542
        %v544 = vlaneseq
        %v545 = vshrl.u32 %v544, 7
        %v546 = vsub.s32 %v543, %v545
        %v547 = vrot.slane %v539, %v546
        %v549 = vunpack.c.l.s4 1934713408
        %v550 = vunpack.c.0.s8 %v549
        %v551 = vlaneseq
        %v552 = vshrl.u32 %v551, 7
        %v553 = vsub.s32 %v550, %v552
        %v554 = vrot.slane %v540, %v553
        %v555 = vcombine.low %v522, %v538
        %v556 = vcombine.high %v522, %v538
        %v558 = vunpack.c.l.s4 1934713408
        %v559 = vunpack.c.0.s8 %v558
        %v560 = vlaneseq
        %v561 = vshrl.u32 %v560, 7
        %v562 = vsub.s32 %v559, %v561
        %v563 = vrot.slane %v555, %v562
        %v565 = vunpack.c.l.s4 1934713408
        %v566 = vunpack.c.0.s8 %v565
        %v567 = vlaneseq
        %v568 = vshrl.u32 %v567, 7
        %v569 = vsub.s32 %v566, %v568
        %v570 = vrot.slane %v556, %v569
        %v571 = vcombine.high %v547, 0.0
        %v572 = vcombine.high %v554, 0.0
        %v573 = vcombine.high %v563, 0.0
        %v574 = vcombine.high %v570, 0.0
        %575 = vrot.lane.b32.xlu0 %v412, 64
        %v576 = vpop.permute.xlu0 %575
        %577 = vrot.lane.b32.xlu0 %v419, 64
        %v578 = vpop.permute.xlu0 %577
        %579 = vrot.lane.b32.xlu0 %v422, 64
        %v580 = vpop.permute.xlu0 %579
        %581 = vrot.lane.b32.xlu0 %v425, 64
        %v582 = vpop.permute.xlu0 %581
        %v587 = vcombine.low %v576, %v580
        %v588 = vcombine.high %v576, %v580
        %v590 = vunpack.c.l.s4 1983009808
        %v591 = vunpack.c.0.s8 %v590
        %v592 = vlaneseq
        %v593 = vshrl.u32 %v592, 7
        %v594 = vsub.s32 %v591, %v593
        %v595 = vrot.slane %v587, %v594
        %v597 = vunpack.c.l.s4 1983009808
        %v598 = vunpack.c.0.s8 %v597
        %v599 = vlaneseq
        %v600 = vshrl.u32 %v599, 7
        %v601 = vsub.s32 %v598, %v600
        %v602 = vrot.slane %v588, %v601
        %v603 = vcombine.low %v578, %v582
        %v604 = vcombine.high %v578, %v582
        %v606 = vunpack.c.l.s4 1983009808
        %v607 = vunpack.c.0.s8 %v606
        %v608 = vlaneseq
        %v609 = vshrl.u32 %v608, 7
        %v610 = vsub.s32 %v607, %v609
        %v611 = vrot.slane %v603, %v610
        %v613 = vunpack.c.l.s4 1983009808
        %v614 = vunpack.c.0.s8 %v613
        %v615 = vlaneseq
        %v616 = vshrl.u32 %v615, 7
        %v617 = vsub.s32 %v614, %v616
        %v618 = vrot.slane %v604, %v617
        %v619 = vcombine.low %v595, %v611
        %v620 = vcombine.high %v595, %v611
        %v622 = vunpack.c.l.s4 1934713408
        %v623 = vunpack.c.0.s8 %v622
        %v624 = vlaneseq
        %v625 = vshrl.u32 %v624, 7
        %v626 = vsub.s32 %v623, %v625
        %v627 = vrot.slane %v619, %v626
        %v629 = vunpack.c.l.s4 1934713408
        %v630 = vunpack.c.0.s8 %v629
        %v631 = vlaneseq
        %v632 = vshrl.u32 %v631, 7
        %v633 = vsub.s32 %v630, %v632
        %v634 = vrot.slane %v620, %v633
        %v635 = vcombine.low %v602, %v618
        %v636 = vcombine.high %v602, %v618
        %v638 = vunpack.c.l.s4 1934713408
        %v639 = vunpack.c.0.s8 %v638
        %v640 = vlaneseq
        %v641 = vshrl.u32 %v640, 7
        %v642 = vsub.s32 %v639, %v641
        %v643 = vrot.slane %v635, %v642
        %v645 = vunpack.c.l.s4 1934713408
        %v646 = vunpack.c.0.s8 %v645
        %v647 = vlaneseq
        %v648 = vshrl.u32 %v647, 7
        %v649 = vsub.s32 %v646, %v648
        %v650 = vrot.slane %v636, %v649
        %v651 = vcombine.high %v627, 0.0
        %v652 = vcombine.high %v634, 0.0
        %v653 = vcombine.high %v643, 0.0
        %v654 = vcombine.high %v650, 0.0
        %v655 = vpack.c.bf16 %v467, %v467
        %v656 = vpack.c.bf16 %v491, %v491
        %v657 = vpack.c.bf16 %v474, %v474
        %v658 = vpack.c.bf16 %v492, %v492
        %v659 = vpack.c.bf16 %v483, %v483
        %v660 = vpack.c.bf16 %v493, %v493
        %v661 = vpack.c.bf16 %v490, %v490
        %v662 = vpack.c.bf16 %v494, %v494
        %v663 = vpack.c.bf16 %v547, %v547
        %v664 = vpack.c.bf16 %v571, %v571
        %v665 = vpack.c.bf16 %v554, %v554
        %v666 = vpack.c.bf16 %v572, %v572
        %v667 = vpack.c.bf16 %v563, %v563
        %v668 = vpack.c.bf16 %v573, %v573
        %v669 = vpack.c.bf16 %v570, %v570
        %v670 = vpack.c.bf16 %v574, %v574
        %v671 = vcombine.low %v655, %v659
        %v673 = vunpack.c.l.s4 1983009808
        %v674 = vunpack.c.0.s8 %v673
        %v675 = vlaneseq
        %v676 = vshrl.u32 %v675, 7
        %v677 = vsub.s32 %v674, %v676
        %v678 = vrot.slane %v671, %v677
        %v679 = vcombine.low %v657, %v661
        %v681 = vunpack.c.l.s4 1983009808
        %v682 = vunpack.c.0.s8 %v681
        %v683 = vlaneseq
        %v684 = vshrl.u32 %v683, 7
        %v685 = vsub.s32 %v682, %v684
        %v686 = vrot.slane %v679, %v685
        %v687 = vcombine.low %v678, %v686
        %v689 = vunpack.c.l.s4 1934713408
        %v690 = vunpack.c.0.s8 %v689
        %v691 = vlaneseq
        %v692 = vshrl.u32 %v691, 7
        %v693 = vsub.s32 %v690, %v692
        %v694 = vrot.slane %v687, %v693
        %v695 = vcombine.high %v694, 0
        %v696 = vcombine.low %v656, %v660
        %v698 = vunpack.c.l.s4 1983009808
        %v699 = vunpack.c.0.s8 %v698
        %v700 = vlaneseq
        %v701 = vshrl.u32 %v700, 7
        %v702 = vsub.s32 %v699, %v701
        %v703 = vrot.slane %v696, %v702
        %v704 = vcombine.low %v658, %v662
        %v706 = vunpack.c.l.s4 1983009808
        %v707 = vunpack.c.0.s8 %v706
        %v708 = vlaneseq
        %v709 = vshrl.u32 %v708, 7
        %v710 = vsub.s32 %v707, %v709
        %v711 = vrot.slane %v704, %v710
        %v712 = vcombine.low %v703, %v711
        %v714 = vunpack.c.l.s4 1934713408
        %v715 = vunpack.c.0.s8 %v714
        %v716 = vlaneseq
        %v717 = vshrl.u32 %v716, 7
        %v718 = vsub.s32 %v715, %v717
        %v719 = vrot.slane %v712, %v718
        %v720 = vcombine.high %v719, 0
        %v723 = vpack.i.b16 %v719, %v694
        %v724 = vshrl.u32 %v694, 16
        %v725 = vshrl.u32 %v719, 16
        %v726 = vpack.i.b16 %v725, %v724
        %v729 = vpack.i.b16 %v720, %v695
        %v730 = vshrl.u32 %v695, 16
        %v731 = vshrl.u32 %v720, 16
        %v732 = vpack.i.b16 %v731, %v730
        %733 = vxpose.xlu0.c.b16.start [1/8] %v663, 128
        %734 = vxpose.xlu0.c.b16.cont [2/8] 0, 128
        %735 = vxpose.xlu0.c.b16.cont [3/8] 0, 128
        %736 = vxpose.xlu0.c.b16.cont [4/8] 0, 128
        %737 = vxpose.xlu0.c.b16.cont [5/8] 0, 128
        %738 = vxpose.xlu0.c.b16.cont [6/8] 0, 128
        %739 = vxpose.xlu0.c.b16.cont [7/8] 0, 128
        %740 = vxpose.xlu0.c.b16.end [8/8] 0, 128
        %v741 = vpop.trf.xlu0
        %v742 = vpop.trf.xlu0
        %v743 = vpop.trf.xlu0
        %v744 = vpop.trf.xlu0
        %v745 = vpop.trf.xlu0
        %v746 = vpop.trf.xlu0
        %v747 = vpop.trf.xlu0
        %v748 = vpop.trf.xlu0
        %749 = vxpose.xlu0.c.b16.start [1/8] %v664, 128
        %750 = vxpose.xlu0.c.b16.cont [2/8] 0, 128
        %751 = vxpose.xlu0.c.b16.cont [3/8] 0, 128
        %752 = vxpose.xlu0.c.b16.cont [4/8] 0, 128
        %753 = vxpose.xlu0.c.b16.cont [5/8] 0, 128
        %754 = vxpose.xlu0.c.b16.cont [6/8] 0, 128
        %755 = vxpose.xlu0.c.b16.cont [7/8] 0, 128
        %756 = vxpose.xlu0.c.b16.end [8/8] 0, 128
        %v757 = vpop.trf.xlu0
        %v758 = vpop.trf.xlu0
        %v759 = vpop.trf.xlu0
        %v760 = vpop.trf.xlu0
        %v761 = vpop.trf.xlu0
        %v762 = vpop.trf.xlu0
        %v763 = vpop.trf.xlu0
        %v764 = vpop.trf.xlu0
        %765 = vxpose.xlu0.c.b16.start [1/8] %v665, 128
        %766 = vxpose.xlu0.c.b16.cont [2/8] 0, 128
        %767 = vxpose.xlu0.c.b16.cont [3/8] 0, 128
        %768 = vxpose.xlu0.c.b16.cont [4/8] 0, 128
        %769 = vxpose.xlu0.c.b16.cont [5/8] 0, 128
        %770 = vxpose.xlu0.c.b16.cont [6/8] 0, 128
        %771 = vxpose.xlu0.c.b16.cont [7/8] 0, 128
        %772 = vxpose.xlu0.c.b16.end [8/8] 0, 128
        %v773 = vpop.trf.xlu0
        %v774 = vpop.trf.xlu0
        %v775 = vpop.trf.xlu0
        %v776 = vpop.trf.xlu0
        %v777 = vpop.trf.xlu0
        %v778 = vpop.trf.xlu0
        %v779 = vpop.trf.xlu0
        %v780 = vpop.trf.xlu0
        %781 = vxpose.xlu0.c.b16.start [1/8] %v666, 128
        %782 = vxpose.xlu0.c.b16.cont [2/8] 0, 128
        %783 = vxpose.xlu0.c.b16.cont [3/8] 0, 128
        %784 = vxpose.xlu0.c.b16.cont [4/8] 0, 128
        %785 = vxpose.xlu0.c.b16.cont [5/8] 0, 128
        %786 = vxpose.xlu0.c.b16.cont [6/8] 0, 128
        %787 = vxpose.xlu0.c.b16.cont [7/8] 0, 128
        %788 = vxpose.xlu0.c.b16.end [8/8] 0, 128
        %v789 = vpop.trf.xlu0
        %v790 = vpop.trf.xlu0
        %v791 = vpop.trf.xlu0
        %v792 = vpop.trf.xlu0
        %v793 = vpop.trf.xlu0
        %v794 = vpop.trf.xlu0
        %v795 = vpop.trf.xlu0
        %v796 = vpop.trf.xlu0
        %797 = vxpose.xlu0.c.b16.start [1/8] %v667, 128
        %798 = vxpose.xlu0.c.b16.cont [2/8] 0, 128
        %799 = vxpose.xlu0.c.b16.cont [3/8] 0, 128
        %800 = vxpose.xlu0.c.b16.cont [4/8] 0, 128
        %801 = vxpose.xlu0.c.b16.cont [5/8] 0, 128
        %802 = vxpose.xlu0.c.b16.cont [6/8] 0, 128
        %803 = vxpose.xlu0.c.b16.cont [7/8] 0, 128
        %804 = vxpose.xlu0.c.b16.end [8/8] 0, 128
        %v805 = vpop.trf.xlu0
        %v806 = vpop.trf.xlu0
        %v807 = vpop.trf.xlu0
        %v808 = vpop.trf.xlu0
        %v809 = vpop.trf.xlu0
        %v810 = vpop.trf.xlu0
        %v811 = vpop.trf.xlu0
        %v812 = vpop.trf.xlu0
        %813 = vxpose.xlu0.c.b16.start [1/8] %v668, 128
        %814 = vxpose.xlu0.c.b16.cont [2/8] 0, 128
        %815 = vxpose.xlu0.c.b16.cont [3/8] 0, 128
        %816 = vxpose.xlu0.c.b16.cont [4/8] 0, 128
        %817 = vxpose.xlu0.c.b16.cont [5/8] 0, 128
        %818 = vxpose.xlu0.c.b16.cont [6/8] 0, 128
        %819 = vxpose.xlu0.c.b16.cont [7/8] 0, 128
        %820 = vxpose.xlu0.c.b16.end [8/8] 0, 128
        %v821 = vpop.trf.xlu0
        %v822 = vpop.trf.xlu0
        %v823 = vpop.trf.xlu0
        %v824 = vpop.trf.xlu0
        %v825 = vpop.trf.xlu0
        %v826 = vpop.trf.xlu0
        %v827 = vpop.trf.xlu0
        %v828 = vpop.trf.xlu0
        %829 = vxpose.xlu0.c.b16.start [1/8] %v669, 128
        %830 = vxpose.xlu0.c.b16.cont [2/8] 0, 128
        %831 = vxpose.xlu0.c.b16.cont [3/8] 0, 128
        %832 = vxpose.xlu0.c.b16.cont [4/8] 0, 128
        %833 = vxpose.xlu0.c.b16.cont [5/8] 0, 128
        %834 = vxpose.xlu0.c.b16.cont [6/8] 0, 128
        %835 = vxpose.xlu0.c.b16.cont [7/8] 0, 128
        %836 = vxpose.xlu0.c.b16.end [8/8] 0, 128
        %v837 = vpop.trf.xlu0
        %v838 = vpop.trf.xlu0
        %v839 = vpop.trf.xlu0
        %v840 = vpop.trf.xlu0
        %v841 = vpop.trf.xlu0
        %v842 = vpop.trf.xlu0
        %v843 = vpop.trf.xlu0
        %v844 = vpop.trf.xlu0
        %845 = vxpose.xlu0.c.b16.start [1/8] %v670, 128
        %846 = vxpose.xlu0.c.b16.cont [2/8] 0, 128
        %847 = vxpose.xlu0.c.b16.cont [3/8] 0, 128
        %848 = vxpose.xlu0.c.b16.cont [4/8] 0, 128
        %849 = vxpose.xlu0.c.b16.cont [5/8] 0, 128
        %850 = vxpose.xlu0.c.b16.cont [6/8] 0, 128
        %851 = vxpose.xlu0.c.b16.cont [7/8] 0, 128
        %852 = vxpose.xlu0.c.b16.end [8/8] 0, 128
        %v853 = vpop.trf.xlu0
        %v854 = vpop.trf.xlu0
        %v855 = vpop.trf.xlu0
        %v856 = vpop.trf.xlu0
        %v857 = vpop.trf.xlu0
        %v858 = vpop.trf.xlu0
        %v859 = vpop.trf.xlu0
        %v860 = vpop.trf.xlu0
        %v861 = vcombine.low %v741, %v805
        %v863 = vunpack.c.l.s4 1983009808
        %v864 = vunpack.c.0.s8 %v863
        %v865 = vlaneseq
        %v866 = vshrl.u32 %v865, 7
        %v867 = vsub.s32 %v864, %v866
        %v868 = vrot.slane %v861, %v867
        %v869 = vcombine.low %v773, %v837
        %v871 = vunpack.c.l.s4 1983009808
        %v872 = vunpack.c.0.s8 %v871
        %v873 = vlaneseq
        %v874 = vshrl.u32 %v873, 7
        %v875 = vsub.s32 %v872, %v874
        %v876 = vrot.slane %v869, %v875
        %v877 = vcombine.low %v868, %v876
        %v878 = vcombine.high %v868, %v876
        %v880 = vunpack.c.l.s4 1934713408
        %v881 = vunpack.c.0.s8 %v880
        %v882 = vlaneseq
        %v883 = vshrl.u32 %v882, 7
        %v884 = vsub.s32 %v881, %v883
        %v885 = vrot.slane %v877, %v884
        %v887 = vunpack.c.l.s4 1934713408
        %v888 = vunpack.c.0.s8 %v887
        %v889 = vlaneseq
        %v890 = vshrl.u32 %v889, 7
        %v891 = vsub.s32 %v888, %v890
        %v892 = vrot.slane %v878, %v891
        %v893 = vcombine.high %v885, 0
        %v894 = vcombine.high %v892, 0
        %v895 = vcombine.low %v757, %v821
        %v897 = vunpack.c.l.s4 1983009808
        %v898 = vunpack.c.0.s8 %v897
        %v899 = vlaneseq
        %v900 = vshrl.u32 %v899, 7
        %v901 = vsub.s32 %v898, %v900
        %v902 = vrot.slane %v895, %v901
        %v903 = vcombine.low %v789, %v853
        %v905 = vunpack.c.l.s4 1983009808
        %v906 = vunpack.c.0.s8 %v905
        %v907 = vlaneseq
        %v908 = vshrl.u32 %v907, 7
        %v909 = vsub.s32 %v906, %v908
        %v910 = vrot.slane %v903, %v909
        %v911 = vcombine.low %v902, %v910
        %v912 = vcombine.high %v902, %v910
        %v914 = vunpack.c.l.s4 1934713408
        %v915 = vunpack.c.0.s8 %v914
        %v916 = vlaneseq
        %v917 = vshrl.u32 %v916, 7
        %v918 = vsub.s32 %v915, %v917
        %v919 = vrot.slane %v911, %v918
        %v921 = vunpack.c.l.s4 1934713408
        %v922 = vunpack.c.0.s8 %v921
        %v923 = vlaneseq
        %v924 = vshrl.u32 %v923, 7
        %v925 = vsub.s32 %v922, %v924
        %v926 = vrot.slane %v912, %v925
        %v927 = vcombine.high %v919, 0
        %v928 = vcombine.high %v926, 0
        %v931 = vpack.i.b16 %v919, %v885
        %v933 = vshrl.u32 %v885, 16
        %v934 = vshrl.u32 %v919, 16
        %v935 = vpack.i.b16 %v934, %v933
        %v939 = vpack.i.b16 %v927, %v893
        %v941 = vshrl.u32 %v893, 16
        %v942 = vshrl.u32 %v927, 16
        %v943 = vpack.i.b16 %v942, %v941
        %v947 = vpack.i.b16 %v926, %v892
        %v949 = vshrl.u32 %v892, 16
        %v950 = vshrl.u32 %v926, 16
        %v951 = vpack.i.b16 %v950, %v949
        %v955 = vpack.i.b16 %v928, %v894
        %v957 = vshrl.u32 %v894, 16
        %v958 = vshrl.u32 %v928, 16
        %v959 = vpack.i.b16 %v958, %v957
        %961 = vxpose.xlu0.c.b16.start [1/8] %v931, 128
        %962 = vxpose.xlu0.c.b16.cont [2/8] 0, 128
        %963 = vxpose.xlu0.c.b16.cont [3/8] 0, 128
        %964 = vxpose.xlu0.c.b16.cont [4/8] 0, 128
        %965 = vxpose.xlu0.c.b16.cont [5/8] 0, 128
        %966 = vxpose.xlu0.c.b16.cont [6/8] 0, 128
        %967 = vxpose.xlu0.c.b16.cont [7/8] 0, 128
        %968 = vxpose.xlu0.c.b16.end [8/8] 0, 128
        %v969 = vpop.trf.xlu0
        %v970 = vpop.trf.xlu0
        %v971 = vpop.trf.xlu0
        %v972 = vpop.trf.xlu0
        %v973 = vpop.trf.xlu0
        %v974 = vpop.trf.xlu0
        %v975 = vpop.trf.xlu0
        %v976 = vpop.trf.xlu0
        %977 = vxpose.xlu0.c.b16.start [1/8] %v935, 128
        %978 = vxpose.xlu0.c.b16.cont [2/8] 0, 128
        %979 = vxpose.xlu0.c.b16.cont [3/8] 0, 128
        %980 = vxpose.xlu0.c.b16.cont [4/8] 0, 128
        %981 = vxpose.xlu0.c.b16.cont [5/8] 0, 128
        %982 = vxpose.xlu0.c.b16.cont [6/8] 0, 128
        %983 = vxpose.xlu0.c.b16.cont [7/8] 0, 128
        %984 = vxpose.xlu0.c.b16.end [8/8] 0, 128
        %v985 = vpop.trf.xlu0
        %v986 = vpop.trf.xlu0
        %v987 = vpop.trf.xlu0
        %v988 = vpop.trf.xlu0
        %v989 = vpop.trf.xlu0
        %v990 = vpop.trf.xlu0
        %v991 = vpop.trf.xlu0
        %v992 = vpop.trf.xlu0
        %993 = vxpose.xlu0.c.b16.start [1/8] %v939, 128
        %994 = vxpose.xlu0.c.b16.cont [2/8] 0, 128
        %995 = vxpose.xlu0.c.b16.cont [3/8] 0, 128
        %996 = vxpose.xlu0.c.b16.cont [4/8] 0, 128
        %997 = vxpose.xlu0.c.b16.cont [5/8] 0, 128
        %998 = vxpose.xlu0.c.b16.cont [6/8] 0, 128
        %999 = vxpose.xlu0.c.b16.cont [7/8] 0, 128
        %1000 = vxpose.xlu0.c.b16.end [8/8] 0, 128
        %v1001 = vpop.trf.xlu0
        %v1002 = vpop.trf.xlu0
        %v1003 = vpop.trf.xlu0
        %v1004 = vpop.trf.xlu0
        %v1005 = vpop.trf.xlu0
        %v1006 = vpop.trf.xlu0
        %v1007 = vpop.trf.xlu0
        %v1008 = vpop.trf.xlu0
        %1009 = vxpose.xlu0.c.b16.start [1/8] %v943, 128
        %1010 = vxpose.xlu0.c.b16.cont [2/8] 0, 128
        %1011 = vxpose.xlu0.c.b16.cont [3/8] 0, 128
        %1012 = vxpose.xlu0.c.b16.cont [4/8] 0, 128
        %1013 = vxpose.xlu0.c.b16.cont [5/8] 0, 128
        %1014 = vxpose.xlu0.c.b16.cont [6/8] 0, 128
        %1015 = vxpose.xlu0.c.b16.cont [7/8] 0, 128
        %1016 = vxpose.xlu0.c.b16.end [8/8] 0, 128
        %v1017 = vpop.trf.xlu0
        %v1018 = vpop.trf.xlu0
        %v1019 = vpop.trf.xlu0
        %v1020 = vpop.trf.xlu0
        %v1021 = vpop.trf.xlu0
        %v1022 = vpop.trf.xlu0
        %v1023 = vpop.trf.xlu0
        %v1024 = vpop.trf.xlu0
        %1025 = vxpose.xlu0.c.b16.start [1/8] %v947, 128
        %1026 = vxpose.xlu0.c.b16.cont [2/8] 0, 128
        %1027 = vxpose.xlu0.c.b16.cont [3/8] 0, 128
        %1028 = vxpose.xlu0.c.b16.cont [4/8] 0, 128
        %1029 = vxpose.xlu0.c.b16.cont [5/8] 0, 128
        %1030 = vxpose.xlu0.c.b16.cont [6/8] 0, 128
        %1031 = vxpose.xlu0.c.b16.cont [7/8] 0, 128
        %1032 = vxpose.xlu0.c.b16.end [8/8] 0, 128
        %v1033 = vpop.trf.xlu0
        %v1034 = vpop.trf.xlu0
        %v1035 = vpop.trf.xlu0
        %v1036 = vpop.trf.xlu0
        %v1037 = vpop.trf.xlu0
        %v1038 = vpop.trf.xlu0
        %v1039 = vpop.trf.xlu0
        %v1040 = vpop.trf.xlu0
        %1041 = vxpose.xlu0.c.b16.start [1/8] %v951, 128
        %1042 = vxpose.xlu0.c.b16.cont [2/8] 0, 128
        %1043 = vxpose.xlu0.c.b16.cont [3/8] 0, 128
        %1044 = vxpose.xlu0.c.b16.cont [4/8] 0, 128
        %1045 = vxpose.xlu0.c.b16.cont [5/8] 0, 128
        %1046 = vxpose.xlu0.c.b16.cont [6/8] 0, 128
        %1047 = vxpose.xlu0.c.b16.cont [7/8] 0, 128
        %1048 = vxpose.xlu0.c.b16.end [8/8] 0, 128
        %v1049 = vpop.trf.xlu0
        %v1050 = vpop.trf.xlu0
        %v1051 = vpop.trf.xlu0
        %v1052 = vpop.trf.xlu0
        %v1053 = vpop.trf.xlu0
        %v1054 = vpop.trf.xlu0
        %v1055 = vpop.trf.xlu0
        %v1056 = vpop.trf.xlu0
        %1057 = vxpose.xlu0.c.b16.start [1/8] %v955, 128
        %1058 = vxpose.xlu0.c.b16.cont [2/8] 0, 128
        %1059 = vxpose.xlu0.c.b16.cont [3/8] 0, 128
        %1060 = vxpose.xlu0.c.b16.cont [4/8] 0, 128
        %1061 = vxpose.xlu0.c.b16.cont [5/8] 0, 128
        %1062 = vxpose.xlu0.c.b16.cont [6/8] 0, 128
        %1063 = vxpose.xlu0.c.b16.cont [7/8] 0, 128
        %1064 = vxpose.xlu0.c.b16.end [8/8] 0, 128
        %v1065 = vpop.trf.xlu0
        %v1066 = vpop.trf.xlu0
        %v1067 = vpop.trf.xlu0
        %v1068 = vpop.trf.xlu0
        %v1069 = vpop.trf.xlu0
        %v1070 = vpop.trf.xlu0
        %v1071 = vpop.trf.xlu0
        %v1072 = vpop.trf.xlu0
        %1073 = vxpose.xlu0.c.b16.start [1/8] %v959, 128
        %1074 = vxpose.xlu0.c.b16.cont [2/8] 0, 128
        %1075 = vxpose.xlu0.c.b16.cont [3/8] 0, 128
        %1076 = vxpose.xlu0.c.b16.cont [4/8] 0, 128
        %1077 = vxpose.xlu0.c.b16.cont [5/8] 0, 128
        %1078 = vxpose.xlu0.c.b16.cont [6/8] 0, 128
        %1079 = vxpose.xlu0.c.b16.cont [7/8] 0, 128
        %1080 = vxpose.xlu0.c.b16.end [8/8] 0, 128
        %v1081 = vpop.trf.xlu0
        %v1082 = vpop.trf.xlu0
        %v1083 = vpop.trf.xlu0
        %v1084 = vpop.trf.xlu0
        %v1085 = vpop.trf.xlu0
        %v1086 = vpop.trf.xlu0
        %v1087 = vpop.trf.xlu0
        %v1088 = vpop.trf.xlu0
        %v1089 = vcombine.low %v969, %v1033
        %v1091 = vunpack.c.l.s4 1983009808
        %v1092 = vunpack.c.0.s8 %v1091
        %v1093 = vlaneseq
        %v1094 = vshrl.u32 %v1093, 7
        %v1095 = vsub.s32 %v1092, %v1094
        %v1096 = vrot.slane %v1089, %v1095
        %v1097 = vcombine.low %v1001, %v1065
        %v1099 = vunpack.c.l.s4 1983009808
        %v1100 = vunpack.c.0.s8 %v1099
        %v1101 = vlaneseq
        %v1102 = vshrl.u32 %v1101, 7
        %v1103 = vsub.s32 %v1100, %v1102
        %v1104 = vrot.slane %v1097, %v1103
        %v1105 = vcombine.low %v1096, %v1104
        %v1107 = vunpack.c.l.s4 1934713408
        %v1108 = vunpack.c.0.s8 %v1107
        %v1109 = vlaneseq
        %v1110 = vshrl.u32 %v1109, 7
        %v1111 = vsub.s32 %v1108, %v1110
        %v1112 = vrot.slane %v1105, %v1111
        %v1113 = vcombine.high %v1112, 0
        %v1114 = vcombine.low %v985, %v1049
        %v1116 = vunpack.c.l.s4 1983009808
        %v1117 = vunpack.c.0.s8 %v1116
        %v1118 = vlaneseq
        %v1119 = vshrl.u32 %v1118, 7
        %v1120 = vsub.s32 %v1117, %v1119
        %v1121 = vrot.slane %v1114, %v1120
        %v1122 = vcombine.low %v1017, %v1081
        %v1124 = vunpack.c.l.s4 1983009808
        %v1125 = vunpack.c.0.s8 %v1124
        %v1126 = vlaneseq
        %v1127 = vshrl.u32 %v1126, 7
        %v1128 = vsub.s32 %v1125, %v1127
        %v1129 = vrot.slane %v1122, %v1128
        %v1130 = vcombine.low %v1121, %v1129
        %v1132 = vunpack.c.l.s4 1934713408
        %v1133 = vunpack.c.0.s8 %v1132
        %v1134 = vlaneseq
        %v1135 = vshrl.u32 %v1134, 7
        %v1136 = vsub.s32 %v1133, %v1135
        %v1137 = vrot.slane %v1130, %v1136
        %v1138 = vcombine.high %v1137, 0
        %v1141 = vpack.i.b16 %v1137, %v1112
        %v1142 = vshrl.u32 %v1112, 16
        %v1143 = vshrl.u32 %v1137, 16
        %v1144 = vpack.i.b16 %v1143, %v1142
        %v1147 = vpack.i.b16 %v1138, %v1113
        %v1148 = vshrl.u32 %v1113, 16
        %v1149 = vshrl.u32 %v1138, 16
        %v1150 = vpack.i.b16 %v1149, %v1148
        %vm1151 = vcmask 64512
        %v1153 = vsel %vm1151, %v723, 0
        %vm1155 = vcmask 1043456
        %v1157 = vsel %vm1155, %v1141, 0
        %1159 = vmatprep.subr.bf16.mxu0 0
        %1160 = vmatpush1.bf16.msra.mxu0 %v1157
        %1161 = vmatprep.subr.bf16.mxu0 0
        %1162 = vmatpush1.bf16.msra.mxu0 0
        %1163 = vmatprep.subr.bf16.mxu0 0
        %1164 = vmatpush1.bf16.msra.mxu0 0
        %1165 = vmatprep.subr.bf16.mxu0 0
        %1166 = vmatpush1.bf16.msra.mxu0 0
        %1167 = vmatprep.subr.bf16.mxu0 0
        %1168 = vmatpush1.bf16.msra.mxu0 0
        %1169 = vmatprep.subr.bf16.mxu0 0
        %1170 = vmatpush1.bf16.msra.mxu0 0
        %1171 = vmatprep.subr.bf16.mxu0 0
        %1172 = vmatpush1.bf16.msra.mxu0 0
        %1173 = vmatprep.subr.bf16.mxu0 0
        %1174 = vmatpush1.bf16.msra.mxu0 0
        %1175 = vmatprep.subr.bf16.mxu0 0
        %1176 = vmatpush1.bf16.msra.mxu0 0
        %1177 = vmatprep.subr.bf16.mxu0 0
        %1178 = vmatpush1.bf16.msra.mxu0 0
        %1179 = vmatprep.subr.bf16.mxu0 0
        %1180 = vmatpush1.bf16.msra.mxu0 0
        %1181 = vmatprep.subr.bf16.mxu0 0
        %1182 = vmatpush1.bf16.msra.mxu0 0
        %1183 = vmatprep.subr.bf16.mxu0 0
        %1184 = vmatpush1.bf16.msra.mxu0 0
        %1185 = vmatprep.subr.bf16.mxu0 0
        %1186 = vmatpush1.bf16.msra.mxu0 0
        %1187 = vmatprep.subr.bf16.mxu0 0
        %1188 = vmatpush1.bf16.msra.mxu0 0
        %1189 = vmatprep.subr.bf16.mxu0 0
        %1190 = vmatpush1.bf16.msra.mxu0 0
        %1191 = vmatprep.mubr.bf16.mxu0 0
        %1192 = vmatmul.mubr.bf16.gmra.mrb[0].mxu0 %v1153
        %v1193 = vpop.f32.mrb[0].mxu0
        %v1194 = vadd.f32 0.0, %v1193
        %v1195 = vpop.f32.mrb[0].mxu0
        %v1196 = vpop.f32.mrb[0].mxu0
        %v1197 = vpop.f32.mrb[0].mxu0
        %1198 = vdwg.mxu0
        %v1200 = vsel %vm1151, %v726, 0
        %v1203 = vsel %vm1155, %v1144, 0
        %1205 = vmatprep.subr.bf16.mxu0 0
        %1206 = vmatpush1.bf16.msra.mxu0 %v1203
        %1207 = vmatprep.subr.bf16.mxu0 0
        %1208 = vmatpush1.bf16.msra.mxu0 0
        %1209 = vmatprep.subr.bf16.mxu0 0
        %1210 = vmatpush1.bf16.msra.mxu0 0
        %1211 = vmatprep.subr.bf16.mxu0 0
        %1212 = vmatpush1.bf16.msra.mxu0 0
        %1213 = vmatprep.subr.bf16.mxu0 0
        %1214 = vmatpush1.bf16.msra.mxu0 0
        %1215 = vmatprep.subr.bf16.mxu0 0
        %1216 = vmatpush1.bf16.msra.mxu0 0
        %1217 = vmatprep.subr.bf16.mxu0 0
        %1218 = vmatpush1.bf16.msra.mxu0 0
        %1219 = vmatprep.subr.bf16.mxu0 0
        %1220 = vmatpush1.bf16.msra.mxu0 0
        %1221 = vmatprep.subr.bf16.mxu0 0
        %1222 = vmatpush1.bf16.msra.mxu0 0
        %1223 = vmatprep.subr.bf16.mxu0 0
        %1224 = vmatpush1.bf16.msra.mxu0 0
        %1225 = vmatprep.subr.bf16.mxu0 0
        %1226 = vmatpush1.bf16.msra.mxu0 0
        %1227 = vmatprep.subr.bf16.mxu0 0
        %1228 = vmatpush1.bf16.msra.mxu0 0
        %1229 = vmatprep.subr.bf16.mxu0 0
        %1230 = vmatpush1.bf16.msra.mxu0 0
        %1231 = vmatprep.subr.bf16.mxu0 0
        %1232 = vmatpush1.bf16.msra.mxu0 0
        %1233 = vmatprep.subr.bf16.mxu0 0
        %1234 = vmatpush1.bf16.msra.mxu0 0
        %1235 = vmatprep.subr.bf16.mxu0 0
        %1236 = vmatpush1.bf16.msra.mxu0 0
        %1237 = vmatprep.mubr.bf16.mxu0 0
        %1238 = vmatmul.mubr.bf16.gmra.mrb[0].mxu0 %v1200
        %v1239 = vpop.f32.mrb[0].mxu0
        %v1240 = vadd.f32 0.0, %v1239
        %v1241 = vpop.f32.mrb[0].mxu0
        %v1242 = vpop.f32.mrb[0].mxu0
        %v1243 = vpop.f32.mrb[0].mxu0
        %1244 = vdwg.mxu0
        %v1246 = vsel %vm1151, %v729, 0
        %v1249 = vsel %vm1155, %v1147, 0
        %1251 = vmatprep.subr.bf16.mxu0 0
        %1252 = vmatpush1.bf16.msra.mxu0 %v1249
        %1253 = vmatprep.subr.bf16.mxu0 0
        %1254 = vmatpush1.bf16.msra.mxu0 0
        %1255 = vmatprep.subr.bf16.mxu0 0
        %1256 = vmatpush1.bf16.msra.mxu0 0
        %1257 = vmatprep.subr.bf16.mxu0 0
        %1258 = vmatpush1.bf16.msra.mxu0 0
        %1259 = vmatprep.subr.bf16.mxu0 0
        %1260 = vmatpush1.bf16.msra.mxu0 0
        %1261 = vmatprep.subr.bf16.mxu0 0
        %1262 = vmatpush1.bf16.msra.mxu0 0
        %1263 = vmatprep.subr.bf16.mxu0 0
        %1264 = vmatpush1.bf16.msra.mxu0 0
        %1265 = vmatprep.subr.bf16.mxu0 0
        %1266 = vmatpush1.bf16.msra.mxu0 0
        %1267 = vmatprep.subr.bf16.mxu0 0
        %1268 = vmatpush1.bf16.msra.mxu0 0
        %1269 = vmatprep.subr.bf16.mxu0 0
        %1270 = vmatpush1.bf16.msra.mxu0 0
        %1271 = vmatprep.subr.bf16.mxu0 0
        %1272 = vmatpush1.bf16.msra.mxu0 0
        %1273 = vmatprep.subr.bf16.mxu0 0
        %1274 = vmatpush1.bf16.msra.mxu0 0
        %1275 = vmatprep.subr.bf16.mxu0 0
        %1276 = vmatpush1.bf16.msra.mxu0 0
        %1277 = vmatprep.subr.bf16.mxu0 0
        %1278 = vmatpush1.bf16.msra.mxu0 0
        %1279 = vmatprep.subr.bf16.mxu0 0
        %1280 = vmatpush1.bf16.msra.mxu0 0
        %1281 = vmatprep.subr.bf16.mxu0 0
        %1282 = vmatpush1.bf16.msra.mxu0 0
        %1283 = vmatprep.mubr.bf16.mxu0 0
        %1284 = vmatmul.mubr.bf16.gmra.mrb[0].mxu0 %v1246
        %v1285 = vpop.f32.mrb[0].mxu0
        %v1286 = vadd.f32 0.0, %v1285
        %v1287 = vpop.f32.mrb[0].mxu0
        %v1288 = vpop.f32.mrb[0].mxu0
        %v1289 = vpop.f32.mrb[0].mxu0
        %1290 = vdwg.mxu0
        %v1292 = vsel %vm1151, %v732, 0
        %v1295 = vsel %vm1155, %v1150, 0
        %1297 = vmatprep.subr.bf16.mxu0 0
        %1298 = vmatpush1.bf16.msra.mxu0 %v1295
        %1299 = vmatprep.subr.bf16.mxu0 0
        %1300 = vmatpush1.bf16.msra.mxu0 0
        %1301 = vmatprep.subr.bf16.mxu0 0
        %1302 = vmatpush1.bf16.msra.mxu0 0
        %1303 = vmatprep.subr.bf16.mxu0 0
        %1304 = vmatpush1.bf16.msra.mxu0 0
        %1305 = vmatprep.subr.bf16.mxu0 0
        %1306 = vmatpush1.bf16.msra.mxu0 0
        %1307 = vmatprep.subr.bf16.mxu0 0
        %1308 = vmatpush1.bf16.msra.mxu0 0
        %1309 = vmatprep.subr.bf16.mxu0 0
        %1310 = vmatpush1.bf16.msra.mxu0 0
        %1311 = vmatprep.subr.bf16.mxu0 0
        %1312 = vmatpush1.bf16.msra.mxu0 0
        %1313 = vmatprep.subr.bf16.mxu0 0
        %1314 = vmatpush1.bf16.msra.mxu0 0
        %1315 = vmatprep.subr.bf16.mxu0 0
        %1316 = vmatpush1.bf16.msra.mxu0 0
        %1317 = vmatprep.subr.bf16.mxu0 0
        %1318 = vmatpush1.bf16.msra.mxu0 0
        %1319 = vmatprep.subr.bf16.mxu0 0
        %1320 = vmatpush1.bf16.msra.mxu0 0
        %1321 = vmatprep.subr.bf16.mxu0 0
        %1322 = vmatpush1.bf16.msra.mxu0 0
        %1323 = vmatprep.subr.bf16.mxu0 0
        %1324 = vmatpush1.bf16.msra.mxu0 0
        %1325 = vmatprep.subr.bf16.mxu0 0
        %1326 = vmatpush1.bf16.msra.mxu0 0
        %1327 = vmatprep.subr.bf16.mxu0 0
        %1328 = vmatpush1.bf16.msra.mxu0 0
        %1329 = vmatprep.mubr.bf16.mxu0 0
        %1330 = vmatmul.mubr.bf16.gmra.mrb[0].mxu0 %v1292
        %v1331 = vpop.f32.mrb[0].mxu0
        %v1332 = vadd.f32 0.0, %v1331
        %v1333 = vpop.f32.mrb[0].mxu0
        %v1334 = vpop.f32.mrb[0].mxu0
        %v1335 = vpop.f32.mrb[0].mxu0
        %1336 = vdwg.mxu0
        %v1337 = vsel %vm1151, %v1194, -inf
        %1338 = vmax.xlane.f32.xlu0 %v1337
        %v1339 = vpop.xlane.xlu0 %1338
        %v1340 = vsel %vm1151, %v1240, -inf
        %1341 = vmax.xlane.f32.xlu0 %v1340
        %v1342 = vpop.xlane.xlu0 %1341
        %v1343 = vsel %vm1151, %v1286, -inf
        %1344 = vmax.xlane.f32.xlu0 %v1343
        %v1345 = vpop.xlane.xlu0 %1344
        %v1346 = vsel %vm1151, %v1332, -inf
        %1347 = vmax.xlane.f32.xlu0 %v1346
        %v1348 = vpop.xlane.xlu0 %1347
        %v1349 = vsub.f32 %v1194, %v1339
        %v1350 = vsub.f32 %v1240, %v1342
        %v1351 = vsub.f32 %v1286, %v1345
        %v1352 = vsub.f32 %v1332, %v1348
        %v1353 = vmul.f32 %v1349, 1.442695
        %v1354 = vpow.pop %v1353
        %v1355 = vmul.f32 %v1350, 1.442695
        %v1356 = vpow.pop %v1355
        %v1357 = vmul.f32 %v1351, 1.442695
        %v1358 = vpow.pop %v1357
        %v1359 = vmul.f32 %v1352, 1.442695
        %v1360 = vpow.pop %v1359
        %v1361 = vsel %vm1151, %v1354, 0.0
        %1362 = vadd.xlane.f32.xlu0 %v1361
        %v1363 = vpop.xlane.xlu0 %1362
        %v1364 = vsel %vm1151, %v1356, 0.0
        %1365 = vadd.xlane.f32.xlu0 %v1364
        %v1366 = vpop.xlane.xlu0 %1365
        %v1367 = vsel %vm1151, %v1358, 0.0
        %1368 = vadd.xlane.f32.xlu0 %v1367
        %v1369 = vpop.xlane.xlu0 %1368
        %v1370 = vsel %vm1151, %v1360, 0.0
        %1371 = vadd.xlane.f32.xlu0 %v1370
        %v1372 = vpop.xlane.xlu0 %1371
        %v1373 = vrcp.pop %v1363
        %v1374 = vrcp.pop %v1366
        %v1375 = vrcp.pop %v1369
        %v1376 = vrcp.pop %v1372
        %v1377 = vmul.f32 %v1354, %v1373
        %v1378 = vmul.f32 %v1356, %v1374
        %v1379 = vmul.f32 %v1358, %v1375
        %v1380 = vmul.f32 %v1360, %v1376
        %v1381 = vpack.c.bf16 %v1377, %v1377
        %v1382 = vpack.c.bf16 %v1378, %v1378
        %v1383 = vpack.c.bf16 %v1379, %v1379
        %v1384 = vpack.c.bf16 %v1380, %v1380
        %v1385 = vpack.c.bf16 %v627, %v627
        %v1386 = vpack.c.bf16 %v651, %v651
        %v1387 = vpack.c.bf16 %v634, %v634
        %v1388 = vpack.c.bf16 %v652, %v652
        %v1389 = vpack.c.bf16 %v643, %v643
        %v1390 = vpack.c.bf16 %v653, %v653
        %v1391 = vpack.c.bf16 %v650, %v650
        %v1392 = vpack.c.bf16 %v654, %v654
        %1393 = vxpose.xlu0.c.b16.start [1/8] %v1385, 128
        %1394 = vxpose.xlu0.c.b16.cont [2/8] 0, 128
        %1395 = vxpose.xlu0.c.b16.cont [3/8] 0, 128
        %1396 = vxpose.xlu0.c.b16.cont [4/8] 0, 128
        %1397 = vxpose.xlu0.c.b16.cont [5/8] 0, 128
        %1398 = vxpose.xlu0.c.b16.cont [6/8] 0, 128
        %1399 = vxpose.xlu0.c.b16.cont [7/8] 0, 128
        %1400 = vxpose.xlu0.c.b16.end [8/8] 0, 128
        %v1401 = vpop.trf.xlu0
        %v1402 = vpop.trf.xlu0
        %v1403 = vpop.trf.xlu0
        %v1404 = vpop.trf.xlu0
        %v1405 = vpop.trf.xlu0
        %v1406 = vpop.trf.xlu0
        %v1407 = vpop.trf.xlu0
        %v1408 = vpop.trf.xlu0
        %1409 = vxpose.xlu0.c.b16.start [1/8] %v1386, 128
        %1410 = vxpose.xlu0.c.b16.cont [2/8] 0, 128
        %1411 = vxpose.xlu0.c.b16.cont [3/8] 0, 128
        %1412 = vxpose.xlu0.c.b16.cont [4/8] 0, 128
        %1413 = vxpose.xlu0.c.b16.cont [5/8] 0, 128
        %1414 = vxpose.xlu0.c.b16.cont [6/8] 0, 128
        %1415 = vxpose.xlu0.c.b16.cont [7/8] 0, 128
        %1416 = vxpose.xlu0.c.b16.end [8/8] 0, 128
        %v1417 = vpop.trf.xlu0
        %v1418 = vpop.trf.xlu0
        %v1419 = vpop.trf.xlu0
        %v1420 = vpop.trf.xlu0
        %v1421 = vpop.trf.xlu0
        %v1422 = vpop.trf.xlu0
        %v1423 = vpop.trf.xlu0
        %v1424 = vpop.trf.xlu0
        %1425 = vxpose.xlu0.c.b16.start [1/8] %v1387, 128
        %1426 = vxpose.xlu0.c.b16.cont [2/8] 0, 128
        %1427 = vxpose.xlu0.c.b16.cont [3/8] 0, 128
        %1428 = vxpose.xlu0.c.b16.cont [4/8] 0, 128
        %1429 = vxpose.xlu0.c.b16.cont [5/8] 0, 128
        %1430 = vxpose.xlu0.c.b16.cont [6/8] 0, 128
        %1431 = vxpose.xlu0.c.b16.cont [7/8] 0, 128
        %1432 = vxpose.xlu0.c.b16.end [8/8] 0, 128
        %v1433 = vpop.trf.xlu0
        %v1434 = vpop.trf.xlu0
        %v1435 = vpop.trf.xlu0
        %v1436 = vpop.trf.xlu0
        %v1437 = vpop.trf.xlu0
        %v1438 = vpop.trf.xlu0
        %v1439 = vpop.trf.xlu0
        %v1440 = vpop.trf.xlu0
        %1441 = vxpose.xlu0.c.b16.start [1/8] %v1388, 128
        %1442 = vxpose.xlu0.c.b16.cont [2/8] 0, 128
        %1443 = vxpose.xlu0.c.b16.cont [3/8] 0, 128
        %1444 = vxpose.xlu0.c.b16.cont [4/8] 0, 128
        %1445 = vxpose.xlu0.c.b16.cont [5/8] 0, 128
        %1446 = vxpose.xlu0.c.b16.cont [6/8] 0, 128
        %1447 = vxpose.xlu0.c.b16.cont [7/8] 0, 128
        %1448 = vxpose.xlu0.c.b16.end [8/8] 0, 128
        %v1449 = vpop.trf.xlu0
        %v1450 = vpop.trf.xlu0
        %v1451 = vpop.trf.xlu0
        %v1452 = vpop.trf.xlu0
        %v1453 = vpop.trf.xlu0
        %v1454 = vpop.trf.xlu0
        %v1455 = vpop.trf.xlu0
        %v1456 = vpop.trf.xlu0
        %1457 = vxpose.xlu0.c.b16.start [1/8] %v1389, 128
        %1458 = vxpose.xlu0.c.b16.cont [2/8] 0, 128
        %1459 = vxpose.xlu0.c.b16.cont [3/8] 0, 128
        %1460 = vxpose.xlu0.c.b16.cont [4/8] 0, 128
        %1461 = vxpose.xlu0.c.b16.cont [5/8] 0, 128
        %1462 = vxpose.xlu0.c.b16.cont [6/8] 0, 128
        %1463 = vxpose.xlu0.c.b16.cont [7/8] 0, 128
        %1464 = vxpose.xlu0.c.b16.end [8/8] 0, 128
        %v1465 = vpop.trf.xlu0
        %v1466 = vpop.trf.xlu0
        %v1467 = vpop.trf.xlu0
        %v1468 = vpop.trf.xlu0
        %v1469 = vpop.trf.xlu0
        %v1470 = vpop.trf.xlu0
        %v1471 = vpop.trf.xlu0
        %v1472 = vpop.trf.xlu0
        %1473 = vxpose.xlu0.c.b16.start [1/8] %v1390, 128
        %1474 = vxpose.xlu0.c.b16.cont [2/8] 0, 128
        %1475 = vxpose.xlu0.c.b16.cont [3/8] 0, 128
        %1476 = vxpose.xlu0.c.b16.cont [4/8] 0, 128
        %1477 = vxpose.xlu0.c.b16.cont [5/8] 0, 128
        %1478 = vxpose.xlu0.c.b16.cont [6/8] 0, 128
        %1479 = vxpose.xlu0.c.b16.cont [7/8] 0, 128
        %1480 = vxpose.xlu0.c.b16.end [8/8] 0, 128
        %v1481 = vpop.trf.xlu0
        %v1482 = vpop.trf.xlu0
        %v1483 = vpop.trf.xlu0
        %v1484 = vpop.trf.xlu0
        %v1485 = vpop.trf.xlu0
        %v1486 = vpop.trf.xlu0
        %v1487 = vpop.trf.xlu0
        %v1488 = vpop.trf.xlu0
        %1489 = vxpose.xlu0.c.b16.start [1/8] %v1391, 128
        %1490 = vxpose.xlu0.c.b16.cont [2/8] 0, 128
        %1491 = vxpose.xlu0.c.b16.cont [3/8] 0, 128
        %1492 = vxpose.xlu0.c.b16.cont [4/8] 0, 128
        %1493 = vxpose.xlu0.c.b16.cont [5/8] 0, 128
        %1494 = vxpose.xlu0.c.b16.cont [6/8] 0, 128
        %1495 = vxpose.xlu0.c.b16.cont [7/8] 0, 128
        %1496 = vxpose.xlu0.c.b16.end [8/8] 0, 128
        %v1497 = vpop.trf.xlu0
        %v1498 = vpop.trf.xlu0
        %v1499 = vpop.trf.xlu0
        %v1500 = vpop.trf.xlu0
        %v1501 = vpop.trf.xlu0
        %v1502 = vpop.trf.xlu0
        %v1503 = vpop.trf.xlu0
        %v1504 = vpop.trf.xlu0
        %1505 = vxpose.xlu0.c.b16.start [1/8] %v1392, 128
        %1506 = vxpose.xlu0.c.b16.cont [2/8] 0, 128
        %1507 = vxpose.xlu0.c.b16.cont [3/8] 0, 128
        %1508 = vxpose.xlu0.c.b16.cont [4/8] 0, 128
        %1509 = vxpose.xlu0.c.b16.cont [5/8] 0, 128
        %1510 = vxpose.xlu0.c.b16.cont [6/8] 0, 128
        %1511 = vxpose.xlu0.c.b16.cont [7/8] 0, 128
        %1512 = vxpose.xlu0.c.b16.end [8/8] 0, 128
        %v1513 = vpop.trf.xlu0
        %v1514 = vpop.trf.xlu0
        %v1515 = vpop.trf.xlu0
        %v1516 = vpop.trf.xlu0
        %v1517 = vpop.trf.xlu0
        %v1518 = vpop.trf.xlu0
        %v1519 = vpop.trf.xlu0
        %v1520 = vpop.trf.xlu0
        %v1521 = vcombine.low %v1401, %v1465
        %v1523 = vunpack.c.l.s4 1983009808
        %v1524 = vunpack.c.0.s8 %v1523
        %v1525 = vlaneseq
        %v1526 = vshrl.u32 %v1525, 7
        %v1527 = vsub.s32 %v1524, %v1526
        %v1528 = vrot.slane %v1521, %v1527
        %v1529 = vcombine.low %v1433, %v1497
        %v1531 = vunpack.c.l.s4 1983009808
        %v1532 = vunpack.c.0.s8 %v1531
        %v1533 = vlaneseq
        %v1534 = vshrl.u32 %v1533, 7
        %v1535 = vsub.s32 %v1532, %v1534
        %v1536 = vrot.slane %v1529, %v1535
        %v1537 = vcombine.low %v1528, %v1536
        %v1538 = vcombine.high %v1528, %v1536
        %v1540 = vunpack.c.l.s4 1934713408
        %v1541 = vunpack.c.0.s8 %v1540
        %v1542 = vlaneseq
        %v1543 = vshrl.u32 %v1542, 7
        %v1544 = vsub.s32 %v1541, %v1543
        %v1545 = vrot.slane %v1537, %v1544
        %v1547 = vunpack.c.l.s4 1934713408
        %v1548 = vunpack.c.0.s8 %v1547
        %v1549 = vlaneseq
        %v1550 = vshrl.u32 %v1549, 7
        %v1551 = vsub.s32 %v1548, %v1550
        %v1552 = vrot.slane %v1538, %v1551
        %v1553 = vcombine.high %v1545, 0
        %v1554 = vcombine.high %v1552, 0
        %v1555 = vcombine.low %v1417, %v1481
        %v1557 = vunpack.c.l.s4 1983009808
        %v1558 = vunpack.c.0.s8 %v1557
        %v1559 = vlaneseq
        %v1560 = vshrl.u32 %v1559, 7
        %v1561 = vsub.s32 %v1558, %v1560
        %v1562 = vrot.slane %v1555, %v1561
        %v1563 = vcombine.low %v1449, %v1513
        %v1565 = vunpack.c.l.s4 1983009808
        %v1566 = vunpack.c.0.s8 %v1565
        %v1567 = vlaneseq
        %v1568 = vshrl.u32 %v1567, 7
        %v1569 = vsub.s32 %v1566, %v1568
        %v1570 = vrot.slane %v1563, %v1569
        %v1571 = vcombine.low %v1562, %v1570
        %v1572 = vcombine.high %v1562, %v1570
        %v1574 = vunpack.c.l.s4 1934713408
        %v1575 = vunpack.c.0.s8 %v1574
        %v1576 = vlaneseq
        %v1577 = vshrl.u32 %v1576, 7
        %v1578 = vsub.s32 %v1575, %v1577
        %v1579 = vrot.slane %v1571, %v1578
        %v1581 = vunpack.c.l.s4 1934713408
        %v1582 = vunpack.c.0.s8 %v1581
        %v1583 = vlaneseq
        %v1584 = vshrl.u32 %v1583, 7
        %v1585 = vsub.s32 %v1582, %v1584
        %v1586 = vrot.slane %v1572, %v1585
        %v1587 = vcombine.high %v1579, 0
        %v1588 = vcombine.high %v1586, 0
        %v1591 = vpack.i.b16 %v1579, %v1545
        %v1593 = vshrl.u32 %v1545, 16
        %v1594 = vshrl.u32 %v1579, 16
        %v1595 = vpack.i.b16 %v1594, %v1593
        %v1599 = vpack.i.b16 %v1587, %v1553
        %v1601 = vshrl.u32 %v1553, 16
        %v1602 = vshrl.u32 %v1587, 16
        %v1603 = vpack.i.b16 %v1602, %v1601
        %v1607 = vpack.i.b16 %v1586, %v1552
        %v1609 = vshrl.u32 %v1552, 16
        %v1610 = vshrl.u32 %v1586, 16
        %v1611 = vpack.i.b16 %v1610, %v1609
        %v1615 = vpack.i.b16 %v1588, %v1554
        %v1617 = vshrl.u32 %v1554, 16
        %v1618 = vshrl.u32 %v1588, 16
        %v1619 = vpack.i.b16 %v1618, %v1617
        %1621 = vxpose.xlu0.c.b16.start [1/8] %v1591, 128
        %1622 = vxpose.xlu0.c.b16.cont [2/8] 0, 128
        %1623 = vxpose.xlu0.c.b16.cont [3/8] 0, 128
        %1624 = vxpose.xlu0.c.b16.cont [4/8] 0, 128
        %1625 = vxpose.xlu0.c.b16.cont [5/8] 0, 128
        %1626 = vxpose.xlu0.c.b16.cont [6/8] 0, 128
        %1627 = vxpose.xlu0.c.b16.cont [7/8] 0, 128
        %1628 = vxpose.xlu0.c.b16.end [8/8] 0, 128
        %v1629 = vpop.trf.xlu0
        %v1630 = vpop.trf.xlu0
        %v1631 = vpop.trf.xlu0
        %v1632 = vpop.trf.xlu0
        %v1633 = vpop.trf.xlu0
        %v1634 = vpop.trf.xlu0
        %v1635 = vpop.trf.xlu0
        %v1636 = vpop.trf.xlu0
        %1637 = vxpose.xlu0.c.b16.start [1/8] %v1595, 128
        %1638 = vxpose.xlu0.c.b16.cont [2/8] 0, 128
        %1639 = vxpose.xlu0.c.b16.cont [3/8] 0, 128
        %1640 = vxpose.xlu0.c.b16.cont [4/8] 0, 128
        %1641 = vxpose.xlu0.c.b16.cont [5/8] 0, 128
        %1642 = vxpose.xlu0.c.b16.cont [6/8] 0, 128
        %1643 = vxpose.xlu0.c.b16.cont [7/8] 0, 128
        %1644 = vxpose.xlu0.c.b16.end [8/8] 0, 128
        %v1645 = vpop.trf.xlu0
        %v1646 = vpop.trf.xlu0
        %v1647 = vpop.trf.xlu0
        %v1648 = vpop.trf.xlu0
        %v1649 = vpop.trf.xlu0
        %v1650 = vpop.trf.xlu0
        %v1651 = vpop.trf.xlu0
        %v1652 = vpop.trf.xlu0
        %1653 = vxpose.xlu0.c.b16.start [1/8] %v1599, 128
        %1654 = vxpose.xlu0.c.b16.cont [2/8] 0, 128
        %1655 = vxpose.xlu0.c.b16.cont [3/8] 0, 128
        %1656 = vxpose.xlu0.c.b16.cont [4/8] 0, 128
        %1657 = vxpose.xlu0.c.b16.cont [5/8] 0, 128
        %1658 = vxpose.xlu0.c.b16.cont [6/8] 0, 128
        %1659 = vxpose.xlu0.c.b16.cont [7/8] 0, 128
        %1660 = vxpose.xlu0.c.b16.end [8/8] 0, 128
        %v1661 = vpop.trf.xlu0
        %v1662 = vpop.trf.xlu0
        %v1663 = vpop.trf.xlu0
        %v1664 = vpop.trf.xlu0
        %v1665 = vpop.trf.xlu0
        %v1666 = vpop.trf.xlu0
        %v1667 = vpop.trf.xlu0
        %v1668 = vpop.trf.xlu0
        %1669 = vxpose.xlu0.c.b16.start [1/8] %v1603, 128
        %1670 = vxpose.xlu0.c.b16.cont [2/8] 0, 128
        %1671 = vxpose.xlu0.c.b16.cont [3/8] 0, 128
        %1672 = vxpose.xlu0.c.b16.cont [4/8] 0, 128
        %1673 = vxpose.xlu0.c.b16.cont [5/8] 0, 128
        %1674 = vxpose.xlu0.c.b16.cont [6/8] 0, 128
        %1675 = vxpose.xlu0.c.b16.cont [7/8] 0, 128
        %1676 = vxpose.xlu0.c.b16.end [8/8] 0, 128
        %v1677 = vpop.trf.xlu0
        %v1678 = vpop.trf.xlu0
        %v1679 = vpop.trf.xlu0
        %v1680 = vpop.trf.xlu0
        %v1681 = vpop.trf.xlu0
        %v1682 = vpop.trf.xlu0
        %v1683 = vpop.trf.xlu0
        %v1684 = vpop.trf.xlu0
        %1685 = vxpose.xlu0.c.b16.start [1/8] %v1607, 128
        %1686 = vxpose.xlu0.c.b16.cont [2/8] 0, 128
        %1687 = vxpose.xlu0.c.b16.cont [3/8] 0, 128
        %1688 = vxpose.xlu0.c.b16.cont [4/8] 0, 128
        %1689 = vxpose.xlu0.c.b16.cont [5/8] 0, 128
        %1690 = vxpose.xlu0.c.b16.cont [6/8] 0, 128
        %1691 = vxpose.xlu0.c.b16.cont [7/8] 0, 128
        %1692 = vxpose.xlu0.c.b16.end [8/8] 0, 128
        %v1693 = vpop.trf.xlu0
        %v1694 = vpop.trf.xlu0
        %v1695 = vpop.trf.xlu0
        %v1696 = vpop.trf.xlu0
        %v1697 = vpop.trf.xlu0
        %v1698 = vpop.trf.xlu0
        %v1699 = vpop.trf.xlu0
        %v1700 = vpop.trf.xlu0
        %1701 = vxpose.xlu0.c.b16.start [1/8] %v1611, 128
        %1702 = vxpose.xlu0.c.b16.cont [2/8] 0, 128
        %1703 = vxpose.xlu0.c.b16.cont [3/8] 0, 128
        %1704 = vxpose.xlu0.c.b16.cont [4/8] 0, 128
        %1705 = vxpose.xlu0.c.b16.cont [5/8] 0, 128
        %1706 = vxpose.xlu0.c.b16.cont [6/8] 0, 128
        %1707 = vxpose.xlu0.c.b16.cont [7/8] 0, 128
        %1708 = vxpose.xlu0.c.b16.end [8/8] 0, 128
        %v1709 = vpop.trf.xlu0
        %v1710 = vpop.trf.xlu0
        %v1711 = vpop.trf.xlu0
        %v1712 = vpop.trf.xlu0
        %v1713 = vpop.trf.xlu0
        %v1714 = vpop.trf.xlu0
        %v1715 = vpop.trf.xlu0
        %v1716 = vpop.trf.xlu0
        %1717 = vxpose.xlu0.c.b16.start [1/8] %v1615, 128
        %1718 = vxpose.xlu0.c.b16.cont [2/8] 0, 128
        %1719 = vxpose.xlu0.c.b16.cont [3/8] 0, 128
        %1720 = vxpose.xlu0.c.b16.cont [4/8] 0, 128
        %1721 = vxpose.xlu0.c.b16.cont [5/8] 0, 128
        %1722 = vxpose.xlu0.c.b16.cont [6/8] 0, 128
        %1723 = vxpose.xlu0.c.b16.cont [7/8] 0, 128
        %1724 = vxpose.xlu0.c.b16.end [8/8] 0, 128
        %v1725 = vpop.trf.xlu0
        %v1726 = vpop.trf.xlu0
        %v1727 = vpop.trf.xlu0
        %v1728 = vpop.trf.xlu0
        %v1729 = vpop.trf.xlu0
        %v1730 = vpop.trf.xlu0
        %v1731 = vpop.trf.xlu0
        %v1732 = vpop.trf.xlu0
        %1733 = vxpose.xlu0.c.b16.start [1/8] %v1619, 128
        %1734 = vxpose.xlu0.c.b16.cont [2/8] 0, 128
        %1735 = vxpose.xlu0.c.b16.cont [3/8] 0, 128
        %1736 = vxpose.xlu0.c.b16.cont [4/8] 0, 128
        %1737 = vxpose.xlu0.c.b16.cont [5/8] 0, 128
        %1738 = vxpose.xlu0.c.b16.cont [6/8] 0, 128
        %1739 = vxpose.xlu0.c.b16.cont [7/8] 0, 128
        %1740 = vxpose.xlu0.c.b16.end [8/8] 0, 128
        %v1741 = vpop.trf.xlu0
        %v1742 = vpop.trf.xlu0
        %v1743 = vpop.trf.xlu0
        %v1744 = vpop.trf.xlu0
        %v1745 = vpop.trf.xlu0
        %v1746 = vpop.trf.xlu0
        %v1747 = vpop.trf.xlu0
        %v1748 = vpop.trf.xlu0
        %v1749 = vcombine.low %v1629, %v1693
        %v1751 = vunpack.c.l.s4 1983009808
        %v1752 = vunpack.c.0.s8 %v1751
        %v1753 = vlaneseq
        %v1754 = vshrl.u32 %v1753, 7
        %v1755 = vsub.s32 %v1752, %v1754
        %v1756 = vrot.slane %v1749, %v1755
        %v1757 = vcombine.low %v1661, %v1725
        %v1759 = vunpack.c.l.s4 1983009808
        %v1760 = vunpack.c.0.s8 %v1759
        %v1761 = vlaneseq
        %v1762 = vshrl.u32 %v1761, 7
        %v1763 = vsub.s32 %v1760, %v1762
        %v1764 = vrot.slane %v1757, %v1763
        %v1765 = vcombine.low %v1756, %v1764
        %v1767 = vunpack.c.l.s4 1934713408
        %v1768 = vunpack.c.0.s8 %v1767
        %v1769 = vlaneseq
        %v1770 = vshrl.u32 %v1769, 7
        %v1771 = vsub.s32 %v1768, %v1770
        %v1772 = vrot.slane %v1765, %v1771
        %v1773 = vcombine.high %v1772, 0
        %v1774 = vcombine.low %v1645, %v1709
        %v1776 = vunpack.c.l.s4 1983009808
        %v1777 = vunpack.c.0.s8 %v1776
        %v1778 = vlaneseq
        %v1779 = vshrl.u32 %v1778, 7
        %v1780 = vsub.s32 %v1777, %v1779
        %v1781 = vrot.slane %v1774, %v1780
        %v1782 = vcombine.low %v1677, %v1741
        %v1784 = vunpack.c.l.s4 1983009808
        %v1785 = vunpack.c.0.s8 %v1784
        %v1786 = vlaneseq
        %v1787 = vshrl.u32 %v1786, 7
        %v1788 = vsub.s32 %v1785, %v1787
        %v1789 = vrot.slane %v1782, %v1788
        %v1790 = vcombine.low %v1781, %v1789
        %v1792 = vunpack.c.l.s4 1934713408
        %v1793 = vunpack.c.0.s8 %v1792
        %v1794 = vlaneseq
        %v1795 = vshrl.u32 %v1794, 7
        %v1796 = vsub.s32 %v1793, %v1795
        %v1797 = vrot.slane %v1790, %v1796
        %v1798 = vcombine.high %v1797, 0
        %v1801 = vpack.i.b16 %v1797, %v1772
        %v1802 = vshrl.u32 %v1772, 16
        %v1803 = vshrl.u32 %v1797, 16
        %v1804 = vpack.i.b16 %v1803, %v1802
        %v1807 = vpack.i.b16 %v1798, %v1773
        %v1808 = vshrl.u32 %v1773, 16
        %v1809 = vshrl.u32 %v1798, 16
        %v1810 = vpack.i.b16 %v1809, %v1808
        %v1812 = vsel %vm1151, %v1801, 0
        %v1815 = vsel %vm1151, %v1381, 0
        %1817 = vmatprep.subr.bf16.mxu0 0
        %1818 = vmatpush1.bf16.xpose.msra.mxu0 %v1815
        %1819 = vmatprep.subr.bf16.mxu0 0
        %1820 = vmatpush1.bf16.xpose.msra.mxu0 0
        %1821 = vmatprep.subr.bf16.mxu0 0
        %1822 = vmatpush1.bf16.xpose.msra.mxu0 0
        %1823 = vmatprep.subr.bf16.mxu0 0
        %1824 = vmatpush1.bf16.xpose.msra.mxu0 0
        %1825 = vmatprep.subr.bf16.mxu0 0
        %1826 = vmatpush1.bf16.xpose.msra.mxu0 0
        %1827 = vmatprep.subr.bf16.mxu0 0
        %1828 = vmatpush1.bf16.xpose.msra.mxu0 0
        %1829 = vmatprep.subr.bf16.mxu0 0
        %1830 = vmatpush1.bf16.xpose.msra.mxu0 0
        %1831 = vmatprep.subr.bf16.mxu0 0
        %1832 = vmatpush1.bf16.xpose.msra.mxu0 0
        %1833 = vmatprep.subr.bf16.mxu0 0
        %1834 = vmatpush1.bf16.xpose.msra.mxu0 0
        %1835 = vmatprep.subr.bf16.mxu0 0
        %1836 = vmatpush1.bf16.xpose.msra.mxu0 0
        %1837 = vmatprep.subr.bf16.mxu0 0
        %1838 = vmatpush1.bf16.xpose.msra.mxu0 0
        %1839 = vmatprep.subr.bf16.mxu0 0
        %1840 = vmatpush1.bf16.xpose.msra.mxu0 0
        %1841 = vmatprep.subr.bf16.mxu0 0
        %1842 = vmatpush1.bf16.xpose.msra.mxu0 0
        %1843 = vmatprep.subr.bf16.mxu0 0
        %1844 = vmatpush1.bf16.xpose.msra.mxu0 0
        %1845 = vmatprep.subr.bf16.mxu0 0
        %1846 = vmatpush1.bf16.xpose.msra.mxu0 0
        %1847 = vmatprep.subr.bf16.mxu0 0
        %1848 = vmatpush1.bf16.xpose.msra.mxu0 0
        %1849 = vmatprep.mubr.bf16.mxu0 0
        %1850 = vmatmul.mubr.bf16.gmra.mrb[0].mxu0 %v1812
        %v1851 = vpop.f32.mrb[0].mxu0
        %v1852 = vadd.f32 0.0, %v1851
        %v1853 = vpop.f32.mrb[0].mxu0
        %v1854 = vpop.f32.mrb[0].mxu0
        %v1855 = vpop.f32.mrb[0].mxu0
        %1856 = vdwg.mxu0
        %v1858 = vsel %vm1151, %v1804, 0
        %v1861 = vsel %vm1151, %v1382, 0
        %1863 = vmatprep.subr.bf16.mxu0 0
        %1864 = vmatpush1.bf16.xpose.msra.mxu0 %v1861
        %1865 = vmatprep.subr.bf16.mxu0 0
        %1866 = vmatpush1.bf16.xpose.msra.mxu0 0
        %1867 = vmatprep.subr.bf16.mxu0 0
        %1868 = vmatpush1.bf16.xpose.msra.mxu0 0
        %1869 = vmatprep.subr.bf16.mxu0 0
        %1870 = vmatpush1.bf16.xpose.msra.mxu0 0
        %1871 = vmatprep.subr.bf16.mxu0 0
        %1872 = vmatpush1.bf16.xpose.msra.mxu0 0
        %1873 = vmatprep.subr.bf16.mxu0 0
        %1874 = vmatpush1.bf16.xpose.msra.mxu0 0
        %1875 = vmatprep.subr.bf16.mxu0 0
        %1876 = vmatpush1.bf16.xpose.msra.mxu0 0
        %1877 = vmatprep.subr.bf16.mxu0 0
        %1878 = vmatpush1.bf16.xpose.msra.mxu0 0
        %1879 = vmatprep.subr.bf16.mxu0 0
        %1880 = vmatpush1.bf16.xpose.msra.mxu0 0
        %1881 = vmatprep.subr.bf16.mxu0 0
        %1882 = vmatpush1.bf16.xpose.msra.mxu0 0
        %1883 = vmatprep.subr.bf16.mxu0 0
        %1884 = vmatpush1.bf16.xpose.msra.mxu0 0
        %1885 = vmatprep.subr.bf16.mxu0 0
        %1886 = vmatpush1.bf16.xpose.msra.mxu0 0
        %1887 = vmatprep.subr.bf16.mxu0 0
        %1888 = vmatpush1.bf16.xpose.msra.mxu0 0
        %1889 = vmatprep.subr.bf16.mxu0 0
        %1890 = vmatpush1.bf16.xpose.msra.mxu0 0
        %1891 = vmatprep.subr.bf16.mxu0 0
        %1892 = vmatpush1.bf16.xpose.msra.mxu0 0
        %1893 = vmatprep.subr.bf16.mxu0 0
        %1894 = vmatpush1.bf16.xpose.msra.mxu0 0
        %1895 = vmatprep.mubr.bf16.mxu0 0
        %1896 = vmatmul.mubr.bf16.gmra.mrb[0].mxu0 %v1858
        %v1897 = vpop.f32.mrb[0].mxu0
        %v1898 = vadd.f32 0.0, %v1897
        %v1899 = vpop.f32.mrb[0].mxu0
        %v1900 = vpop.f32.mrb[0].mxu0
        %v1901 = vpop.f32.mrb[0].mxu0
        %1902 = vdwg.mxu0
        %v1904 = vsel %vm1151, %v1807, 0
        %v1907 = vsel %vm1151, %v1383, 0
        %1909 = vmatprep.subr.bf16.mxu0 0
        %1910 = vmatpush1.bf16.xpose.msra.mxu0 %v1907
        %1911 = vmatprep.subr.bf16.mxu0 0
        %1912 = vmatpush1.bf16.xpose.msra.mxu0 0
        %1913 = vmatprep.subr.bf16.mxu0 0
        %1914 = vmatpush1.bf16.xpose.msra.mxu0 0
        %1915 = vmatprep.subr.bf16.mxu0 0
        %1916 = vmatpush1.bf16.xpose.msra.mxu0 0
        %1917 = vmatprep.subr.bf16.mxu0 0
        %1918 = vmatpush1.bf16.xpose.msra.mxu0 0
        %1919 = vmatprep.subr.bf16.mxu0 0
        %1920 = vmatpush1.bf16.xpose.msra.mxu0 0
        %1921 = vmatprep.subr.bf16.mxu0 0
        %1922 = vmatpush1.bf16.xpose.msra.mxu0 0
        %1923 = vmatprep.subr.bf16.mxu0 0
        %1924 = vmatpush1.bf16.xpose.msra.mxu0 0
        %1925 = vmatprep.subr.bf16.mxu0 0
        %1926 = vmatpush1.bf16.xpose.msra.mxu0 0
        %1927 = vmatprep.subr.bf16.mxu0 0
        %1928 = vmatpush1.bf16.xpose.msra.mxu0 0
        %1929 = vmatprep.subr.bf16.mxu0 0
        %1930 = vmatpush1.bf16.xpose.msra.mxu0 0
        %1931 = vmatprep.subr.bf16.mxu0 0
        %1932 = vmatpush1.bf16.xpose.msra.mxu0 0
        %1933 = vmatprep.subr.bf16.mxu0 0
        %1934 = vmatpush1.bf16.xpose.msra.mxu0 0
        %1935 = vmatprep.subr.bf16.mxu0 0
        %1936 = vmatpush1.bf16.xpose.msra.mxu0 0
        %1937 = vmatprep.subr.bf16.mxu0 0
        %1938 = vmatpush1.bf16.xpose.msra.mxu0 0
        %1939 = vmatprep.subr.bf16.mxu0 0
        %1940 = vmatpush1.bf16.xpose.msra.mxu0 0
        %1941 = vmatprep.mubr.bf16.mxu0 0
        %1942 = vmatmul.mubr.bf16.gmra.mrb[0].mxu0 %v1904
        %v1943 = vpop.f32.mrb[0].mxu0
        %v1944 = vadd.f32 0.0, %v1943
        %v1945 = vpop.f32.mrb[0].mxu0
        %v1946 = vpop.f32.mrb[0].mxu0
        %v1947 = vpop.f32.mrb[0].mxu0
        %1948 = vdwg.mxu0
        %v1950 = vsel %vm1151, %v1810, 0
        %v1953 = vsel %vm1151, %v1384, 0
        %1955 = vmatprep.subr.bf16.mxu0 0
        %1956 = vmatpush1.bf16.xpose.msra.mxu0 %v1953
        %1957 = vmatprep.subr.bf16.mxu0 0
        %1958 = vmatpush1.bf16.xpose.msra.mxu0 0
        %1959 = vmatprep.subr.bf16.mxu0 0
        %1960 = vmatpush1.bf16.xpose.msra.mxu0 0
        %1961 = vmatprep.subr.bf16.mxu0 0
        %1962 = vmatpush1.bf16.xpose.msra.mxu0 0
        %1963 = vmatprep.subr.bf16.mxu0 0
        %1964 = vmatpush1.bf16.xpose.msra.mxu0 0
        %1965 = vmatprep.subr.bf16.mxu0 0
        %1966 = vmatpush1.bf16.xpose.msra.mxu0 0
        %1967 = vmatprep.subr.bf16.mxu0 0
        %1968 = vmatpush1.bf16.xpose.msra.mxu0 0
        %1969 = vmatprep.subr.bf16.mxu0 0
        %1970 = vmatpush1.bf16.xpose.msra.mxu0 0
        %1971 = vmatprep.subr.bf16.mxu0 0
        %1972 = vmatpush1.bf16.xpose.msra.mxu0 0
        %1973 = vmatprep.subr.bf16.mxu0 0
        %1974 = vmatpush1.bf16.xpose.msra.mxu0 0
        %1975 = vmatprep.subr.bf16.mxu0 0
        %1976 = vmatpush1.bf16.xpose.msra.mxu0 0
        %1977 = vmatprep.subr.bf16.mxu0 0
        %1978 = vmatpush1.bf16.xpose.msra.mxu0 0
        %1979 = vmatprep.subr.bf16.mxu0 0
        %1980 = vmatpush1.bf16.xpose.msra.mxu0 0
        %1981 = vmatprep.subr.bf16.mxu0 0
        %1982 = vmatpush1.bf16.xpose.msra.mxu0 0
        %1983 = vmatprep.subr.bf16.mxu0 0
        %1984 = vmatpush1.bf16.xpose.msra.mxu0 0
        %1985 = vmatprep.subr.bf16.mxu0 0
        %1986 = vmatpush1.bf16.xpose.msra.mxu0 0
        %1987 = vmatprep.mubr.bf16.mxu0 0
        %1988 = vmatmul.mubr.bf16.gmra.mrb[0].mxu0 %v1950
        %v1989 = vpop.f32.mrb[0].mxu0
        %v1990 = vadd.f32 0.0, %v1989
        %v1991 = vpop.f32.mrb[0].mxu0
        %v1992 = vpop.f32.mrb[0].mxu0
        %v1993 = vpop.f32.mrb[0].mxu0
        %1994 = vdwg.mxu0
        %1995 = vxpose.xlu0.b32.start [1/16] %v1852, 128
        %1996 = vxpose.xlu0.b32.cont [2/16] 0.0, 128
        %1997 = vxpose.xlu0.b32.cont [3/16] 0.0, 128
        %1998 = vxpose.xlu0.b32.cont [4/16] 0.0, 128
        %1999 = vxpose.xlu0.b32.cont [5/16] 0.0, 128
        %2000 = vxpose.xlu0.b32.cont [6/16] 0.0, 128
        %2001 = vxpose.xlu0.b32.cont [7/16] 0.0, 128
        %2002 = vxpose.xlu0.b32.cont [8/16] 0.0, 128
        %2003 = vxpose.xlu0.b32.cont [9/16] 0.0, 128
        %2004 = vxpose.xlu0.b32.cont [10/16] 0.0, 128
        %2005 = vxpose.xlu0.b32.cont [11/16] 0.0, 128
        %2006 = vxpose.xlu0.b32.cont [12/16] 0.0, 128
        %2007 = vxpose.xlu0.b32.cont [13/16] 0.0, 128
        %2008 = vxpose.xlu0.b32.cont [14/16] 0.0, 128
        %2009 = vxpose.xlu0.b32.cont [15/16] 0.0, 128
        %2010 = vxpose.xlu0.b32.end [16/16] 0.0, 128
        %v2011 = vpop.trf.xlu0
        %v2012 = vpop.trf.xlu0
        %v2013 = vpop.trf.xlu0
        %v2014 = vpop.trf.xlu0
        %v2015 = vpop.trf.xlu0
        %v2016 = vpop.trf.xlu0
        %v2017 = vpop.trf.xlu0
        %v2018 = vpop.trf.xlu0
        %v2019 = vpop.trf.xlu0
        %v2020 = vpop.trf.xlu0
        %v2021 = vpop.trf.xlu0
        %v2022 = vpop.trf.xlu0
        %v2023 = vpop.trf.xlu0
        %v2024 = vpop.trf.xlu0
        %v2025 = vpop.trf.xlu0
        %v2026 = vpop.trf.xlu0
        %2027 = vxpose.xlu0.b32.start [1/16] %v1898, 128
        %2028 = vxpose.xlu0.b32.cont [2/16] 0.0, 128
        %2029 = vxpose.xlu0.b32.cont [3/16] 0.0, 128
        %2030 = vxpose.xlu0.b32.cont [4/16] 0.0, 128
        %2031 = vxpose.xlu0.b32.cont [5/16] 0.0, 128
        %2032 = vxpose.xlu0.b32.cont [6/16] 0.0, 128
        %2033 = vxpose.xlu0.b32.cont [7/16] 0.0, 128
        %2034 = vxpose.xlu0.b32.cont [8/16] 0.0, 128
        %2035 = vxpose.xlu0.b32.cont [9/16] 0.0, 128
        %2036 = vxpose.xlu0.b32.cont [10/16] 0.0, 128
        %2037 = vxpose.xlu0.b32.cont [11/16] 0.0, 128
        %2038 = vxpose.xlu0.b32.cont [12/16] 0.0, 128
        %2039 = vxpose.xlu0.b32.cont [13/16] 0.0, 128
        %2040 = vxpose.xlu0.b32.cont [14/16] 0.0, 128
        %2041 = vxpose.xlu0.b32.cont [15/16] 0.0, 128
        %2042 = vxpose.xlu0.b32.end [16/16] 0.0, 128
        %v2043 = vpop.trf.xlu0
        %v2044 = vpop.trf.xlu0
        %v2045 = vpop.trf.xlu0
        %v2046 = vpop.trf.xlu0
        %v2047 = vpop.trf.xlu0
        %v2048 = vpop.trf.xlu0
        %v2049 = vpop.trf.xlu0
        %v2050 = vpop.trf.xlu0
        %v2051 = vpop.trf.xlu0
        %v2052 = vpop.trf.xlu0
        %v2053 = vpop.trf.xlu0
        %v2054 = vpop.trf.xlu0
        %v2055 = vpop.trf.xlu0
        %v2056 = vpop.trf.xlu0
        %v2057 = vpop.trf.xlu0
        %v2058 = vpop.trf.xlu0
        %2059 = vxpose.xlu0.b32.start [1/16] %v1944, 128
        %2060 = vxpose.xlu0.b32.cont [2/16] 0.0, 128
        %2061 = vxpose.xlu0.b32.cont [3/16] 0.0, 128
        %2062 = vxpose.xlu0.b32.cont [4/16] 0.0, 128
        %2063 = vxpose.xlu0.b32.cont [5/16] 0.0, 128
        %2064 = vxpose.xlu0.b32.cont [6/16] 0.0, 128
        %2065 = vxpose.xlu0.b32.cont [7/16] 0.0, 128
        %2066 = vxpose.xlu0.b32.cont [8/16] 0.0, 128
        %2067 = vxpose.xlu0.b32.cont [9/16] 0.0, 128
        %2068 = vxpose.xlu0.b32.cont [10/16] 0.0, 128
        %2069 = vxpose.xlu0.b32.cont [11/16] 0.0, 128
        %2070 = vxpose.xlu0.b32.cont [12/16] 0.0, 128
        %2071 = vxpose.xlu0.b32.cont [13/16] 0.0, 128
        %2072 = vxpose.xlu0.b32.cont [14/16] 0.0, 128
        %2073 = vxpose.xlu0.b32.cont [15/16] 0.0, 128
        %2074 = vxpose.xlu0.b32.end [16/16] 0.0, 128
        %v2075 = vpop.trf.xlu0
        %v2076 = vpop.trf.xlu0
        %v2077 = vpop.trf.xlu0
        %v2078 = vpop.trf.xlu0
        %v2079 = vpop.trf.xlu0
        %v2080 = vpop.trf.xlu0
        %v2081 = vpop.trf.xlu0
        %v2082 = vpop.trf.xlu0
        %v2083 = vpop.trf.xlu0
        %v2084 = vpop.trf.xlu0
        %v2085 = vpop.trf.xlu0
        %v2086 = vpop.trf.xlu0
        %v2087 = vpop.trf.xlu0
        %v2088 = vpop.trf.xlu0
        %v2089 = vpop.trf.xlu0
        %v2090 = vpop.trf.xlu0
        %2091 = vxpose.xlu0.b32.start [1/16] %v1990, 128
        %2092 = vxpose.xlu0.b32.cont [2/16] 0.0, 128
        %2093 = vxpose.xlu0.b32.cont [3/16] 0.0, 128
        %2094 = vxpose.xlu0.b32.cont [4/16] 0.0, 128
        %2095 = vxpose.xlu0.b32.cont [5/16] 0.0, 128
        %2096 = vxpose.xlu0.b32.cont [6/16] 0.0, 128
        %2097 = vxpose.xlu0.b32.cont [7/16] 0.0, 128
        %2098 = vxpose.xlu0.b32.cont [8/16] 0.0, 128
        %2099 = vxpose.xlu0.b32.cont [9/16] 0.0, 128
        %2100 = vxpose.xlu0.b32.cont [10/16] 0.0, 128
        %2101 = vxpose.xlu0.b32.cont [11/16] 0.0, 128
        %2102 = vxpose.xlu0.b32.cont [12/16] 0.0, 128
        %2103 = vxpose.xlu0.b32.cont [13/16] 0.0, 128
        %2104 = vxpose.xlu0.b32.cont [14/16] 0.0, 128
        %2105 = vxpose.xlu0.b32.cont [15/16] 0.0, 128
        %2106 = vxpose.xlu0.b32.end [16/16] 0.0, 128
        %v2107 = vpop.trf.xlu0
        %v2108 = vpop.trf.xlu0
        %v2109 = vpop.trf.xlu0
        %v2110 = vpop.trf.xlu0
        %v2111 = vpop.trf.xlu0
        %v2112 = vpop.trf.xlu0
        %v2113 = vpop.trf.xlu0
        %v2114 = vpop.trf.xlu0
        %v2115 = vpop.trf.xlu0
        %v2116 = vpop.trf.xlu0
        %v2117 = vpop.trf.xlu0
        %v2118 = vpop.trf.xlu0
        %v2119 = vpop.trf.xlu0
        %v2120 = vpop.trf.xlu0
        %v2121 = vpop.trf.xlu0
        %v2122 = vpop.trf.xlu0
        %v2123 = vcombine.low %v2011, %v2075
        %v2124 = vcombine.high %v2011, %v2075
        %v2126 = vunpack.c.l.s4 1983009808
        %v2127 = vunpack.c.0.s8 %v2126
        %v2128 = vlaneseq
        %v2129 = vshrl.u32 %v2128, 7
        %v2130 = vsub.s32 %v2127, %v2129
        %v2131 = vrot.slane %v2123, %v2130
        %v2133 = vunpack.c.l.s4 1983009808
        %v2134 = vunpack.c.0.s8 %v2133
        %v2135 = vlaneseq
        %v2136 = vshrl.u32 %v2135, 7
        %v2137 = vsub.s32 %v2134, %v2136
        %v2138 = vrot.slane %v2124, %v2137
        %v2139 = vcombine.low %v2043, %v2107
        %v2140 = vcombine.high %v2043, %v2107
        %v2142 = vunpack.c.l.s4 1983009808
        %v2143 = vunpack.c.0.s8 %v2142
        %v2144 = vlaneseq
        %v2145 = vshrl.u32 %v2144, 7
        %v2146 = vsub.s32 %v2143, %v2145
        %v2147 = vrot.slane %v2139, %v2146
        %v2149 = vunpack.c.l.s4 1983009808
        %v2150 = vunpack.c.0.s8 %v2149
        %v2151 = vlaneseq
        %v2152 = vshrl.u32 %v2151, 7
        %v2153 = vsub.s32 %v2150, %v2152
        %v2154 = vrot.slane %v2140, %v2153
        %v2155 = vcombine.low %v2131, %v2147
        %v2156 = vcombine.high %v2131, %v2147
        %v2158 = vunpack.c.l.s4 1934713408
        %v2159 = vunpack.c.0.s8 %v2158
        %v2160 = vlaneseq
        %v2161 = vshrl.u32 %v2160, 7
        %v2162 = vsub.s32 %v2159, %v2161
        %v2163 = vrot.slane %v2155, %v2162
        %v2165 = vunpack.c.l.s4 1934713408
        %v2166 = vunpack.c.0.s8 %v2165
        %v2167 = vlaneseq
        %v2168 = vshrl.u32 %v2167, 7
        %v2169 = vsub.s32 %v2166, %v2168
        %v2170 = vrot.slane %v2156, %v2169
        %v2171 = vcombine.low %v2138, %v2154
        %v2172 = vcombine.high %v2138, %v2154
        %v2174 = vunpack.c.l.s4 1934713408
        %v2175 = vunpack.c.0.s8 %v2174
        %v2176 = vlaneseq
        %v2177 = vshrl.u32 %v2176, 7
        %v2178 = vsub.s32 %v2175, %v2177
        %v2179 = vrot.slane %v2171, %v2178
        %v2181 = vunpack.c.l.s4 1934713408
        %v2182 = vunpack.c.0.s8 %v2181
        %v2183 = vlaneseq
        %v2184 = vshrl.u32 %v2183, 7
        %v2185 = vsub.s32 %v2182, %v2184
        %v2186 = vrot.slane %v2172, %v2185
        %v2187 = vcombine.high %v2163, 0.0
        %v2188 = vcombine.high %v2170, 0.0
        %v2189 = vcombine.high %v2179, 0.0
        %v2190 = vcombine.high %v2186, 0.0
        %v2191 = vcombine.low %v2163, %v2170
        %v2193 = vunpack.c.l.s4 1983009808
        %v2194 = vunpack.c.0.s8 %v2193
        %v2195 = vlaneseq
        %v2196 = vshrl.u32 %v2195, 7
        %v2197 = vsub.s32 %v2194, %v2196
        %v2198 = vrot.slane %v2191, %v2197
        %v2199 = vcombine.low %v2187, %v2188
        %v2201 = vunpack.c.l.s4 1983009808
        %v2202 = vunpack.c.0.s8 %v2201
        %v2203 = vlaneseq
        %v2204 = vshrl.u32 %v2203, 7
        %v2205 = vsub.s32 %v2202, %v2204
        %v2206 = vrot.slane %v2199, %v2205
        %v2207 = vcombine.low %v2179, %v2186
        %v2209 = vunpack.c.l.s4 1983009808
        %v2210 = vunpack.c.0.s8 %v2209
        %v2211 = vlaneseq
        %v2212 = vshrl.u32 %v2211, 7
        %v2213 = vsub.s32 %v2210, %v2212
        %v2214 = vrot.slane %v2207, %v2213
        %v2215 = vcombine.low %v2189, %v2190
        %v2217 = vunpack.c.l.s4 1983009808
        %v2218 = vunpack.c.0.s8 %v2217
        %v2219 = vlaneseq
        %v2220 = vshrl.u32 %v2219, 7
        %v2221 = vsub.s32 %v2218, %v2220
        %v2222 = vrot.slane %v2215, %v2221
        %v2223 = vcombine.low %v2198, %v2206
        %v2224 = vcombine.high %v2198, %v2206
        %v2226 = vunpack.c.l.s4 1934713408
        %v2227 = vunpack.c.0.s8 %v2226
        %v2228 = vlaneseq
        %v2229 = vshrl.u32 %v2228, 7
        %v2230 = vsub.s32 %v2227, %v2229
        %v2231 = vrot.slane %v2223, %v2230
        %v2233 = vunpack.c.l.s4 1934713408
        %v2234 = vunpack.c.0.s8 %v2233
        %v2235 = vlaneseq
        %v2236 = vshrl.u32 %v2235, 7
        %v2237 = vsub.s32 %v2234, %v2236
        %v2238 = vrot.slane %v2224, %v2237
        %v2239 = vcombine.low %v2214, %v2222
        %v2240 = vcombine.high %v2214, %v2222
        %v2242 = vunpack.c.l.s4 1934713408
        %v2243 = vunpack.c.0.s8 %v2242
        %v2244 = vlaneseq
        %v2245 = vshrl.u32 %v2244, 7
        %v2246 = vsub.s32 %v2243, %v2245
        %v2247 = vrot.slane %v2239, %v2246
        %v2249 = vunpack.c.l.s4 1934713408
        %v2250 = vunpack.c.0.s8 %v2249
        %v2251 = vlaneseq
        %v2252 = vshrl.u32 %v2251, 7
        %v2253 = vsub.s32 %v2250, %v2252
        %v2254 = vrot.slane %v2240, %v2253
        %v2255 = vcombine.low %v2231, %v2247
        %v2256 = vcombine.high %v2231, %v2247
        %v2257 = vcombine.low %v2238, %v2254
        %v2258 = vcombine.high %v2238, %v2254
        %2260 = vrot.lane.b32.xlu0 %v2256, 8
        %v2261 = vpop.permute.xlu0 %2260
        %2264 = vrot.lane.b32.xlu0 %v2257, 16
        %v2265 = vpop.permute.xlu0 %2264
        %2268 = vrot.lane.b32.xlu0 %v2258, 24
        %v2269 = vpop.permute.xlu0 %2268
        %v2271 = vsel %vm1151, %v2255, %v2261
        %vm2272 = vcmask 130048
        %v2273 = vsel %vm2272, %v2271, %v2265
        %vm2274 = vcmask 195584
        %v2275 = vsel %vm2274, %v2273, %v2269
        %v2276 = vpack.c.bf16 %v2275, %v2275
        %v2277 = vld [vmem:[%s3] sm:$0xf]
        %v2278 = vld [vmem:[%s3 + $0x4] sm:$0xf]
        %v2279 = vld [vmem:[%s3 + $0x8] sm:$0xf]
        %v2280 = vld [vmem:[%s3 + $0xc] sm:$0xf]
        %v2281 = vld [vmem:[%s4] sm:$0x1]
        %v2283 = vlaneseq
        %v2284 = vshrl.u32 %v2283, 7
        %v2285 = vsub.s32 0, %v2284
        %v2286 = vrot.slane %v2281, %v2285
        %v2292 = vunpack.c.l.b16 %v2277
        %v2293 = vunpack.c.l.b16 %v2278
        %v2294 = vunpack.c.l.b16 %v2279
        %v2295 = vunpack.c.l.b16 %v2280
        %v2296 = vpack.c.b16 %v2293, %v2292
        %v2297 = vpack.c.b16 %v2295, %v2294
        %v2301 = vsel %vm373, %v2276, 0
        %2303 = vmatprep.subr.bf16.mxu0 0
        %2304 = vmatpush1.bf16.msra.mxu0 %v2296
        %2305 = vmatprep.subr.bf16.mxu0 0
        %2306 = vmatpush1.bf16.msra.mxu0 %v2297
        %2307 = vmatprep.subr.bf16.mxu0 0
        %2308 = vmatpush1.bf16.msra.mxu0 0
        %2309 = vmatprep.subr.bf16.mxu0 0
        %2310 = vmatpush1.bf16.msra.mxu0 0
        %2311 = vmatprep.subr.bf16.mxu0 0
        %2312 = vmatpush1.bf16.msra.mxu0 0
        %2313 = vmatprep.subr.bf16.mxu0 0
        %2314 = vmatpush1.bf16.msra.mxu0 0
        %2315 = vmatprep.subr.bf16.mxu0 0
        %2316 = vmatpush1.bf16.msra.mxu0 0
        %2317 = vmatprep.subr.bf16.mxu0 0
        %2318 = vmatpush1.bf16.msra.mxu0 0
        %2319 = vmatprep.subr.bf16.mxu0 0
        %2320 = vmatpush1.bf16.msra.mxu0 0
        %2321 = vmatprep.subr.bf16.mxu0 0
        %2322 = vmatpush1.bf16.msra.mxu0 0
        %2323 = vmatprep.subr.bf16.mxu0 0
        %2324 = vmatpush1.bf16.msra.mxu0 0
        %2325 = vmatprep.subr.bf16.mxu0 0
        %2326 = vmatpush1.bf16.msra.mxu0 0
        %2327 = vmatprep.subr.bf16.mxu0 0
        %2328 = vmatpush1.bf16.msra.mxu0 0
        %2329 = vmatprep.subr.bf16.mxu0 0
        %2330 = vmatpush1.bf16.msra.mxu0 0
        %2331 = vmatprep.subr.bf16.mxu0 0
        %2332 = vmatpush1.bf16.msra.mxu0 0
        %2333 = vmatprep.subr.bf16.mxu0 0
        %2334 = vmatpush1.bf16.msra.mxu0 0
        %2335 = vmatprep.mubr.bf16.mxu0 0
        %2336 = vmatmul.mubr.bf16.gmra.mrb[0].mxu0 %v2301
        %v2337 = vpop.f32.mrb[0].mxu0
        %v2338 = vadd.f32 %v2286, %v2337
        %v2339 = vpop.f32.mrb[0].mxu0
        %v2340 = vpop.f32.mrb[0].mxu0
        %v2341 = vpop.f32.mrb[0].mxu0
        %2342 = vdwg.mxu0
        %v2343 = vadd.f32 %v348, %v2338
        %v2344 = vpack.c.bf16 %v2343, %v2343
        %v2345 = vld [vmem:[%s5] sm:$0xf]
        %v2346 = vld [vmem:[%s5 + $0x4] sm:$0xf]
        %v2347 = vld [vmem:[%s5 + $0x8] sm:$0xf]
        %v2348 = vld [vmem:[%s5 + $0xc] sm:$0xf]
        %v2349 = vld [vmem:[%s6] sm:$0x1]
        %v2351 = vlaneseq
        %v2352 = vshrl.u32 %v2351, 7
        %v2353 = vsub.s32 0, %v2352
        %v2354 = vrot.slane %v2349, %v2353
        %v2360 = vunpack.c.l.b16 %v2345
        %v2361 = vunpack.c.l.b16 %v2346
        %v2362 = vunpack.c.l.b16 %v2347
        %v2363 = vunpack.c.l.b16 %v2348
        %v2364 = vpack.c.b16 %v2361, %v2360
        %v2365 = vpack.c.b16 %v2363, %v2362
        %v2369 = vsel %vm373, %v2344, 0
        %2371 = vmatprep.subr.bf16.mxu0 0
        %2372 = vmatpush1.bf16.msra.mxu0 %v2364
        %2373 = vmatprep.subr.bf16.mxu0 0
        %2374 = vmatpush1.bf16.msra.mxu0 %v2365
        %2375 = vmatprep.subr.bf16.mxu0 0
        %2376 = vmatpush1.bf16.msra.mxu0 0
        %2377 = vmatprep.subr.bf16.mxu0 0
        %2378 = vmatpush1.bf16.msra.mxu0 0
        %2379 = vmatprep.subr.bf16.mxu0 0
        %2380 = vmatpush1.bf16.msra.mxu0 0
        %2381 = vmatprep.subr.bf16.mxu0 0
        %2382 = vmatpush1.bf16.msra.mxu0 0
        %2383 = vmatprep.subr.bf16.mxu0 0
        %2384 = vmatpush1.bf16.msra.mxu0 0
        %2385 = vmatprep.subr.bf16.mxu0 0
        %2386 = vmatpush1.bf16.msra.mxu0 0
        %2387 = vmatprep.subr.bf16.mxu0 0
        %2388 = vmatpush1.bf16.msra.mxu0 0
        %2389 = vmatprep.subr.bf16.mxu0 0
        %2390 = vmatpush1.bf16.msra.mxu0 0
        %2391 = vmatprep.subr.bf16.mxu0 0
        %2392 = vmatpush1.bf16.msra.mxu0 0
        %2393 = vmatprep.subr.bf16.mxu0 0
        %2394 = vmatpush1.bf16.msra.mxu0 0
        %2395 = vmatprep.subr.bf16.mxu0 0
        %2396 = vmatpush1.bf16.msra.mxu0 0
        %2397 = vmatprep.subr.bf16.mxu0 0
        %2398 = vmatpush1.bf16.msra.mxu0 0
        %2399 = vmatprep.subr.bf16.mxu0 0
        %2400 = vmatpush1.bf16.msra.mxu0 0
        %2401 = vmatprep.subr.bf16.mxu0 0
        %2402 = vmatpush1.bf16.msra.mxu0 0
        %2403 = vmatprep.mubr.bf16.mxu0 0
        %2404 = vmatmul.mubr.bf16.gmra.mrb[0].mxu0 %v2369
        %v2405 = vpop.f32.mrb[0].mxu0
        %v2406 = vadd.f32 %v2354, %v2405
        %v2407 = vpop.f32.mrb[0].mxu0
        %v2408 = vpop.f32.mrb[0].mxu0
        %v2409 = vpop.f32.mrb[0].mxu0
        %2410 = vdwg.mxu0
        %v2411 = vmax.f32 %v2406, 0.0
        %v2412 = vpack.c.bf16 %v2411, %v2411
        %v2413 = vld [vmem:[%s7] sm:$0xf]
        %v2414 = vld [vmem:[%s7 + $0x4] sm:$0xf]
        %v2415 = vld [vmem:[%s7 + $0x8] sm:$0xf]
        %v2416 = vld [vmem:[%s7 + $0xc] sm:$0xf]
        %v2417 = vld [vmem:[%s7 + $0x10] sm:$0xf]
        %v2418 = vld [vmem:[%s7 + $0x14] sm:$0xf]
        %v2419 = vld [vmem:[%s7 + $0x18] sm:$0xf]
        %v2420 = vld [vmem:[%s7 + $0x1c] sm:$0xf]
        %v2421 = vld [vmem:[%s8] sm:$0x1]
        %v2423 = vlaneseq
        %v2424 = vshrl.u32 %v2423, 7
        %v2425 = vsub.s32 0, %v2424
        %v2426 = vrot.slane %v2421, %v2425
        %v2436 = vunpack.c.l.b16 %v2413
        %v2437 = vunpack.c.l.b16 %v2414
        %v2438 = vunpack.c.l.b16 %v2415
        %v2439 = vunpack.c.l.b16 %v2416
        %v2440 = vunpack.c.l.b16 %v2417
        %v2441 = vunpack.c.l.b16 %v2418
        %v2442 = vunpack.c.l.b16 %v2419
        %v2443 = vunpack.c.l.b16 %v2420
        %v2444 = vpack.c.b16 %v2437, %v2436
        %v2445 = vpack.c.b16 %v2439, %v2438
        %v2446 = vpack.c.b16 %v2441, %v2440
        %v2447 = vpack.c.b16 %v2443, %v2442
        %vm2452 = vcmask 523264
        %v2454 = vsel %vm2452, %v2412, 0
        %2456 = vmatprep.subr.bf16.mxu0 0
        %2457 = vmatpush1.bf16.msra.mxu0 %v2444
        %2458 = vmatprep.subr.bf16.mxu0 0
        %2459 = vmatpush1.bf16.msra.mxu0 %v2445
        %2460 = vmatprep.subr.bf16.mxu0 0
        %2461 = vmatpush1.bf16.msra.mxu0 %v2446
        %2462 = vmatprep.subr.bf16.mxu0 0
        %2463 = vmatpush1.bf16.msra.mxu0 %v2447
        %2464 = vmatprep.subr.bf16.mxu0 0
        %2465 = vmatpush1.bf16.msra.mxu0 0
        %2466 = vmatprep.subr.bf16.mxu0 0
        %2467 = vmatpush1.bf16.msra.mxu0 0
        %2468 = vmatprep.subr.bf16.mxu0 0
        %2469 = vmatpush1.bf16.msra.mxu0 0
        %2470 = vmatprep.subr.bf16.mxu0 0
        %2471 = vmatpush1.bf16.msra.mxu0 0
        %2472 = vmatprep.subr.bf16.mxu0 0
        %2473 = vmatpush1.bf16.msra.mxu0 0
        %2474 = vmatprep.subr.bf16.mxu0 0
        %2475 = vmatpush1.bf16.msra.mxu0 0
        %2476 = vmatprep.subr.bf16.mxu0 0
        %2477 = vmatpush1.bf16.msra.mxu0 0
        %2478 = vmatprep.subr.bf16.mxu0 0
        %2479 = vmatpush1.bf16.msra.mxu0 0
        %2480 = vmatprep.subr.bf16.mxu0 0
        %2481 = vmatpush1.bf16.msra.mxu0 0
        %2482 = vmatprep.subr.bf16.mxu0 0
        %2483 = vmatpush1.bf16.msra.mxu0 0
        %2484 = vmatprep.subr.bf16.mxu0 0
        %2485 = vmatpush1.bf16.msra.mxu0 0
        %2486 = vmatprep.subr.bf16.mxu0 0
        %2487 = vmatpush1.bf16.msra.mxu0 0
        %2488 = vmatprep.mubr.bf16.mxu0 0
        %2489 = vmatmul.mubr.bf16.gmra.mrb[0].mxu0 %v2454
        %v2490 = vpop.f32.mrb[0].mxu0
        %v2491 = vadd.f32 %v2426, %v2490
        %v2492 = vpop.f32.mrb[0].mxu0
        %v2493 = vpop.f32.mrb[0].mxu0
        %v2494 = vpop.f32.mrb[0].mxu0
        %2495 = vdwg.mxu0
        %v2496 = vadd.f32 %v2343, %v2491
        %v2497 = vpack.c.bf16 %v2496, %v2496
        %s2498 = scalar_lea.vmem %s1, 16
        %v2499 = vld [vmem:[%s2498] sm:$0xf]
        %v2500 = vld [vmem:[%s2498 + $0x4] sm:$0xf]
        %v2501 = vld [vmem:[%s2498 + $0x8] sm:$0xf]
        %v2502 = vld [vmem:[%s2498 + $0xc] sm:$0xf]
        %s2503 = scalar_lea.vmem %s2, 1
        %v2504 = vld [vmem:[%s2503] sm:$0x1]
        %v2506 = vlaneseq
        %v2507 = vshrl.u32 %v2506, 7
        %v2508 = vsub.s32 0, %v2507
        %v2509 = vrot.slane %v2504, %v2508
        %v2515 = vunpack.c.l.b16 %v2499
        %v2516 = vunpack.c.l.b16 %v2500
        %v2517 = vunpack.c.l.b16 %v2501
        %v2518 = vunpack.c.l.b16 %v2502
        %v2519 = vpack.c.b16 %v2516, %v2515
        %v2520 = vpack.c.b16 %v2518, %v2517
        %v2524 = vsel %vm373, %v2497, 0
        %2526 = vmatprep.subr.bf16.mxu0 0
        %2527 = vmatpush1.bf16.msra.mxu0 %v2519
        %2528 = vmatprep.subr.bf16.mxu0 0
        %2529 = vmatpush1.bf16.msra.mxu0 %v2520
        %2530 = vmatprep.subr.bf16.mxu0 0
        %2531 = vmatpush1.bf16.msra.mxu0 0
        %2532 = vmatprep.subr.bf16.mxu0 0
        %2533 = vmatpush1.bf16.msra.mxu0 0
        %2534 = vmatprep.subr.bf16.mxu0 0
        %2535 = vmatpush1.bf16.msra.mxu0 0
        %2536 = vmatprep.subr.bf16.mxu0 0
        %2537 = vmatpush1.bf16.msra.mxu0 0
        %2538 = vmatprep.subr.bf16.mxu0 0
        %2539 = vmatpush1.bf16.msra.mxu0 0
        %2540 = vmatprep.subr.bf16.mxu0 0
        %2541 = vmatpush1.bf16.msra.mxu0 0
        %2542 = vmatprep.subr.bf16.mxu0 0
        %2543 = vmatpush1.bf16.msra.mxu0 0
        %2544 = vmatprep.subr.bf16.mxu0 0
        %2545 = vmatpush1.bf16.msra.mxu0 0
        %2546 = vmatprep.subr.bf16.mxu0 0
        %2547 = vmatpush1.bf16.msra.mxu0 0
        %2548 = vmatprep.subr.bf16.mxu0 0
        %2549 = vmatpush1.bf16.msra.mxu0 0
        %2550 = vmatprep.subr.bf16.mxu0 0
        %2551 = vmatpush1.bf16.msra.mxu0 0
        %2552 = vmatprep.subr.bf16.mxu0 0
        %2553 = vmatpush1.bf16.msra.mxu0 0
        %2554 = vmatprep.subr.bf16.mxu0 0
        %2555 = vmatpush1.bf16.msra.mxu0 0
        %2556 = vmatprep.subr.bf16.mxu0 0
        %2557 = vmatpush1.bf16.msra.mxu0 0
        %2558 = vmatprep.mubr.bf16.mxu0 0
        %2559 = vmatmul.mubr.bf16.gmra.mrb[0].mxu0 %v2524
        %v2560 = vpop.f32.mrb[0].mxu0
        %v2561 = vadd.f32 %v2509, %v2560
        %v2562 = vpop.f32.mrb[0].mxu0
        %v2563 = vpop.f32.mrb[0].mxu0
        %v2564 = vpop.f32.mrb[0].mxu0
        %2565 = vdwg.mxu0
        %2567 = vrot.lane.b32.xlu0 %v2561, 120
        %v2568 = vpop.permute.xlu0 %2567
        %2570 = vrot.lane.b32.xlu0 %v2561, 112
        %v2571 = vpop.permute.xlu0 %2570
        %2573 = vrot.lane.b32.xlu0 %v2561, 104
        %v2574 = vpop.permute.xlu0 %2573
        %v2576 = vcombine.low %v2561, %v2571
        %v2577 = vcombine.high %v2561, %v2571
        %v2579 = vunpack.c.l.s4 1983009808
        %v2580 = vunpack.c.0.s8 %v2579
        %v2581 = vlaneseq
        %v2582 = vshrl.u32 %v2581, 7
        %v2583 = vsub.s32 %v2580, %v2582
        %v2584 = vrot.slane %v2576, %v2583
        %v2586 = vunpack.c.l.s4 1983009808
        %v2587 = vunpack.c.0.s8 %v2586
        %v2588 = vlaneseq
        %v2589 = vshrl.u32 %v2588, 7
        %v2590 = vsub.s32 %v2587, %v2589
        %v2591 = vrot.slane %v2577, %v2590
        %v2592 = vcombine.low %v2568, %v2574
        %v2593 = vcombine.high %v2568, %v2574
        %v2595 = vunpack.c.l.s4 1983009808
        %v2596 = vunpack.c.0.s8 %v2595
        %v2597 = vlaneseq
        %v2598 = vshrl.u32 %v2597, 7
        %v2599 = vsub.s32 %v2596, %v2598
        %v2600 = vrot.slane %v2592, %v2599
        %v2602 = vunpack.c.l.s4 1983009808
        %v2603 = vunpack.c.0.s8 %v2602
        %v2604 = vlaneseq
        %v2605 = vshrl.u32 %v2604, 7
        %v2606 = vsub.s32 %v2603, %v2605
        %v2607 = vrot.slane %v2593, %v2606
        %v2608 = vcombine.low %v2584, %v2600
        %v2609 = vcombine.high %v2584, %v2600
        %v2611 = vunpack.c.l.s4 1934713408
        %v2612 = vunpack.c.0.s8 %v2611
        %v2613 = vlaneseq
        %v2614 = vshrl.u32 %v2613, 7
        %v2615 = vsub.s32 %v2612, %v2614
        %v2616 = vrot.slane %v2608, %v2615
        %v2618 = vunpack.c.l.s4 1934713408
        %v2619 = vunpack.c.0.s8 %v2618
        %v2620 = vlaneseq
        %v2621 = vshrl.u32 %v2620, 7
        %v2622 = vsub.s32 %v2619, %v2621
        %v2623 = vrot.slane %v2609, %v2622
        %v2624 = vcombine.low %v2591, %v2607
        %v2625 = vcombine.high %v2591, %v2607
        %v2627 = vunpack.c.l.s4 1934713408
        %v2628 = vunpack.c.0.s8 %v2627
        %v2629 = vlaneseq
        %v2630 = vshrl.u32 %v2629, 7
        %v2631 = vsub.s32 %v2628, %v2630
        %v2632 = vrot.slane %v2624, %v2631
        %v2634 = vunpack.c.l.s4 1934713408
        %v2635 = vunpack.c.0.s8 %v2634
        %v2636 = vlaneseq
        %v2637 = vshrl.u32 %v2636, 7
        %v2638 = vsub.s32 %v2635, %v2637
        %v2639 = vrot.slane %v2625, %v2638
        %v2640 = vcombine.high %v2616, 0.0
        %v2641 = vcombine.high %v2623, 0.0
        %v2642 = vcombine.high %v2632, 0.0
        %v2643 = vcombine.high %v2639, 0.0
        %2644 = vrot.lane.b32.xlu0 %v2561, 96
        %v2645 = vpop.permute.xlu0 %2644
        %2646 = vrot.lane.b32.xlu0 %v2568, 96
        %v2647 = vpop.permute.xlu0 %2646
        %2648 = vrot.lane.b32.xlu0 %v2571, 96
        %v2649 = vpop.permute.xlu0 %2648
        %2650 = vrot.lane.b32.xlu0 %v2574, 96
        %v2651 = vpop.permute.xlu0 %2650
        %v2656 = vcombine.low %v2645, %v2649
        %v2657 = vcombine.high %v2645, %v2649
        %v2659 = vunpack.c.l.s4 1983009808
        %v2660 = vunpack.c.0.s8 %v2659
        %v2661 = vlaneseq
        %v2662 = vshrl.u32 %v2661, 7
        %v2663 = vsub.s32 %v2660, %v2662
        %v2664 = vrot.slane %v2656, %v2663
        %v2666 = vunpack.c.l.s4 1983009808
        %v2667 = vunpack.c.0.s8 %v2666
        %v2668 = vlaneseq
        %v2669 = vshrl.u32 %v2668, 7
        %v2670 = vsub.s32 %v2667, %v2669
        %v2671 = vrot.slane %v2657, %v2670
        %v2672 = vcombine.low %v2647, %v2651
        %v2673 = vcombine.high %v2647, %v2651
        %v2675 = vunpack.c.l.s4 1983009808
        %v2676 = vunpack.c.0.s8 %v2675
        %v2677 = vlaneseq
        %v2678 = vshrl.u32 %v2677, 7
        %v2679 = vsub.s32 %v2676, %v2678
        %v2680 = vrot.slane %v2672, %v2679
        %v2682 = vunpack.c.l.s4 1983009808
        %v2683 = vunpack.c.0.s8 %v2682
        %v2684 = vlaneseq
        %v2685 = vshrl.u32 %v2684, 7
        %v2686 = vsub.s32 %v2683, %v2685
        %v2687 = vrot.slane %v2673, %v2686
        %v2688 = vcombine.low %v2664, %v2680
        %v2689 = vcombine.high %v2664, %v2680
        %v2691 = vunpack.c.l.s4 1934713408
        %v2692 = vunpack.c.0.s8 %v2691
        %v2693 = vlaneseq
        %v2694 = vshrl.u32 %v2693, 7
        %v2695 = vsub.s32 %v2692, %v2694
        %v2696 = vrot.slane %v2688, %v2695
        %v2698 = vunpack.c.l.s4 1934713408
        %v2699 = vunpack.c.0.s8 %v2698
        %v2700 = vlaneseq
        %v2701 = vshrl.u32 %v2700, 7
        %v2702 = vsub.s32 %v2699, %v2701
        %v2703 = vrot.slane %v2689, %v2702
        %v2704 = vcombine.low %v2671, %v2687
        %v2705 = vcombine.high %v2671, %v2687
        %v2707 = vunpack.c.l.s4 1934713408
        %v2708 = vunpack.c.0.s8 %v2707
        %v2709 = vlaneseq
        %v2710 = vshrl.u32 %v2709, 7
        %v2711 = vsub.s32 %v2708, %v2710
        %v2712 = vrot.slane %v2704, %v2711
        %v2714 = vunpack.c.l.s4 1934713408
        %v2715 = vunpack.c.0.s8 %v2714
        %v2716 = vlaneseq
        %v2717 = vshrl.u32 %v2716, 7
        %v2718 = vsub.s32 %v2715, %v2717
        %v2719 = vrot.slane %v2705, %v2718
        %v2720 = vcombine.high %v2696, 0.0
        %v2721 = vcombine.high %v2703, 0.0
        %v2722 = vcombine.high %v2712, 0.0
        %v2723 = vcombine.high %v2719, 0.0
        %2724 = vrot.lane.b32.xlu0 %v2561, 64
        %v2725 = vpop.permute.xlu0 %2724
        %2726 = vrot.lane.b32.xlu0 %v2568, 64
        %v2727 = vpop.permute.xlu0 %2726
        %2728 = vrot.lane.b32.xlu0 %v2571, 64
        %v2729 = vpop.permute.xlu0 %2728
        %2730 = vrot.lane.b32.xlu0 %v2574, 64
        %v2731 = vpop.permute.xlu0 %2730
        %v2736 = vcombine.low %v2725, %v2729
        %v2737 = vcombine.high %v2725, %v2729
        %v2739 = vunpack.c.l.s4 1983009808
        %v2740 = vunpack.c.0.s8 %v2739
        %v2741 = vlaneseq
        %v2742 = vshrl.u32 %v2741, 7
        %v2743 = vsub.s32 %v2740, %v2742
        %v2744 = vrot.slane %v2736, %v2743
        %v2746 = vunpack.c.l.s4 1983009808
        %v2747 = vunpack.c.0.s8 %v2746
        %v2748 = vlaneseq
        %v2749 = vshrl.u32 %v2748, 7
        %v2750 = vsub.s32 %v2747, %v2749
        %v2751 = vrot.slane %v2737, %v2750
        %v2752 = vcombine.low %v2727, %v2731
        %v2753 = vcombine.high %v2727, %v2731
        %v2755 = vunpack.c.l.s4 1983009808
        %v2756 = vunpack.c.0.s8 %v2755
        %v2757 = vlaneseq
        %v2758 = vshrl.u32 %v2757, 7
        %v2759 = vsub.s32 %v2756, %v2758
        %v2760 = vrot.slane %v2752, %v2759
        %v2762 = vunpack.c.l.s4 1983009808
        %v2763 = vunpack.c.0.s8 %v2762
        %v2764 = vlaneseq
        %v2765 = vshrl.u32 %v2764, 7
        %v2766 = vsub.s32 %v2763, %v2765
        %v2767 = vrot.slane %v2753, %v2766
        %v2768 = vcombine.low %v2744, %v2760
        %v2769 = vcombine.high %v2744, %v2760
        %v2771 = vunpack.c.l.s4 1934713408
        %v2772 = vunpack.c.0.s8 %v2771
        %v2773 = vlaneseq
        %v2774 = vshrl.u32 %v2773, 7
        %v2775 = vsub.s32 %v2772, %v2774
        %v2776 = vrot.slane %v2768, %v2775
        %v2778 = vunpack.c.l.s4 1934713408
        %v2779 = vunpack.c.0.s8 %v2778
        %v2780 = vlaneseq
        %v2781 = vshrl.u32 %v2780, 7
        %v2782 = vsub.s32 %v2779, %v2781
        %v2783 = vrot.slane %v2769, %v2782
        %v2784 = vcombine.low %v2751, %v2767
        %v2785 = vcombine.high %v2751, %v2767
        %v2787 = vunpack.c.l.s4 1934713408
        %v2788 = vunpack.c.0.s8 %v2787
        %v2789 = vlaneseq
        %v2790 = vshrl.u32 %v2789, 7
        %v2791 = vsub.s32 %v2788, %v2790
        %v2792 = vrot.slane %v2784, %v2791
        %v2794 = vunpack.c.l.s4 1934713408
        %v2795 = vunpack.c.0.s8 %v2794
        %v2796 = vlaneseq
        %v2797 = vshrl.u32 %v2796, 7
        %v2798 = vsub.s32 %v2795, %v2797
        %v2799 = vrot.slane %v2785, %v2798
        %v2800 = vcombine.high %v2776, 0.0
        %v2801 = vcombine.high %v2783, 0.0
        %v2802 = vcombine.high %v2792, 0.0
        %v2803 = vcombine.high %v2799, 0.0
        %v2804 = vpack.c.bf16 %v2616, %v2616
        %v2805 = vpack.c.bf16 %v2640, %v2640
        %v2806 = vpack.c.bf16 %v2623, %v2623
        %v2807 = vpack.c.bf16 %v2641, %v2641
        %v2808 = vpack.c.bf16 %v2632, %v2632
        %v2809 = vpack.c.bf16 %v2642, %v2642
        %v2810 = vpack.c.bf16 %v2639, %v2639
        %v2811 = vpack.c.bf16 %v2643, %v2643
        %v2812 = vpack.c.bf16 %v2696, %v2696
        %v2813 = vpack.c.bf16 %v2720, %v2720
        %v2814 = vpack.c.bf16 %v2703, %v2703
        %v2815 = vpack.c.bf16 %v2721, %v2721
        %v2816 = vpack.c.bf16 %v2712, %v2712
        %v2817 = vpack.c.bf16 %v2722, %v2722
        %v2818 = vpack.c.bf16 %v2719, %v2719
        %v2819 = vpack.c.bf16 %v2723, %v2723
        %v2820 = vcombine.low %v2804, %v2808
        %v2822 = vunpack.c.l.s4 1983009808
        %v2823 = vunpack.c.0.s8 %v2822
        %v2824 = vlaneseq
        %v2825 = vshrl.u32 %v2824, 7
        %v2826 = vsub.s32 %v2823, %v2825
        %v2827 = vrot.slane %v2820, %v2826
        %v2828 = vcombine.low %v2806, %v2810
        %v2830 = vunpack.c.l.s4 1983009808
        %v2831 = vunpack.c.0.s8 %v2830
        %v2832 = vlaneseq
        %v2833 = vshrl.u32 %v2832, 7
        %v2834 = vsub.s32 %v2831, %v2833
        %v2835 = vrot.slane %v2828, %v2834
        %v2836 = vcombine.low %v2827, %v2835
        %v2838 = vunpack.c.l.s4 1934713408
        %v2839 = vunpack.c.0.s8 %v2838
        %v2840 = vlaneseq
        %v2841 = vshrl.u32 %v2840, 7
        %v2842 = vsub.s32 %v2839, %v2841
        %v2843 = vrot.slane %v2836, %v2842
        %v2844 = vcombine.high %v2843, 0
        %v2845 = vcombine.low %v2805, %v2809
        %v2847 = vunpack.c.l.s4 1983009808
        %v2848 = vunpack.c.0.s8 %v2847
        %v2849 = vlaneseq
        %v2850 = vshrl.u32 %v2849, 7
        %v2851 = vsub.s32 %v2848, %v2850
        %v2852 = vrot.slane %v2845, %v2851
        %v2853 = vcombine.low %v2807, %v2811
        %v2855 = vunpack.c.l.s4 1983009808
        %v2856 = vunpack.c.0.s8 %v2855
        %v2857 = vlaneseq
        %v2858 = vshrl.u32 %v2857, 7
        %v2859 = vsub.s32 %v2856, %v2858
        %v2860 = vrot.slane %v2853, %v2859
        %v2861 = vcombine.low %v2852, %v2860
        %v2863 = vunpack.c.l.s4 1934713408
        %v2864 = vunpack.c.0.s8 %v2863
        %v2865 = vlaneseq
        %v2866 = vshrl.u32 %v2865, 7
        %v2867 = vsub.s32 %v2864, %v2866
        %v2868 = vrot.slane %v2861, %v2867
        %v2869 = vcombine.high %v2868, 0
        %v2872 = vpack.i.b16 %v2868, %v2843
        %v2873 = vshrl.u32 %v2843, 16
        %v2874 = vshrl.u32 %v2868, 16
        %v2875 = vpack.i.b16 %v2874, %v2873
        %v2878 = vpack.i.b16 %v2869, %v2844
        %v2879 = vshrl.u32 %v2844, 16
        %v2880 = vshrl.u32 %v2869, 16
        %v2881 = vpack.i.b16 %v2880, %v2879
        %2882 = vxpose.xlu0.c.b16.start [1/8] %v2812, 128
        %2883 = vxpose.xlu0.c.b16.cont [2/8] 0, 128
        %2884 = vxpose.xlu0.c.b16.cont [3/8] 0, 128
        %2885 = vxpose.xlu0.c.b16.cont [4/8] 0, 128
        %2886 = vxpose.xlu0.c.b16.cont [5/8] 0, 128
        %2887 = vxpose.xlu0.c.b16.cont [6/8] 0, 128
        %2888 = vxpose.xlu0.c.b16.cont [7/8] 0, 128
        %2889 = vxpose.xlu0.c.b16.end [8/8] 0, 128
        %v2890 = vpop.trf.xlu0
        %v2891 = vpop.trf.xlu0
        %v2892 = vpop.trf.xlu0
        %v2893 = vpop.trf.xlu0
        %v2894 = vpop.trf.xlu0
        %v2895 = vpop.trf.xlu0
        %v2896 = vpop.trf.xlu0
        %v2897 = vpop.trf.xlu0
        %2898 = vxpose.xlu0.c.b16.start [1/8] %v2813, 128
        %2899 = vxpose.xlu0.c.b16.cont [2/8] 0, 128
        %2900 = vxpose.xlu0.c.b16.cont [3/8] 0, 128
        %2901 = vxpose.xlu0.c.b16.cont [4/8] 0, 128
        %2902 = vxpose.xlu0.c.b16.cont [5/8] 0, 128
        %2903 = vxpose.xlu0.c.b16.cont [6/8] 0, 128
        %2904 = vxpose.xlu0.c.b16.cont [7/8] 0, 128
        %2905 = vxpose.xlu0.c.b16.end [8/8] 0, 128
        %v2906 = vpop.trf.xlu0
        %v2907 = vpop.trf.xlu0
        %v2908 = vpop.trf.xlu0
        %v2909 = vpop.trf.xlu0
        %v2910 = vpop.trf.xlu0
        %v2911 = vpop.trf.xlu0
        %v2912 = vpop.trf.xlu0
        %v2913 = vpop.trf.xlu0
        %2914 = vxpose.xlu0.c.b16.start [1/8] %v2814, 128
        %2915 = vxpose.xlu0.c.b16.cont [2/8] 0, 128
        %2916 = vxpose.xlu0.c.b16.cont [3/8] 0, 128
        %2917 = vxpose.xlu0.c.b16.cont [4/8] 0, 128
        %2918 = vxpose.xlu0.c.b16.cont [5/8] 0, 128
        %2919 = vxpose.xlu0.c.b16.cont [6/8] 0, 128
        %2920 = vxpose.xlu0.c.b16.cont [7/8] 0, 128
        %2921 = vxpose.xlu0.c.b16.end [8/8] 0, 128
        %v2922 = vpop.trf.xlu0
        %v2923 = vpop.trf.xlu0
        %v2924 = vpop.trf.xlu0
        %v2925 = vpop.trf.xlu0
        %v2926 = vpop.trf.xlu0
        %v2927 = vpop.trf.xlu0
        %v2928 = vpop.trf.xlu0
        %v2929 = vpop.trf.xlu0
        %2930 = vxpose.xlu0.c.b16.start [1/8] %v2815, 128
        %2931 = vxpose.xlu0.c.b16.cont [2/8] 0, 128
        %2932 = vxpose.xlu0.c.b16.cont [3/8] 0, 128
        %2933 = vxpose.xlu0.c.b16.cont [4/8] 0, 128
        %2934 = vxpose.xlu0.c.b16.cont [5/8] 0, 128
        %2935 = vxpose.xlu0.c.b16.cont [6/8] 0, 128
        %2936 = vxpose.xlu0.c.b16.cont [7/8] 0, 128
        %2937 = vxpose.xlu0.c.b16.end [8/8] 0, 128
        %v2938 = vpop.trf.xlu0
        %v2939 = vpop.trf.xlu0
        %v2940 = vpop.trf.xlu0
        %v2941 = vpop.trf.xlu0
        %v2942 = vpop.trf.xlu0
        %v2943 = vpop.trf.xlu0
        %v2944 = vpop.trf.xlu0
        %v2945 = vpop.trf.xlu0
        %2946 = vxpose.xlu0.c.b16.start [1/8] %v2816, 128
        %2947 = vxpose.xlu0.c.b16.cont [2/8] 0, 128
        %2948 = vxpose.xlu0.c.b16.cont [3/8] 0, 128
        %2949 = vxpose.xlu0.c.b16.cont [4/8] 0, 128
        %2950 = vxpose.xlu0.c.b16.cont [5/8] 0, 128
        %2951 = vxpose.xlu0.c.b16.cont [6/8] 0, 128
        %2952 = vxpose.xlu0.c.b16.cont [7/8] 0, 128
        %2953 = vxpose.xlu0.c.b16.end [8/8] 0, 128
        %v2954 = vpop.trf.xlu0
        %v2955 = vpop.trf.xlu0
        %v2956 = vpop.trf.xlu0
        %v2957 = vpop.trf.xlu0
        %v2958 = vpop.trf.xlu0
        %v2959 = vpop.trf.xlu0
        %v2960 = vpop.trf.xlu0
        %v2961 = vpop.trf.xlu0
        %2962 = vxpose.xlu0.c.b16.start [1/8] %v2817, 128
        %2963 = vxpose.xlu0.c.b16.cont [2/8] 0, 128
        %2964 = vxpose.xlu0.c.b16.cont [3/8] 0, 128
        %2965 = vxpose.xlu0.c.b16.cont [4/8] 0, 128
        %2966 = vxpose.xlu0.c.b16.cont [5/8] 0, 128
        %2967 = vxpose.xlu0.c.b16.cont [6/8] 0, 128
        %2968 = vxpose.xlu0.c.b16.cont [7/8] 0, 128
        %2969 = vxpose.xlu0.c.b16.end [8/8] 0, 128
        %v2970 = vpop.trf.xlu0
        %v2971 = vpop.trf.xlu0
        %v2972 = vpop.trf.xlu0
        %v2973 = vpop.trf.xlu0
        %v2974 = vpop.trf.xlu0
        %v2975 = vpop.trf.xlu0
        %v2976 = vpop.trf.xlu0
        %v2977 = vpop.trf.xlu0
        %2978 = vxpose.xlu0.c.b16.start [1/8] %v2818, 128
        %2979 = vxpose.xlu0.c.b16.cont [2/8] 0, 128
        %2980 = vxpose.xlu0.c.b16.cont [3/8] 0, 128
        %2981 = vxpose.xlu0.c.b16.cont [4/8] 0, 128
        %2982 = vxpose.xlu0.c.b16.cont [5/8] 0, 128
        %2983 = vxpose.xlu0.c.b16.cont [6/8] 0, 128
        %2984 = vxpose.xlu0.c.b16.cont [7/8] 0, 128
        %2985 = vxpose.xlu0.c.b16.end [8/8] 0, 128
        %v2986 = vpop.trf.xlu0
        %v2987 = vpop.trf.xlu0
        %v2988 = vpop.trf.xlu0
        %v2989 = vpop.trf.xlu0
        %v2990 = vpop.trf.xlu0
        %v2991 = vpop.trf.xlu0
        %v2992 = vpop.trf.xlu0
        %v2993 = vpop.trf.xlu0
        %2994 = vxpose.xlu0.c.b16.start [1/8] %v2819, 128
        %2995 = vxpose.xlu0.c.b16.cont [2/8] 0, 128
        %2996 = vxpose.xlu0.c.b16.cont [3/8] 0, 128
        %2997 = vxpose.xlu0.c.b16.cont [4/8] 0, 128
        %2998 = vxpose.xlu0.c.b16.cont [5/8] 0, 128
        %2999 = vxpose.xlu0.c.b16.cont [6/8] 0, 128
        %3000 = vxpose.xlu0.c.b16.cont [7/8] 0, 128
        %3001 = vxpose.xlu0.c.b16.end [8/8] 0, 128
        %v3002 = vpop.trf.xlu0
        %v3003 = vpop.trf.xlu0
        %v3004 = vpop.trf.xlu0
        %v3005 = vpop.trf.xlu0
        %v3006 = vpop.trf.xlu0
        %v3007 = vpop.trf.xlu0
        %v3008 = vpop.trf.xlu0
        %v3009 = vpop.trf.xlu0
        %v3010 = vcombine.low %v2890, %v2954
        %v3012 = vunpack.c.l.s4 1983009808
        %v3013 = vunpack.c.0.s8 %v3012
        %v3014 = vlaneseq
        %v3015 = vshrl.u32 %v3014, 7
        %v3016 = vsub.s32 %v3013, %v3015
        %v3017 = vrot.slane %v3010, %v3016
        %v3018 = vcombine.low %v2922, %v2986
        %v3020 = vunpack.c.l.s4 1983009808
        %v3021 = vunpack.c.0.s8 %v3020
        %v3022 = vlaneseq
        %v3023 = vshrl.u32 %v3022, 7
        %v3024 = vsub.s32 %v3021, %v3023
        %v3025 = vrot.slane %v3018, %v3024
        %v3026 = vcombine.low %v3017, %v3025
        %v3027 = vcombine.high %v3017, %v3025
        %v3029 = vunpack.c.l.s4 1934713408
        %v3030 = vunpack.c.0.s8 %v3029
        %v3031 = vlaneseq
        %v3032 = vshrl.u32 %v3031, 7
        %v3033 = vsub.s32 %v3030, %v3032
        %v3034 = vrot.slane %v3026, %v3033
        %v3036 = vunpack.c.l.s4 1934713408
        %v3037 = vunpack.c.0.s8 %v3036
        %v3038 = vlaneseq
        %v3039 = vshrl.u32 %v3038, 7
        %v3040 = vsub.s32 %v3037, %v3039
        %v3041 = vrot.slane %v3027, %v3040
        %v3042 = vcombine.high %v3034, 0
        %v3043 = vcombine.high %v3041, 0
        %v3044 = vcombine.low %v2906, %v2970
        %v3046 = vunpack.c.l.s4 1983009808
        %v3047 = vunpack.c.0.s8 %v3046
        %v3048 = vlaneseq
        %v3049 = vshrl.u32 %v3048, 7
        %v3050 = vsub.s32 %v3047, %v3049
        %v3051 = vrot.slane %v3044, %v3050
        %v3052 = vcombine.low %v2938, %v3002
        %v3054 = vunpack.c.l.s4 1983009808
        %v3055 = vunpack.c.0.s8 %v3054
        %v3056 = vlaneseq
        %v3057 = vshrl.u32 %v3056, 7
        %v3058 = vsub.s32 %v3055, %v3057
        %v3059 = vrot.slane %v3052, %v3058
        %v3060 = vcombine.low %v3051, %v3059
        %v3061 = vcombine.high %v3051, %v3059
        %v3063 = vunpack.c.l.s4 1934713408
        %v3064 = vunpack.c.0.s8 %v3063
        %v3065 = vlaneseq
        %v3066 = vshrl.u32 %v3065, 7
        %v3067 = vsub.s32 %v3064, %v3066
        %v3068 = vrot.slane %v3060, %v3067
        %v3070 = vunpack.c.l.s4 1934713408
        %v3071 = vunpack.c.0.s8 %v3070
        %v3072 = vlaneseq
        %v3073 = vshrl.u32 %v3072, 7
        %v3074 = vsub.s32 %v3071, %v3073
        %v3075 = vrot.slane %v3061, %v3074
        %v3076 = vcombine.high %v3068, 0
        %v3077 = vcombine.high %v3075, 0
        %v3080 = vpack.i.b16 %v3068, %v3034
        %v3082 = vshrl.u32 %v3034, 16
        %v3083 = vshrl.u32 %v3068, 16
        %v3084 = vpack.i.b16 %v3083, %v3082
        %v3088 = vpack.i.b16 %v3076, %v3042
        %v3090 = vshrl.u32 %v3042, 16
        %v3091 = vshrl.u32 %v3076, 16
        %v3092 = vpack.i.b16 %v3091, %v3090
        %v3096 = vpack.i.b16 %v3075, %v3041
        %v3098 = vshrl.u32 %v3041, 16
        %v3099 = vshrl.u32 %v3075, 16
        %v3100 = vpack.i.b16 %v3099, %v3098
        %v3104 = vpack.i.b16 %v3077, %v3043
        %v3106 = vshrl.u32 %v3043, 16
        %v3107 = vshrl.u32 %v3077, 16
        %v3108 = vpack.i.b16 %v3107, %v3106
        %3110 = vxpose.xlu0.c.b16.start [1/8] %v3080, 128
        %3111 = vxpose.xlu0.c.b16.cont [2/8] 0, 128
        %3112 = vxpose.xlu0.c.b16.cont [3/8] 0, 128
        %3113 = vxpose.xlu0.c.b16.cont [4/8] 0, 128
        %3114 = vxpose.xlu0.c.b16.cont [5/8] 0, 128
        %3115 = vxpose.xlu0.c.b16.cont [6/8] 0, 128
        %3116 = vxpose.xlu0.c.b16.cont [7/8] 0, 128
        %3117 = vxpose.xlu0.c.b16.end [8/8] 0, 128
        %v3118 = vpop.trf.xlu0
        %v3119 = vpop.trf.xlu0
        %v3120 = vpop.trf.xlu0
        %v3121 = vpop.trf.xlu0
        %v3122 = vpop.trf.xlu0
        %v3123 = vpop.trf.xlu0
        %v3124 = vpop.trf.xlu0
        %v3125 = vpop.trf.xlu0
        %3126 = vxpose.xlu0.c.b16.start [1/8] %v3084, 128
        %3127 = vxpose.xlu0.c.b16.cont [2/8] 0, 128
        %3128 = vxpose.xlu0.c.b16.cont [3/8] 0, 128
        %3129 = vxpose.xlu0.c.b16.cont [4/8] 0, 128
        %3130 = vxpose.xlu0.c.b16.cont [5/8] 0, 128
        %3131 = vxpose.xlu0.c.b16.cont [6/8] 0, 128
        %3132 = vxpose.xlu0.c.b16.cont [7/8] 0, 128
        %3133 = vxpose.xlu0.c.b16.end [8/8] 0, 128
        %v3134 = vpop.trf.xlu0
        %v3135 = vpop.trf.xlu0
        %v3136 = vpop.trf.xlu0
        %v3137 = vpop.trf.xlu0
        %v3138 = vpop.trf.xlu0
        %v3139 = vpop.trf.xlu0
        %v3140 = vpop.trf.xlu0
        %v3141 = vpop.trf.xlu0
        %3142 = vxpose.xlu0.c.b16.start [1/8] %v3088, 128
        %3143 = vxpose.xlu0.c.b16.cont [2/8] 0, 128
        %3144 = vxpose.xlu0.c.b16.cont [3/8] 0, 128
        %3145 = vxpose.xlu0.c.b16.cont [4/8] 0, 128
        %3146 = vxpose.xlu0.c.b16.cont [5/8] 0, 128
        %3147 = vxpose.xlu0.c.b16.cont [6/8] 0, 128
        %3148 = vxpose.xlu0.c.b16.cont [7/8] 0, 128
        %3149 = vxpose.xlu0.c.b16.end [8/8] 0, 128
        %v3150 = vpop.trf.xlu0
        %v3151 = vpop.trf.xlu0
        %v3152 = vpop.trf.xlu0
        %v3153 = vpop.trf.xlu0
        %v3154 = vpop.trf.xlu0
        %v3155 = vpop.trf.xlu0
        %v3156 = vpop.trf.xlu0
        %v3157 = vpop.trf.xlu0
        %3158 = vxpose.xlu0.c.b16.start [1/8] %v3092, 128
        %3159 = vxpose.xlu0.c.b16.cont [2/8] 0, 128
        %3160 = vxpose.xlu0.c.b16.cont [3/8] 0, 128
        %3161 = vxpose.xlu0.c.b16.cont [4/8] 0, 128
        %3162 = vxpose.xlu0.c.b16.cont [5/8] 0, 128
        %3163 = vxpose.xlu0.c.b16.cont [6/8] 0, 128
        %3164 = vxpose.xlu0.c.b16.cont [7/8] 0, 128
        %3165 = vxpose.xlu0.c.b16.end [8/8] 0, 128
        %v3166 = vpop.trf.xlu0
        %v3167 = vpop.trf.xlu0
        %v3168 = vpop.trf.xlu0
        %v3169 = vpop.trf.xlu0
        %v3170 = vpop.trf.xlu0
        %v3171 = vpop.trf.xlu0
        %v3172 = vpop.trf.xlu0
        %v3173 = vpop.trf.xlu0
        %3174 = vxpose.xlu0.c.b16.start [1/8] %v3096, 128
        %3175 = vxpose.xlu0.c.b16.cont [2/8] 0, 128
        %3176 = vxpose.xlu0.c.b16.cont [3/8] 0, 128
        %3177 = vxpose.xlu0.c.b16.cont [4/8] 0, 128
        %3178 = vxpose.xlu0.c.b16.cont [5/8] 0, 128
        %3179 = vxpose.xlu0.c.b16.cont [6/8] 0, 128
        %3180 = vxpose.xlu0.c.b16.cont [7/8] 0, 128
        %3181 = vxpose.xlu0.c.b16.end [8/8] 0, 128
        %v3182 = vpop.trf.xlu0
        %v3183 = vpop.trf.xlu0
        %v3184 = vpop.trf.xlu0
        %v3185 = vpop.trf.xlu0
        %v3186 = vpop.trf.xlu0
        %v3187 = vpop.trf.xlu0
        %v3188 = vpop.trf.xlu0
        %v3189 = vpop.trf.xlu0
        %3190 = vxpose.xlu0.c.b16.start [1/8] %v3100, 128
        %3191 = vxpose.xlu0.c.b16.cont [2/8] 0, 128
        %3192 = vxpose.xlu0.c.b16.cont [3/8] 0, 128
        %3193 = vxpose.xlu0.c.b16.cont [4/8] 0, 128
        %3194 = vxpose.xlu0.c.b16.cont [5/8] 0, 128
        %3195 = vxpose.xlu0.c.b16.cont [6/8] 0, 128
        %3196 = vxpose.xlu0.c.b16.cont [7/8] 0, 128
        %3197 = vxpose.xlu0.c.b16.end [8/8] 0, 128
        %v3198 = vpop.trf.xlu0
        %v3199 = vpop.trf.xlu0
        %v3200 = vpop.trf.xlu0
        %v3201 = vpop.trf.xlu0
        %v3202 = vpop.trf.xlu0
        %v3203 = vpop.trf.xlu0
        %v3204 = vpop.trf.xlu0
        %v3205 = vpop.trf.xlu0
        %3206 = vxpose.xlu0.c.b16.start [1/8] %v3104, 128
        %3207 = vxpose.xlu0.c.b16.cont [2/8] 0, 128
        %3208 = vxpose.xlu0.c.b16.cont [3/8] 0, 128
        %3209 = vxpose.xlu0.c.b16.cont [4/8] 0, 128
        %3210 = vxpose.xlu0.c.b16.cont [5/8] 0, 128
        %3211 = vxpose.xlu0.c.b16.cont [6/8] 0, 128
        %3212 = vxpose.xlu0.c.b16.cont [7/8] 0, 128
        %3213 = vxpose.xlu0.c.b16.end [8/8] 0, 128
        %v3214 = vpop.trf.xlu0
        %v3215 = vpop.trf.xlu0
        %v3216 = vpop.trf.xlu0
        %v3217 = vpop.trf.xlu0
        %v3218 = vpop.trf.xlu0
        %v3219 = vpop.trf.xlu0
        %v3220 = vpop.trf.xlu0
        %v3221 = vpop.trf.xlu0
        %3222 = vxpose.xlu0.c.b16.start [1/8] %v3108, 128
        %3223 = vxpose.xlu0.c.b16.cont [2/8] 0, 128
        %3224 = vxpose.xlu0.c.b16.cont [3/8] 0, 128
        %3225 = vxpose.xlu0.c.b16.cont [4/8] 0, 128
        %3226 = vxpose.xlu0.c.b16.cont [5/8] 0, 128
        %3227 = vxpose.xlu0.c.b16.cont [6/8] 0, 128
        %3228 = vxpose.xlu0.c.b16.cont [7/8] 0, 128
        %3229 = vxpose.xlu0.c.b16.end [8/8] 0, 128
        %v3230 = vpop.trf.xlu0
        %v3231 = vpop.trf.xlu0
        %v3232 = vpop.trf.xlu0
        %v3233 = vpop.trf.xlu0
        %v3234 = vpop.trf.xlu0
        %v3235 = vpop.trf.xlu0
        %v3236 = vpop.trf.xlu0
        %v3237 = vpop.trf.xlu0
        %v3238 = vcombine.low %v3118, %v3182
        %v3240 = vunpack.c.l.s4 1983009808
        %v3241 = vunpack.c.0.s8 %v3240
        %v3242 = vlaneseq
        %v3243 = vshrl.u32 %v3242, 7
        %v3244 = vsub.s32 %v3241, %v3243
        %v3245 = vrot.slane %v3238, %v3244
        %v3246 = vcombine.low %v3150, %v3214
        %v3248 = vunpack.c.l.s4 1983009808
        %v3249 = vunpack.c.0.s8 %v3248
        %v3250 = vlaneseq
        %v3251 = vshrl.u32 %v3250, 7
        %v3252 = vsub.s32 %v3249, %v3251
        %v3253 = vrot.slane %v3246, %v3252
        %v3254 = vcombine.low %v3245, %v3253
        %v3256 = vunpack.c.l.s4 1934713408
        %v3257 = vunpack.c.0.s8 %v3256
        %v3258 = vlaneseq
        %v3259 = vshrl.u32 %v3258, 7
        %v3260 = vsub.s32 %v3257, %v3259
        %v3261 = vrot.slane %v3254, %v3260
        %v3262 = vcombine.high %v3261, 0
        %v3263 = vcombine.low %v3134, %v3198
        %v3265 = vunpack.c.l.s4 1983009808
        %v3266 = vunpack.c.0.s8 %v3265
        %v3267 = vlaneseq
        %v3268 = vshrl.u32 %v3267, 7
        %v3269 = vsub.s32 %v3266, %v3268
        %v3270 = vrot.slane %v3263, %v3269
        %v3271 = vcombine.low %v3166, %v3230
        %v3273 = vunpack.c.l.s4 1983009808
        %v3274 = vunpack.c.0.s8 %v3273
        %v3275 = vlaneseq
        %v3276 = vshrl.u32 %v3275, 7
        %v3277 = vsub.s32 %v3274, %v3276
        %v3278 = vrot.slane %v3271, %v3277
        %v3279 = vcombine.low %v3270, %v3278
        %v3281 = vunpack.c.l.s4 1934713408
        %v3282 = vunpack.c.0.s8 %v3281
        %v3283 = vlaneseq
        %v3284 = vshrl.u32 %v3283, 7
        %v3285 = vsub.s32 %v3282, %v3284
        %v3286 = vrot.slane %v3279, %v3285
        %v3287 = vcombine.high %v3286, 0
        %v3290 = vpack.i.b16 %v3286, %v3261
        %v3291 = vshrl.u32 %v3261, 16
        %v3292 = vshrl.u32 %v3286, 16
        %v3293 = vpack.i.b16 %v3292, %v3291
        %v3296 = vpack.i.b16 %v3287, %v3262
        %v3297 = vshrl.u32 %v3262, 16
        %v3298 = vshrl.u32 %v3287, 16
        %v3299 = vpack.i.b16 %v3298, %v3297
        %v3301 = vsel %vm1151, %v2872, 0
        %v3304 = vsel %vm1155, %v3290, 0
        %3306 = vmatprep.subr.bf16.mxu0 0
        %3307 = vmatpush1.bf16.msra.mxu0 %v3304
        %3308 = vmatprep.subr.bf16.mxu0 0
        %3309 = vmatpush1.bf16.msra.mxu0 0
        %3310 = vmatprep.subr.bf16.mxu0 0
        %3311 = vmatpush1.bf16.msra.mxu0 0
        %3312 = vmatprep.subr.bf16.mxu0 0
        %3313 = vmatpush1.bf16.msra.mxu0 0
        %3314 = vmatprep.subr.bf16.mxu0 0
        %3315 = vmatpush1.bf16.msra.mxu0 0
        %3316 = vmatprep.subr.bf16.mxu0 0
        %3317 = vmatpush1.bf16.msra.mxu0 0
        %3318 = vmatprep.subr.bf16.mxu0 0
        %3319 = vmatpush1.bf16.msra.mxu0 0
        %3320 = vmatprep.subr.bf16.mxu0 0
        %3321 = vmatpush1.bf16.msra.mxu0 0
        %3322 = vmatprep.subr.bf16.mxu0 0
        %3323 = vmatpush1.bf16.msra.mxu0 0
        %3324 = vmatprep.subr.bf16.mxu0 0
        %3325 = vmatpush1.bf16.msra.mxu0 0
        %3326 = vmatprep.subr.bf16.mxu0 0
        %3327 = vmatpush1.bf16.msra.mxu0 0
        %3328 = vmatprep.subr.bf16.mxu0 0
        %3329 = vmatpush1.bf16.msra.mxu0 0
        %3330 = vmatprep.subr.bf16.mxu0 0
        %3331 = vmatpush1.bf16.msra.mxu0 0
        %3332 = vmatprep.subr.bf16.mxu0 0
        %3333 = vmatpush1.bf16.msra.mxu0 0
        %3334 = vmatprep.subr.bf16.mxu0 0
        %3335 = vmatpush1.bf16.msra.mxu0 0
        %3336 = vmatprep.subr.bf16.mxu0 0
        %3337 = vmatpush1.bf16.msra.mxu0 0
        %3338 = vmatprep.mubr.bf16.mxu0 0
        %3339 = vmatmul.mubr.bf16.gmra.mrb[0].mxu0 %v3301
        %v3340 = vpop.f32.mrb[0].mxu0
        %v3341 = vadd.f32 0.0, %v3340
        %v3342 = vpop.f32.mrb[0].mxu0
        %v3343 = vpop.f32.mrb[0].mxu0
        %v3344 = vpop.f32.mrb[0].mxu0
        %3345 = vdwg.mxu0
        %v3347 = vsel %vm1151, %v2875, 0
        %v3350 = vsel %vm1155, %v3293, 0
        %3352 = vmatprep.subr.bf16.mxu0 0
        %3353 = vmatpush1.bf16.msra.mxu0 %v3350
        %3354 = vmatprep.subr.bf16.mxu0 0
        %3355 = vmatpush1.bf16.msra.mxu0 0
        %3356 = vmatprep.subr.bf16.mxu0 0
        %3357 = vmatpush1.bf16.msra.mxu0 0
        %3358 = vmatprep.subr.bf16.mxu0 0
        %3359 = vmatpush1.bf16.msra.mxu0 0
        %3360 = vmatprep.subr.bf16.mxu0 0
        %3361 = vmatpush1.bf16.msra.mxu0 0
        %3362 = vmatprep.subr.bf16.mxu0 0
        %3363 = vmatpush1.bf16.msra.mxu0 0
        %3364 = vmatprep.subr.bf16.mxu0 0
        %3365 = vmatpush1.bf16.msra.mxu0 0
        %3366 = vmatprep.subr.bf16.mxu0 0
        %3367 = vmatpush1.bf16.msra.mxu0 0
        %3368 = vmatprep.subr.bf16.mxu0 0
        %3369 = vmatpush1.bf16.msra.mxu0 0
        %3370 = vmatprep.subr.bf16.mxu0 0
        %3371 = vmatpush1.bf16.msra.mxu0 0
        %3372 = vmatprep.subr.bf16.mxu0 0
        %3373 = vmatpush1.bf16.msra.mxu0 0
        %3374 = vmatprep.subr.bf16.mxu0 0
        %3375 = vmatpush1.bf16.msra.mxu0 0
        %3376 = vmatprep.subr.bf16.mxu0 0
        %3377 = vmatpush1.bf16.msra.mxu0 0
        %3378 = vmatprep.subr.bf16.mxu0 0
        %3379 = vmatpush1.bf16.msra.mxu0 0
        %3380 = vmatprep.subr.bf16.mxu0 0
        %3381 = vmatpush1.bf16.msra.mxu0 0
        %3382 = vmatprep.subr.bf16.mxu0 0
        %3383 = vmatpush1.bf16.msra.mxu0 0
        %3384 = vmatprep.mubr.bf16.mxu0 0
        %3385 = vmatmul.mubr.bf16.gmra.mrb[0].mxu0 %v3347
        %v3386 = vpop.f32.mrb[0].mxu0
        %v3387 = vadd.f32 0.0, %v3386
        %v3388 = vpop.f32.mrb[0].mxu0
        %v3389 = vpop.f32.mrb[0].mxu0
        %v3390 = vpop.f32.mrb[0].mxu0
        %3391 = vdwg.mxu0
        %v3393 = vsel %vm1151, %v2878, 0
        %v3396 = vsel %vm1155, %v3296, 0
        %3398 = vmatprep.subr.bf16.mxu0 0
        %3399 = vmatpush1.bf16.msra.mxu0 %v3396
        %3400 = vmatprep.subr.bf16.mxu0 0
        %3401 = vmatpush1.bf16.msra.mxu0 0
        %3402 = vmatprep.subr.bf16.mxu0 0
        %3403 = vmatpush1.bf16.msra.mxu0 0
        %3404 = vmatprep.subr.bf16.mxu0 0
        %3405 = vmatpush1.bf16.msra.mxu0 0
        %3406 = vmatprep.subr.bf16.mxu0 0
        %3407 = vmatpush1.bf16.msra.mxu0 0
        %3408 = vmatprep.subr.bf16.mxu0 0
        %3409 = vmatpush1.bf16.msra.mxu0 0
        %3410 = vmatprep.subr.bf16.mxu0 0
        %3411 = vmatpush1.bf16.msra.mxu0 0
        %3412 = vmatprep.subr.bf16.mxu0 0
        %3413 = vmatpush1.bf16.msra.mxu0 0
        %3414 = vmatprep.subr.bf16.mxu0 0
        %3415 = vmatpush1.bf16.msra.mxu0 0
        %3416 = vmatprep.subr.bf16.mxu0 0
        %3417 = vmatpush1.bf16.msra.mxu0 0
        %3418 = vmatprep.subr.bf16.mxu0 0
        %3419 = vmatpush1.bf16.msra.mxu0 0
        %3420 = vmatprep.subr.bf16.mxu0 0
        %3421 = vmatpush1.bf16.msra.mxu0 0
        %3422 = vmatprep.subr.bf16.mxu0 0
        %3423 = vmatpush1.bf16.msra.mxu0 0
        %3424 = vmatprep.subr.bf16.mxu0 0
        %3425 = vmatpush1.bf16.msra.mxu0 0
        %3426 = vmatprep.subr.bf16.mxu0 0
        %3427 = vmatpush1.bf16.msra.mxu0 0
        %3428 = vmatprep.subr.bf16.mxu0 0
        %3429 = vmatpush1.bf16.msra.mxu0 0
        %3430 = vmatprep.mubr.bf16.mxu0 0
        %3431 = vmatmul.mubr.bf16.gmra.mrb[0].mxu0 %v3393
        %v3432 = vpop.f32.mrb[0].mxu0
        %v3433 = vadd.f32 0.0, %v3432
        %v3434 = vpop.f32.mrb[0].mxu0
        %v3435 = vpop.f32.mrb[0].mxu0
        %v3436 = vpop.f32.mrb[0].mxu0
        %3437 = vdwg.mxu0
        %v3439 = vsel %vm1151, %v2881, 0
        %v3442 = vsel %vm1155, %v3299, 0
        %3444 = vmatprep.subr.bf16.mxu0 0
        %3445 = vmatpush1.bf16.msra.mxu0 %v3442
        %3446 = vmatprep.subr.bf16.mxu0 0
        %3447 = vmatpush1.bf16.msra.mxu0 0
        %3448 = vmatprep.subr.bf16.mxu0 0
        %3449 = vmatpush1.bf16.msra.mxu0 0
        %3450 = vmatprep.subr.bf16.mxu0 0
        %3451 = vmatpush1.bf16.msra.mxu0 0
        %3452 = vmatprep.subr.bf16.mxu0 0
        %3453 = vmatpush1.bf16.msra.mxu0 0
        %3454 = vmatprep.subr.bf16.mxu0 0
        %3455 = vmatpush1.bf16.msra.mxu0 0
        %3456 = vmatprep.subr.bf16.mxu0 0
        %3457 = vmatpush1.bf16.msra.mxu0 0
        %3458 = vmatprep.subr.bf16.mxu0 0
        %3459 = vmatpush1.bf16.msra.mxu0 0
        %3460 = vmatprep.subr.bf16.mxu0 0
        %3461 = vmatpush1.bf16.msra.mxu0 0
        %3462 = vmatprep.subr.bf16.mxu0 0
        %3463 = vmatpush1.bf16.msra.mxu0 0
        %3464 = vmatprep.subr.bf16.mxu0 0
        %3465 = vmatpush1.bf16.msra.mxu0 0
        %3466 = vmatprep.subr.bf16.mxu0 0
        %3467 = vmatpush1.bf16.msra.mxu0 0
        %3468 = vmatprep.subr.bf16.mxu0 0
        %3469 = vmatpush1.bf16.msra.mxu0 0
        %3470 = vmatprep.subr.bf16.mxu0 0
        %3471 = vmatpush1.bf16.msra.mxu0 0
        %3472 = vmatprep.subr.bf16.mxu0 0
        %3473 = vmatpush1.bf16.msra.mxu0 0
        %3474 = vmatprep.subr.bf16.mxu0 0
        %3475 = vmatpush1.bf16.msra.mxu0 0
        %3476 = vmatprep.mubr.bf16.mxu0 0
        %3477 = vmatmul.mubr.bf16.gmra.mrb[0].mxu0 %v3439
        %v3478 = vpop.f32.mrb[0].mxu0
        %v3479 = vadd.f32 0.0, %v3478
        %v3480 = vpop.f32.mrb[0].mxu0
        %v3481 = vpop.f32.mrb[0].mxu0
        %v3482 = vpop.f32.mrb[0].mxu0
        %3483 = vdwg.mxu0
        %v3484 = vsel %vm1151, %v3341, -inf
        %3485 = vmax.xlane.f32.xlu0 %v3484
        %v3486 = vpop.xlane.xlu0 %3485
        %v3487 = vsel %vm1151, %v3387, -inf
        %3488 = vmax.xlane.f32.xlu0 %v3487
        %v3489 = vpop.xlane.xlu0 %3488
        %v3490 = vsel %vm1151, %v3433, -inf
        %3491 = vmax.xlane.f32.xlu0 %v3490
        %v3492 = vpop.xlane.xlu0 %3491
        %v3493 = vsel %vm1151, %v3479, -inf
        %3494 = vmax.xlane.f32.xlu0 %v3493
        %v3495 = vpop.xlane.xlu0 %3494
        %v3496 = vsub.f32 %v3341, %v3486
        %v3497 = vsub.f32 %v3387, %v3489
        %v3498 = vsub.f32 %v3433, %v3492
        %v3499 = vsub.f32 %v3479, %v3495
        %v3500 = vmul.f32 %v3496, 1.442695
        %v3501 = vpow.pop %v3500
        %v3502 = vmul.f32 %v3497, 1.442695
        %v3503 = vpow.pop %v3502
        %v3504 = vmul.f32 %v3498, 1.442695
        %v3505 = vpow.pop %v3504
        %v3506 = vmul.f32 %v3499, 1.442695
        %v3507 = vpow.pop %v3506
        %v3508 = vsel %vm1151, %v3501, 0.0
        %3509 = vadd.xlane.f32.xlu0 %v3508
        %v3510 = vpop.xlane.xlu0 %3509
        %v3511 = vsel %vm1151, %v3503, 0.0
        %3512 = vadd.xlane.f32.xlu0 %v3511
        %v3513 = vpop.xlane.xlu0 %3512
        %v3514 = vsel %vm1151, %v3505, 0.0
        %3515 = vadd.xlane.f32.xlu0 %v3514
        %v3516 = vpop.xlane.xlu0 %3515
        %v3517 = vsel %vm1151, %v3507, 0.0
        %3518 = vadd.xlane.f32.xlu0 %v3517
        %v3519 = vpop.xlane.xlu0 %3518
        %v3520 = vrcp.pop %v3510
        %v3521 = vrcp.pop %v3513
        %v3522 = vrcp.pop %v3516
        %v3523 = vrcp.pop %v3519
        %v3524 = vmul.f32 %v3501, %v3520
        %v3525 = vmul.f32 %v3503, %v3521
        %v3526 = vmul.f32 %v3505, %v3522
        %v3527 = vmul.f32 %v3507, %v3523
        %v3528 = vpack.c.bf16 %v3524, %v3524
        %v3529 = vpack.c.bf16 %v3525, %v3525
        %v3530 = vpack.c.bf16 %v3526, %v3526
        %v3531 = vpack.c.bf16 %v3527, %v3527
        %v3532 = vpack.c.bf16 %v2776, %v2776
        %v3533 = vpack.c.bf16 %v2800, %v2800
        %v3534 = vpack.c.bf16 %v2783, %v2783
        %v3535 = vpack.c.bf16 %v2801, %v2801
        %v3536 = vpack.c.bf16 %v2792, %v2792
        %v3537 = vpack.c.bf16 %v2802, %v2802
        %v3538 = vpack.c.bf16 %v2799, %v2799
        %v3539 = vpack.c.bf16 %v2803, %v2803
        %3540 = vxpose.xlu0.c.b16.start [1/8] %v3532, 128
        %3541 = vxpose.xlu0.c.b16.cont [2/8] 0, 128
        %3542 = vxpose.xlu0.c.b16.cont [3/8] 0, 128
        %3543 = vxpose.xlu0.c.b16.cont [4/8] 0, 128
        %3544 = vxpose.xlu0.c.b16.cont [5/8] 0, 128
        %3545 = vxpose.xlu0.c.b16.cont [6/8] 0, 128
        %3546 = vxpose.xlu0.c.b16.cont [7/8] 0, 128
        %3547 = vxpose.xlu0.c.b16.end [8/8] 0, 128
        %v3548 = vpop.trf.xlu0
        %v3549 = vpop.trf.xlu0
        %v3550 = vpop.trf.xlu0
        %v3551 = vpop.trf.xlu0
        %v3552 = vpop.trf.xlu0
        %v3553 = vpop.trf.xlu0
        %v3554 = vpop.trf.xlu0
        %v3555 = vpop.trf.xlu0
        %3556 = vxpose.xlu0.c.b16.start [1/8] %v3533, 128
        %3557 = vxpose.xlu0.c.b16.cont [2/8] 0, 128
        %3558 = vxpose.xlu0.c.b16.cont [3/8] 0, 128
        %3559 = vxpose.xlu0.c.b16.cont [4/8] 0, 128
        %3560 = vxpose.xlu0.c.b16.cont [5/8] 0, 128
        %3561 = vxpose.xlu0.c.b16.cont [6/8] 0, 128
        %3562 = vxpose.xlu0.c.b16.cont [7/8] 0, 128
        %3563 = vxpose.xlu0.c.b16.end [8/8] 0, 128
        %v3564 = vpop.trf.xlu0
        %v3565 = vpop.trf.xlu0
        %v3566 = vpop.trf.xlu0
        %v3567 = vpop.trf.xlu0
        %v3568 = vpop.trf.xlu0
        %v3569 = vpop.trf.xlu0
        %v3570 = vpop.trf.xlu0
        %v3571 = vpop.trf.xlu0
        %3572 = vxpose.xlu0.c.b16.start [1/8] %v3534, 128
        %3573 = vxpose.xlu0.c.b16.cont [2/8] 0, 128
        %3574 = vxpose.xlu0.c.b16.cont [3/8] 0, 128
        %3575 = vxpose.xlu0.c.b16.cont [4/8] 0, 128
        %3576 = vxpose.xlu0.c.b16.cont [5/8] 0, 128
        %3577 = vxpose.xlu0.c.b16.cont [6/8] 0, 128
        %3578 = vxpose.xlu0.c.b16.cont [7/8] 0, 128
        %3579 = vxpose.xlu0.c.b16.end [8/8] 0, 128
        %v3580 = vpop.trf.xlu0
        %v3581 = vpop.trf.xlu0
        %v3582 = vpop.trf.xlu0
        %v3583 = vpop.trf.xlu0
        %v3584 = vpop.trf.xlu0
        %v3585 = vpop.trf.xlu0
        %v3586 = vpop.trf.xlu0
        %v3587 = vpop.trf.xlu0
        %3588 = vxpose.xlu0.c.b16.start [1/8] %v3535, 128
        %3589 = vxpose.xlu0.c.b16.cont [2/8] 0, 128
        %3590 = vxpose.xlu0.c.b16.cont [3/8] 0, 128
        %3591 = vxpose.xlu0.c.b16.cont [4/8] 0, 128
        %3592 = vxpose.xlu0.c.b16.cont [5/8] 0, 128
        %3593 = vxpose.xlu0.c.b16.cont [6/8] 0, 128
        %3594 = vxpose.xlu0.c.b16.cont [7/8] 0, 128
        %3595 = vxpose.xlu0.c.b16.end [8/8] 0, 128
        %v3596 = vpop.trf.xlu0
        %v3597 = vpop.trf.xlu0
        %v3598 = vpop.trf.xlu0
        %v3599 = vpop.trf.xlu0
        %v3600 = vpop.trf.xlu0
        %v3601 = vpop.trf.xlu0
        %v3602 = vpop.trf.xlu0
        %v3603 = vpop.trf.xlu0
        %3604 = vxpose.xlu0.c.b16.start [1/8] %v3536, 128
        %3605 = vxpose.xlu0.c.b16.cont [2/8] 0, 128
        %3606 = vxpose.xlu0.c.b16.cont [3/8] 0, 128
        %3607 = vxpose.xlu0.c.b16.cont [4/8] 0, 128
        %3608 = vxpose.xlu0.c.b16.cont [5/8] 0, 128
        %3609 = vxpose.xlu0.c.b16.cont [6/8] 0, 128
        %3610 = vxpose.xlu0.c.b16.cont [7/8] 0, 128
        %3611 = vxpose.xlu0.c.b16.end [8/8] 0, 128
        %v3612 = vpop.trf.xlu0
        %v3613 = vpop.trf.xlu0
        %v3614 = vpop.trf.xlu0
        %v3615 = vpop.trf.xlu0
        %v3616 = vpop.trf.xlu0
        %v3617 = vpop.trf.xlu0
        %v3618 = vpop.trf.xlu0
        %v3619 = vpop.trf.xlu0
        %3620 = vxpose.xlu0.c.b16.start [1/8] %v3537, 128
        %3621 = vxpose.xlu0.c.b16.cont [2/8] 0, 128
        %3622 = vxpose.xlu0.c.b16.cont [3/8] 0, 128
        %3623 = vxpose.xlu0.c.b16.cont [4/8] 0, 128
        %3624 = vxpose.xlu0.c.b16.cont [5/8] 0, 128
        %3625 = vxpose.xlu0.c.b16.cont [6/8] 0, 128
        %3626 = vxpose.xlu0.c.b16.cont [7/8] 0, 128
        %3627 = vxpose.xlu0.c.b16.end [8/8] 0, 128
        %v3628 = vpop.trf.xlu0
        %v3629 = vpop.trf.xlu0
        %v3630 = vpop.trf.xlu0
        %v3631 = vpop.trf.xlu0
        %v3632 = vpop.trf.xlu0
        %v3633 = vpop.trf.xlu0
        %v3634 = vpop.trf.xlu0
        %v3635 = vpop.trf.xlu0
        %3636 = vxpose.xlu0.c.b16.start [1/8] %v3538, 128
        %3637 = vxpose.xlu0.c.b16.cont [2/8] 0, 128
        %3638 = vxpose.xlu0.c.b16.cont [3/8] 0, 128
        %3639 = vxpose.xlu0.c.b16.cont [4/8] 0, 128
        %3640 = vxpose.xlu0.c.b16.cont [5/8] 0, 128
        %3641 = vxpose.xlu0.c.b16.cont [6/8] 0, 128
        %3642 = vxpose.xlu0.c.b16.cont [7/8] 0, 128
        %3643 = vxpose.xlu0.c.b16.end [8/8] 0, 128
        %v3644 = vpop.trf.xlu0
        %v3645 = vpop.trf.xlu0
        %v3646 = vpop.trf.xlu0
        %v3647 = vpop.trf.xlu0
        %v3648 = vpop.trf.xlu0
        %v3649 = vpop.trf.xlu0
        %v3650 = vpop.trf.xlu0
        %v3651 = vpop.trf.xlu0
        %3652 = vxpose.xlu0.c.b16.start [1/8] %v3539, 128
        %3653 = vxpose.xlu0.c.b16.cont [2/8] 0, 128
        %3654 = vxpose.xlu0.c.b16.cont [3/8] 0, 128
        %3655 = vxpose.xlu0.c.b16.cont [4/8] 0, 128
        %3656 = vxpose.xlu0.c.b16.cont [5/8] 0, 128
        %3657 = vxpose.xlu0.c.b16.cont [6/8] 0, 128
        %3658 = vxpose.xlu0.c.b16.cont [7/8] 0, 128
        %3659 = vxpose.xlu0.c.b16.end [8/8] 0, 128
        %v3660 = vpop.trf.xlu0
        %v3661 = vpop.trf.xlu0
        %v3662 = vpop.trf.xlu0
        %v3663 = vpop.trf.xlu0
        %v3664 = vpop.trf.xlu0
        %v3665 = vpop.trf.xlu0
        %v3666 = vpop.trf.xlu0
        %v3667 = vpop.trf.xlu0
        %v3668 = vcombine.low %v3548, %v3612
        %v3670 = vunpack.c.l.s4 1983009808
        %v3671 = vunpack.c.0.s8 %v3670
        %v3672 = vlaneseq
        %v3673 = vshrl.u32 %v3672, 7
        %v3674 = vsub.s32 %v3671, %v3673
        %v3675 = vrot.slane %v3668, %v3674
        %v3676 = vcombine.low %v3580, %v3644
        %v3678 = vunpack.c.l.s4 1983009808
        %v3679 = vunpack.c.0.s8 %v3678
        %v3680 = vlaneseq
        %v3681 = vshrl.u32 %v3680, 7
        %v3682 = vsub.s32 %v3679, %v3681
        %v3683 = vrot.slane %v3676, %v3682
        %v3684 = vcombine.low %v3675, %v3683
        %v3685 = vcombine.high %v3675, %v3683
        %v3687 = vunpack.c.l.s4 1934713408
        %v3688 = vunpack.c.0.s8 %v3687
        %v3689 = vlaneseq
        %v3690 = vshrl.u32 %v3689, 7
        %v3691 = vsub.s32 %v3688, %v3690
        %v3692 = vrot.slane %v3684, %v3691
        %v3694 = vunpack.c.l.s4 1934713408
        %v3695 = vunpack.c.0.s8 %v3694
        %v3696 = vlaneseq
        %v3697 = vshrl.u32 %v3696, 7
        %v3698 = vsub.s32 %v3695, %v3697
        %v3699 = vrot.slane %v3685, %v3698
        %v3700 = vcombine.high %v3692, 0
        %v3701 = vcombine.high %v3699, 0
        %v3702 = vcombine.low %v3564, %v3628
        %v3704 = vunpack.c.l.s4 1983009808
        %v3705 = vunpack.c.0.s8 %v3704
        %v3706 = vlaneseq
        %v3707 = vshrl.u32 %v3706, 7
        %v3708 = vsub.s32 %v3705, %v3707
        %v3709 = vrot.slane %v3702, %v3708
        %v3710 = vcombine.low %v3596, %v3660
        %v3712 = vunpack.c.l.s4 1983009808
        %v3713 = vunpack.c.0.s8 %v3712
        %v3714 = vlaneseq
        %v3715 = vshrl.u32 %v3714, 7
        %v3716 = vsub.s32 %v3713, %v3715
        %v3717 = vrot.slane %v3710, %v3716
        %v3718 = vcombine.low %v3709, %v3717
        %v3719 = vcombine.high %v3709, %v3717
        %v3721 = vunpack.c.l.s4 1934713408
        %v3722 = vunpack.c.0.s8 %v3721
        %v3723 = vlaneseq
        %v3724 = vshrl.u32 %v3723, 7
        %v3725 = vsub.s32 %v3722, %v3724
        %v3726 = vrot.slane %v3718, %v3725
        %v3728 = vunpack.c.l.s4 1934713408
        %v3729 = vunpack.c.0.s8 %v3728
        %v3730 = vlaneseq
        %v3731 = vshrl.u32 %v3730, 7
        %v3732 = vsub.s32 %v3729, %v3731
        %v3733 = vrot.slane %v3719, %v3732
        %v3734 = vcombine.high %v3726, 0
        %v3735 = vcombine.high %v3733, 0
        %v3738 = vpack.i.b16 %v3726, %v3692
        %v3740 = vshrl.u32 %v3692, 16
        %v3741 = vshrl.u32 %v3726, 16
        %v3742 = vpack.i.b16 %v3741, %v3740
        %v3746 = vpack.i.b16 %v3734, %v3700
        %v3748 = vshrl.u32 %v3700, 16
        %v3749 = vshrl.u32 %v3734, 16
        %v3750 = vpack.i.b16 %v3749, %v3748
        %v3754 = vpack.i.b16 %v3733, %v3699
        %v3756 = vshrl.u32 %v3699, 16
        %v3757 = vshrl.u32 %v3733, 16
        %v3758 = vpack.i.b16 %v3757, %v3756
        %v3762 = vpack.i.b16 %v3735, %v3701
        %v3764 = vshrl.u32 %v3701, 16
        %v3765 = vshrl.u32 %v3735, 16
        %v3766 = vpack.i.b16 %v3765, %v3764
        %3768 = vxpose.xlu0.c.b16.start [1/8] %v3738, 128
        %3769 = vxpose.xlu0.c.b16.cont [2/8] 0, 128
        %3770 = vxpose.xlu0.c.b16.cont [3/8] 0, 128
        %3771 = vxpose.xlu0.c.b16.cont [4/8] 0, 128
        %3772 = vxpose.xlu0.c.b16.cont [5/8] 0, 128
        %3773 = vxpose.xlu0.c.b16.cont [6/8] 0, 128
        %3774 = vxpose.xlu0.c.b16.cont [7/8] 0, 128
        %3775 = vxpose.xlu0.c.b16.end [8/8] 0, 128
        %v3776 = vpop.trf.xlu0
        %v3777 = vpop.trf.xlu0
        %v3778 = vpop.trf.xlu0
        %v3779 = vpop.trf.xlu0
        %v3780 = vpop.trf.xlu0
        %v3781 = vpop.trf.xlu0
        %v3782 = vpop.trf.xlu0
        %v3783 = vpop.trf.xlu0
        %3784 = vxpose.xlu0.c.b16.start [1/8] %v3742, 128
        %3785 = vxpose.xlu0.c.b16.cont [2/8] 0, 128
        %3786 = vxpose.xlu0.c.b16.cont [3/8] 0, 128
        %3787 = vxpose.xlu0.c.b16.cont [4/8] 0, 128
        %3788 = vxpose.xlu0.c.b16.cont [5/8] 0, 128
        %3789 = vxpose.xlu0.c.b16.cont [6/8] 0, 128
        %3790 = vxpose.xlu0.c.b16.cont [7/8] 0, 128
        %3791 = vxpose.xlu0.c.b16.end [8/8] 0, 128
        %v3792 = vpop.trf.xlu0
        %v3793 = vpop.trf.xlu0
        %v3794 = vpop.trf.xlu0
        %v3795 = vpop.trf.xlu0
        %v3796 = vpop.trf.xlu0
        %v3797 = vpop.trf.xlu0
        %v3798 = vpop.trf.xlu0
        %v3799 = vpop.trf.xlu0
        %3800 = vxpose.xlu0.c.b16.start [1/8] %v3746, 128
        %3801 = vxpose.xlu0.c.b16.cont [2/8] 0, 128
        %3802 = vxpose.xlu0.c.b16.cont [3/8] 0, 128
        %3803 = vxpose.xlu0.c.b16.cont [4/8] 0, 128
        %3804 = vxpose.xlu0.c.b16.cont [5/8] 0, 128
        %3805 = vxpose.xlu0.c.b16.cont [6/8] 0, 128
        %3806 = vxpose.xlu0.c.b16.cont [7/8] 0, 128
        %3807 = vxpose.xlu0.c.b16.end [8/8] 0, 128
        %v3808 = vpop.trf.xlu0
        %v3809 = vpop.trf.xlu0
        %v3810 = vpop.trf.xlu0
        %v3811 = vpop.trf.xlu0
        %v3812 = vpop.trf.xlu0
        %v3813 = vpop.trf.xlu0
        %v3814 = vpop.trf.xlu0
        %v3815 = vpop.trf.xlu0
        %3816 = vxpose.xlu0.c.b16.start [1/8] %v3750, 128
        %3817 = vxpose.xlu0.c.b16.cont [2/8] 0, 128
        %3818 = vxpose.xlu0.c.b16.cont [3/8] 0, 128
        %3819 = vxpose.xlu0.c.b16.cont [4/8] 0, 128
        %3820 = vxpose.xlu0.c.b16.cont [5/8] 0, 128
        %3821 = vxpose.xlu0.c.b16.cont [6/8] 0, 128
        %3822 = vxpose.xlu0.c.b16.cont [7/8] 0, 128
        %3823 = vxpose.xlu0.c.b16.end [8/8] 0, 128
        %v3824 = vpop.trf.xlu0
        %v3825 = vpop.trf.xlu0
        %v3826 = vpop.trf.xlu0
        %v3827 = vpop.trf.xlu0
        %v3828 = vpop.trf.xlu0
        %v3829 = vpop.trf.xlu0
        %v3830 = vpop.trf.xlu0
        %v3831 = vpop.trf.xlu0
        %3832 = vxpose.xlu0.c.b16.start [1/8] %v3754, 128
        %3833 = vxpose.xlu0.c.b16.cont [2/8] 0, 128
        %3834 = vxpose.xlu0.c.b16.cont [3/8] 0, 128
        %3835 = vxpose.xlu0.c.b16.cont [4/8] 0, 128
        %3836 = vxpose.xlu0.c.b16.cont [5/8] 0, 128
        %3837 = vxpose.xlu0.c.b16.cont [6/8] 0, 128
        %3838 = vxpose.xlu0.c.b16.cont [7/8] 0, 128
        %3839 = vxpose.xlu0.c.b16.end [8/8] 0, 128
        %v3840 = vpop.trf.xlu0
        %v3841 = vpop.trf.xlu0
        %v3842 = vpop.trf.xlu0
        %v3843 = vpop.trf.xlu0
        %v3844 = vpop.trf.xlu0
        %v3845 = vpop.trf.xlu0
        %v3846 = vpop.trf.xlu0
        %v3847 = vpop.trf.xlu0
        %3848 = vxpose.xlu0.c.b16.start [1/8] %v3758, 128
        %3849 = vxpose.xlu0.c.b16.cont [2/8] 0, 128
        %3850 = vxpose.xlu0.c.b16.cont [3/8] 0, 128
        %3851 = vxpose.xlu0.c.b16.cont [4/8] 0, 128
        %3852 = vxpose.xlu0.c.b16.cont [5/8] 0, 128
        %3853 = vxpose.xlu0.c.b16.cont [6/8] 0, 128
        %3854 = vxpose.xlu0.c.b16.cont [7/8] 0, 128
        %3855 = vxpose.xlu0.c.b16.end [8/8] 0, 128
        %v3856 = vpop.trf.xlu0
        %v3857 = vpop.trf.xlu0
        %v3858 = vpop.trf.xlu0
        %v3859 = vpop.trf.xlu0
        %v3860 = vpop.trf.xlu0
        %v3861 = vpop.trf.xlu0
        %v3862 = vpop.trf.xlu0
        %v3863 = vpop.trf.xlu0
        %3864 = vxpose.xlu0.c.b16.start [1/8] %v3762, 128
        %3865 = vxpose.xlu0.c.b16.cont [2/8] 0, 128
        %3866 = vxpose.xlu0.c.b16.cont [3/8] 0, 128
        %3867 = vxpose.xlu0.c.b16.cont [4/8] 0, 128
        %3868 = vxpose.xlu0.c.b16.cont [5/8] 0, 128
        %3869 = vxpose.xlu0.c.b16.cont [6/8] 0, 128
        %3870 = vxpose.xlu0.c.b16.cont [7/8] 0, 128
        %3871 = vxpose.xlu0.c.b16.end [8/8] 0, 128
        %v3872 = vpop.trf.xlu0
        %v3873 = vpop.trf.xlu0
        %v3874 = vpop.trf.xlu0
        %v3875 = vpop.trf.xlu0
        %v3876 = vpop.trf.xlu0
        %v3877 = vpop.trf.xlu0
        %v3878 = vpop.trf.xlu0
        %v3879 = vpop.trf.xlu0
        %3880 = vxpose.xlu0.c.b16.start [1/8] %v3766, 128
        %3881 = vxpose.xlu0.c.b16.cont [2/8] 0, 128
        %3882 = vxpose.xlu0.c.b16.cont [3/8] 0, 128
        %3883 = vxpose.xlu0.c.b16.cont [4/8] 0, 128
        %3884 = vxpose.xlu0.c.b16.cont [5/8] 0, 128
        %3885 = vxpose.xlu0.c.b16.cont [6/8] 0, 128
        %3886 = vxpose.xlu0.c.b16.cont [7/8] 0, 128
        %3887 = vxpose.xlu0.c.b16.end [8/8] 0, 128
        %v3888 = vpop.trf.xlu0
        %v3889 = vpop.trf.xlu0
        %v3890 = vpop.trf.xlu0
        %v3891 = vpop.trf.xlu0
        %v3892 = vpop.trf.xlu0
        %v3893 = vpop.trf.xlu0
        %v3894 = vpop.trf.xlu0
        %v3895 = vpop.trf.xlu0
        %v3896 = vcombine.low %v3776, %v3840
        %v3898 = vunpack.c.l.s4 1983009808
        %v3899 = vunpack.c.0.s8 %v3898
        %v3900 = vlaneseq
        %v3901 = vshrl.u32 %v3900, 7
        %v3902 = vsub.s32 %v3899, %v3901
        %v3903 = vrot.slane %v3896, %v3902
        %v3904 = vcombine.low %v3808, %v3872
        %v3906 = vunpack.c.l.s4 1983009808
        %v3907 = vunpack.c.0.s8 %v3906
        %v3908 = vlaneseq
        %v3909 = vshrl.u32 %v3908, 7
        %v3910 = vsub.s32 %v3907, %v3909
        %v3911 = vrot.slane %v3904, %v3910
        %v3912 = vcombine.low %v3903, %v3911
        %v3914 = vunpack.c.l.s4 1934713408
        %v3915 = vunpack.c.0.s8 %v3914
        %v3916 = vlaneseq
        %v3917 = vshrl.u32 %v3916, 7
        %v3918 = vsub.s32 %v3915, %v3917
        %v3919 = vrot.slane %v3912, %v3918
        %v3920 = vcombine.high %v3919, 0
        %v3921 = vcombine.low %v3792, %v3856
        %v3923 = vunpack.c.l.s4 1983009808
        %v3924 = vunpack.c.0.s8 %v3923
        %v3925 = vlaneseq
        %v3926 = vshrl.u32 %v3925, 7
        %v3927 = vsub.s32 %v3924, %v3926
        %v3928 = vrot.slane %v3921, %v3927
        %v3929 = vcombine.low %v3824, %v3888
        %v3931 = vunpack.c.l.s4 1983009808
        %v3932 = vunpack.c.0.s8 %v3931
        %v3933 = vlaneseq
        %v3934 = vshrl.u32 %v3933, 7
        %v3935 = vsub.s32 %v3932, %v3934
        %v3936 = vrot.slane %v3929, %v3935
        %v3937 = vcombine.low %v3928, %v3936
        %v3939 = vunpack.c.l.s4 1934713408
        %v3940 = vunpack.c.0.s8 %v3939
        %v3941 = vlaneseq
        %v3942 = vshrl.u32 %v3941, 7
        %v3943 = vsub.s32 %v3940, %v3942
        %v3944 = vrot.slane %v3937, %v3943
        %v3945 = vcombine.high %v3944, 0
        %v3948 = vpack.i.b16 %v3944, %v3919
        %v3949 = vshrl.u32 %v3919, 16
        %v3950 = vshrl.u32 %v3944, 16
        %v3951 = vpack.i.b16 %v3950, %v3949
        %v3954 = vpack.i.b16 %v3945, %v3920
        %v3955 = vshrl.u32 %v3920, 16
        %v3956 = vshrl.u32 %v3945, 16
        %v3957 = vpack.i.b16 %v3956, %v3955
        %v3959 = vsel %vm1151, %v3948, 0
        %v3962 = vsel %vm1151, %v3528, 0
        %3964 = vmatprep.subr.bf16.mxu0 0
        %3965 = vmatpush1.bf16.xpose.msra.mxu0 %v3962
        %3966 = vmatprep.subr.bf16.mxu0 0
        %3967 = vmatpush1.bf16.xpose.msra.mxu0 0
        %3968 = vmatprep.subr.bf16.mxu0 0
        %3969 = vmatpush1.bf16.xpose.msra.mxu0 0
        %3970 = vmatprep.subr.bf16.mxu0 0
        %3971 = vmatpush1.bf16.xpose.msra.mxu0 0
        %3972 = vmatprep.subr.bf16.mxu0 0
        %3973 = vmatpush1.bf16.xpose.msra.mxu0 0
        %3974 = vmatprep.subr.bf16.mxu0 0
        %3975 = vmatpush1.bf16.xpose.msra.mxu0 0
        %3976 = vmatprep.subr.bf16.mxu0 0
        %3977 = vmatpush1.bf16.xpose.msra.mxu0 0
        %3978 = vmatprep.subr.bf16.mxu0 0
        %3979 = vmatpush1.bf16.xpose.msra.mxu0 0
        %3980 = vmatprep.subr.bf16.mxu0 0
        %3981 = vmatpush1.bf16.xpose.msra.mxu0 0
        %3982 = vmatprep.subr.bf16.mxu0 0
        %3983 = vmatpush1.bf16.xpose.msra.mxu0 0
        %3984 = vmatprep.subr.bf16.mxu0 0
        %3985 = vmatpush1.bf16.xpose.msra.mxu0 0
        %3986 = vmatprep.subr.bf16.mxu0 0
        %3987 = vmatpush1.bf16.xpose.msra.mxu0 0
        %3988 = vmatprep.subr.bf16.mxu0 0
        %3989 = vmatpush1.bf16.xpose.msra.mxu0 0
        %3990 = vmatprep.subr.bf16.mxu0 0
        %3991 = vmatpush1.bf16.xpose.msra.mxu0 0
        %3992 = vmatprep.subr.bf16.mxu0 0
        %3993 = vmatpush1.bf16.xpose.msra.mxu0 0
        %3994 = vmatprep.subr.bf16.mxu0 0
        %3995 = vmatpush1.bf16.xpose.msra.mxu0 0
        %3996 = vmatprep.mubr.bf16.mxu0 0
        %3997 = vmatmul.mubr.bf16.gmra.mrb[0].mxu0 %v3959
        %v3998 = vpop.f32.mrb[0].mxu0
        %v3999 = vadd.f32 0.0, %v3998
        %v4000 = vpop.f32.mrb[0].mxu0
        %v4001 = vpop.f32.mrb[0].mxu0
        %v4002 = vpop.f32.mrb[0].mxu0
        %4003 = vdwg.mxu0
        %v4005 = vsel %vm1151, %v3951, 0
        %v4008 = vsel %vm1151, %v3529, 0
        %4010 = vmatprep.subr.bf16.mxu0 0
        %4011 = vmatpush1.bf16.xpose.msra.mxu0 %v4008
        %4012 = vmatprep.subr.bf16.mxu0 0
        %4013 = vmatpush1.bf16.xpose.msra.mxu0 0
        %4014 = vmatprep.subr.bf16.mxu0 0
        %4015 = vmatpush1.bf16.xpose.msra.mxu0 0
        %4016 = vmatprep.subr.bf16.mxu0 0
        %4017 = vmatpush1.bf16.xpose.msra.mxu0 0
        %4018 = vmatprep.subr.bf16.mxu0 0
        %4019 = vmatpush1.bf16.xpose.msra.mxu0 0
        %4020 = vmatprep.subr.bf16.mxu0 0
        %4021 = vmatpush1.bf16.xpose.msra.mxu0 0
        %4022 = vmatprep.subr.bf16.mxu0 0
        %4023 = vmatpush1.bf16.xpose.msra.mxu0 0
        %4024 = vmatprep.subr.bf16.mxu0 0
        %4025 = vmatpush1.bf16.xpose.msra.mxu0 0
        %4026 = vmatprep.subr.bf16.mxu0 0
        %4027 = vmatpush1.bf16.xpose.msra.mxu0 0
        %4028 = vmatprep.subr.bf16.mxu0 0
        %4029 = vmatpush1.bf16.xpose.msra.mxu0 0
        %4030 = vmatprep.subr.bf16.mxu0 0
        %4031 = vmatpush1.bf16.xpose.msra.mxu0 0
        %4032 = vmatprep.subr.bf16.mxu0 0
        %4033 = vmatpush1.bf16.xpose.msra.mxu0 0
        %4034 = vmatprep.subr.bf16.mxu0 0
        %4035 = vmatpush1.bf16.xpose.msra.mxu0 0
        %4036 = vmatprep.subr.bf16.mxu0 0
        %4037 = vmatpush1.bf16.xpose.msra.mxu0 0
        %4038 = vmatprep.subr.bf16.mxu0 0
        %4039 = vmatpush1.bf16.xpose.msra.mxu0 0
        %4040 = vmatprep.subr.bf16.mxu0 0
        %4041 = vmatpush1.bf16.xpose.msra.mxu0 0
        %4042 = vmatprep.mubr.bf16.mxu0 0
        %4043 = vmatmul.mubr.bf16.gmra.mrb[0].mxu0 %v4005
        %v4044 = vpop.f32.mrb[0].mxu0
        %v4045 = vadd.f32 0.0, %v4044
        %v4046 = vpop.f32.mrb[0].mxu0
        %v4047 = vpop.f32.mrb[0].mxu0
        %v4048 = vpop.f32.mrb[0].mxu0
        %4049 = vdwg.mxu0
        %v4051 = vsel %vm1151, %v3954, 0
        %v4054 = vsel %vm1151, %v3530, 0
        %4056 = vmatprep.subr.bf16.mxu0 0
        %4057 = vmatpush1.bf16.xpose.msra.mxu0 %v4054
        %4058 = vmatprep.subr.bf16.mxu0 0
        %4059 = vmatpush1.bf16.xpose.msra.mxu0 0
        %4060 = vmatprep.subr.bf16.mxu0 0
        %4061 = vmatpush1.bf16.xpose.msra.mxu0 0
        %4062 = vmatprep.subr.bf16.mxu0 0
        %4063 = vmatpush1.bf16.xpose.msra.mxu0 0
        %4064 = vmatprep.subr.bf16.mxu0 0
        %4065 = vmatpush1.bf16.xpose.msra.mxu0 0
        %4066 = vmatprep.subr.bf16.mxu0 0
        %4067 = vmatpush1.bf16.xpose.msra.mxu0 0
        %4068 = vmatprep.subr.bf16.mxu0 0
        %4069 = vmatpush1.bf16.xpose.msra.mxu0 0
        %4070 = vmatprep.subr.bf16.mxu0 0
        %4071 = vmatpush1.bf16.xpose.msra.mxu0 0
        %4072 = vmatprep.subr.bf16.mxu0 0
        %4073 = vmatpush1.bf16.xpose.msra.mxu0 0
        %4074 = vmatprep.subr.bf16.mxu0 0
        %4075 = vmatpush1.bf16.xpose.msra.mxu0 0
        %4076 = vmatprep.subr.bf16.mxu0 0
        %4077 = vmatpush1.bf16.xpose.msra.mxu0 0
        %4078 = vmatprep.subr.bf16.mxu0 0
        %4079 = vmatpush1.bf16.xpose.msra.mxu0 0
        %4080 = vmatprep.subr.bf16.mxu0 0
        %4081 = vmatpush1.bf16.xpose.msra.mxu0 0
        %4082 = vmatprep.subr.bf16.mxu0 0
        %4083 = vmatpush1.bf16.xpose.msra.mxu0 0
        %4084 = vmatprep.subr.bf16.mxu0 0
        %4085 = vmatpush1.bf16.xpose.msra.mxu0 0
        %4086 = vmatprep.subr.bf16.mxu0 0
        %4087 = vmatpush1.bf16.xpose.msra.mxu0 0
        %4088 = vmatprep.mubr.bf16.mxu0 0
        %4089 = vmatmul.mubr.bf16.gmra.mrb[0].mxu0 %v4051
        %v4090 = vpop.f32.mrb[0].mxu0
        %v4091 = vadd.f32 0.0, %v4090
        %v4092 = vpop.f32.mrb[0].mxu0
        %v4093 = vpop.f32.mrb[0].mxu0
        %v4094 = vpop.f32.mrb[0].mxu0
        %4095 = vdwg.mxu0
        %v4097 = vsel %vm1151, %v3957, 0
        %v4100 = vsel %vm1151, %v3531, 0
        %4102 = vmatprep.subr.bf16.mxu0 0
        %4103 = vmatpush1.bf16.xpose.msra.mxu0 %v4100
        %4104 = vmatprep.subr.bf16.mxu0 0
        %4105 = vmatpush1.bf16.xpose.msra.mxu0 0
        %4106 = vmatprep.subr.bf16.mxu0 0
        %4107 = vmatpush1.bf16.xpose.msra.mxu0 0
        %4108 = vmatprep.subr.bf16.mxu0 0
        %4109 = vmatpush1.bf16.xpose.msra.mxu0 0
        %4110 = vmatprep.subr.bf16.mxu0 0
        %4111 = vmatpush1.bf16.xpose.msra.mxu0 0
        %4112 = vmatprep.subr.bf16.mxu0 0
        %4113 = vmatpush1.bf16.xpose.msra.mxu0 0
        %4114 = vmatprep.subr.bf16.mxu0 0
        %4115 = vmatpush1.bf16.xpose.msra.mxu0 0
        %4116 = vmatprep.subr.bf16.mxu0 0
        %4117 = vmatpush1.bf16.xpose.msra.mxu0 0
        %4118 = vmatprep.subr.bf16.mxu0 0
        %4119 = vmatpush1.bf16.xpose.msra.mxu0 0
        %4120 = vmatprep.subr.bf16.mxu0 0
        %4121 = vmatpush1.bf16.xpose.msra.mxu0 0
        %4122 = vmatprep.subr.bf16.mxu0 0
        %4123 = vmatpush1.bf16.xpose.msra.mxu0 0
        %4124 = vmatprep.subr.bf16.mxu0 0
        %4125 = vmatpush1.bf16.xpose.msra.mxu0 0
        %4126 = vmatprep.subr.bf16.mxu0 0
        %4127 = vmatpush1.bf16.xpose.msra.mxu0 0
        %4128 = vmatprep.subr.bf16.mxu0 0
        %4129 = vmatpush1.bf16.xpose.msra.mxu0 0
        %4130 = vmatprep.subr.bf16.mxu0 0
        %4131 = vmatpush1.bf16.xpose.msra.mxu0 0
        %4132 = vmatprep.subr.bf16.mxu0 0
        %4133 = vmatpush1.bf16.xpose.msra.mxu0 0
        %4134 = vmatprep.mubr.bf16.mxu0 0
        %4135 = vmatmul.mubr.bf16.gmra.mrb[0].mxu0 %v4097
        %v4136 = vpop.f32.mrb[0].mxu0
        %v4137 = vadd.f32 0.0, %v4136
        %v4138 = vpop.f32.mrb[0].mxu0
        %v4139 = vpop.f32.mrb[0].mxu0
        %v4140 = vpop.f32.mrb[0].mxu0
        %4141 = vdwg.mxu0
        %4142 = vxpose.xlu0.b32.start [1/16] %v3999, 128
        %4143 = vxpose.xlu0.b32.cont [2/16] 0.0, 128
        %4144 = vxpose.xlu0.b32.cont [3/16] 0.0, 128
        %4145 = vxpose.xlu0.b32.cont [4/16] 0.0, 128
        %4146 = vxpose.xlu0.b32.cont [5/16] 0.0, 128
        %4147 = vxpose.xlu0.b32.cont [6/16] 0.0, 128
        %4148 = vxpose.xlu0.b32.cont [7/16] 0.0, 128
        %4149 = vxpose.xlu0.b32.cont [8/16] 0.0, 128
        %4150 = vxpose.xlu0.b32.cont [9/16] 0.0, 128
        %4151 = vxpose.xlu0.b32.cont [10/16] 0.0, 128
        %4152 = vxpose.xlu0.b32.cont [11/16] 0.0, 128
        %4153 = vxpose.xlu0.b32.cont [12/16] 0.0, 128
        %4154 = vxpose.xlu0.b32.cont [13/16] 0.0, 128
        %4155 = vxpose.xlu0.b32.cont [14/16] 0.0, 128
        %4156 = vxpose.xlu0.b32.cont [15/16] 0.0, 128
        %4157 = vxpose.xlu0.b32.end [16/16] 0.0, 128
        %v4158 = vpop.trf.xlu0
        %v4159 = vpop.trf.xlu0
        %v4160 = vpop.trf.xlu0
        %v4161 = vpop.trf.xlu0
        %v4162 = vpop.trf.xlu0
        %v4163 = vpop.trf.xlu0
        %v4164 = vpop.trf.xlu0
        %v4165 = vpop.trf.xlu0
        %v4166 = vpop.trf.xlu0
        %v4167 = vpop.trf.xlu0
        %v4168 = vpop.trf.xlu0
        %v4169 = vpop.trf.xlu0
        %v4170 = vpop.trf.xlu0
        %v4171 = vpop.trf.xlu0
        %v4172 = vpop.trf.xlu0
        %v4173 = vpop.trf.xlu0
        %4174 = vxpose.xlu0.b32.start [1/16] %v4045, 128
        %4175 = vxpose.xlu0.b32.cont [2/16] 0.0, 128
        %4176 = vxpose.xlu0.b32.cont [3/16] 0.0, 128
        %4177 = vxpose.xlu0.b32.cont [4/16] 0.0, 128
        %4178 = vxpose.xlu0.b32.cont [5/16] 0.0, 128
        %4179 = vxpose.xlu0.b32.cont [6/16] 0.0, 128
        %4180 = vxpose.xlu0.b32.cont [7/16] 0.0, 128
        %4181 = vxpose.xlu0.b32.cont [8/16] 0.0, 128
        %4182 = vxpose.xlu0.b32.cont [9/16] 0.0, 128
        %4183 = vxpose.xlu0.b32.cont [10/16] 0.0, 128
        %4184 = vxpose.xlu0.b32.cont [11/16] 0.0, 128
        %4185 = vxpose.xlu0.b32.cont [12/16] 0.0, 128
        %4186 = vxpose.xlu0.b32.cont [13/16] 0.0, 128
        %4187 = vxpose.xlu0.b32.cont [14/16] 0.0, 128
        %4188 = vxpose.xlu0.b32.cont [15/16] 0.0, 128
        %4189 = vxpose.xlu0.b32.end [16/16] 0.0, 128
        %v4190 = vpop.trf.xlu0
        %v4191 = vpop.trf.xlu0
        %v4192 = vpop.trf.xlu0
        %v4193 = vpop.trf.xlu0
        %v4194 = vpop.trf.xlu0
        %v4195 = vpop.trf.xlu0
        %v4196 = vpop.trf.xlu0
        %v4197 = vpop.trf.xlu0
        %v4198 = vpop.trf.xlu0
        %v4199 = vpop.trf.xlu0
        %v4200 = vpop.trf.xlu0
        %v4201 = vpop.trf.xlu0
        %v4202 = vpop.trf.xlu0
        %v4203 = vpop.trf.xlu0
        %v4204 = vpop.trf.xlu0
        %v4205 = vpop.trf.xlu0
        %4206 = vxpose.xlu0.b32.start [1/16] %v4091, 128
        %4207 = vxpose.xlu0.b32.cont [2/16] 0.0, 128
        %4208 = vxpose.xlu0.b32.cont [3/16] 0.0, 128
        %4209 = vxpose.xlu0.b32.cont [4/16] 0.0, 128
        %4210 = vxpose.xlu0.b32.cont [5/16] 0.0, 128
        %4211 = vxpose.xlu0.b32.cont [6/16] 0.0, 128
        %4212 = vxpose.xlu0.b32.cont [7/16] 0.0, 128
        %4213 = vxpose.xlu0.b32.cont [8/16] 0.0, 128
        %4214 = vxpose.xlu0.b32.cont [9/16] 0.0, 128
        %4215 = vxpose.xlu0.b32.cont [10/16] 0.0, 128
        %4216 = vxpose.xlu0.b32.cont [11/16] 0.0, 128
        %4217 = vxpose.xlu0.b32.cont [12/16] 0.0, 128
        %4218 = vxpose.xlu0.b32.cont [13/16] 0.0, 128
        %4219 = vxpose.xlu0.b32.cont [14/16] 0.0, 128
        %4220 = vxpose.xlu0.b32.cont [15/16] 0.0, 128
        %4221 = vxpose.xlu0.b32.end [16/16] 0.0, 128
        %v4222 = vpop.trf.xlu0
        %v4223 = vpop.trf.xlu0
        %v4224 = vpop.trf.xlu0
        %v4225 = vpop.trf.xlu0
        %v4226 = vpop.trf.xlu0
        %v4227 = vpop.trf.xlu0
        %v4228 = vpop.trf.xlu0
        %v4229 = vpop.trf.xlu0
        %v4230 = vpop.trf.xlu0
        %v4231 = vpop.trf.xlu0
        %v4232 = vpop.trf.xlu0
        %v4233 = vpop.trf.xlu0
        %v4234 = vpop.trf.xlu0
        %v4235 = vpop.trf.xlu0
        %v4236 = vpop.trf.xlu0
        %v4237 = vpop.trf.xlu0
        %4238 = vxpose.xlu0.b32.start [1/16] %v4137, 128
        %4239 = vxpose.xlu0.b32.cont [2/16] 0.0, 128
        %4240 = vxpose.xlu0.b32.cont [3/16] 0.0, 128
        %4241 = vxpose.xlu0.b32.cont [4/16] 0.0, 128
        %4242 = vxpose.xlu0.b32.cont [5/16] 0.0, 128
        %4243 = vxpose.xlu0.b32.cont [6/16] 0.0, 128
        %4244 = vxpose.xlu0.b32.cont [7/16] 0.0, 128
        %4245 = vxpose.xlu0.b32.cont [8/16] 0.0, 128
        %4246 = vxpose.xlu0.b32.cont [9/16] 0.0, 128
        %4247 = vxpose.xlu0.b32.cont [10/16] 0.0, 128
        %4248 = vxpose.xlu0.b32.cont [11/16] 0.0, 128
        %4249 = vxpose.xlu0.b32.cont [12/16] 0.0, 128
        %4250 = vxpose.xlu0.b32.cont [13/16] 0.0, 128
        %4251 = vxpose.xlu0.b32.cont [14/16] 0.0, 128
        %4252 = vxpose.xlu0.b32.cont [15/16] 0.0, 128
        %4253 = vxpose.xlu0.b32.end [16/16] 0.0, 128
        %v4254 = vpop.trf.xlu0
        %v4255 = vpop.trf.xlu0
        %v4256 = vpop.trf.xlu0
        %v4257 = vpop.trf.xlu0
        %v4258 = vpop.trf.xlu0
        %v4259 = vpop.trf.xlu0
        %v4260 = vpop.trf.xlu0
        %v4261 = vpop.trf.xlu0
        %v4262 = vpop.trf.xlu0
        %v4263 = vpop.trf.xlu0
        %v4264 = vpop.trf.xlu0
        %v4265 = vpop.trf.xlu0
        %v4266 = vpop.trf.xlu0
        %v4267 = vpop.trf.xlu0
        %v4268 = vpop.trf.xlu0
        %v4269 = vpop.trf.xlu0
        %v4270 = vcombine.low %v4158, %v4222
        %v4271 = vcombine.high %v4158, %v4222
        %v4273 = vunpack.c.l.s4 1983009808
        %v4274 = vunpack.c.0.s8 %v4273
        %v4275 = vlaneseq
        %v4276 = vshrl.u32 %v4275, 7
        %v4277 = vsub.s32 %v4274, %v4276
        %v4278 = vrot.slane %v4270, %v4277
        %v4280 = vunpack.c.l.s4 1983009808
        %v4281 = vunpack.c.0.s8 %v4280
        %v4282 = vlaneseq
        %v4283 = vshrl.u32 %v4282, 7
        %v4284 = vsub.s32 %v4281, %v4283
        %v4285 = vrot.slane %v4271, %v4284
        %v4286 = vcombine.low %v4190, %v4254
        %v4287 = vcombine.high %v4190, %v4254
        %v4289 = vunpack.c.l.s4 1983009808
        %v4290 = vunpack.c.0.s8 %v4289
        %v4291 = vlaneseq
        %v4292 = vshrl.u32 %v4291, 7
        %v4293 = vsub.s32 %v4290, %v4292
        %v4294 = vrot.slane %v4286, %v4293
        %v4296 = vunpack.c.l.s4 1983009808
        %v4297 = vunpack.c.0.s8 %v4296
        %v4298 = vlaneseq
        %v4299 = vshrl.u32 %v4298, 7
        %v4300 = vsub.s32 %v4297, %v4299
        %v4301 = vrot.slane %v4287, %v4300
        %v4302 = vcombine.low %v4278, %v4294
        %v4303 = vcombine.high %v4278, %v4294
        %v4305 = vunpack.c.l.s4 1934713408
        %v4306 = vunpack.c.0.s8 %v4305
        %v4307 = vlaneseq
        %v4308 = vshrl.u32 %v4307, 7
        %v4309 = vsub.s32 %v4306, %v4308
        %v4310 = vrot.slane %v4302, %v4309
        %v4312 = vunpack.c.l.s4 1934713408
        %v4313 = vunpack.c.0.s8 %v4312
        %v4314 = vlaneseq
        %v4315 = vshrl.u32 %v4314, 7
        %v4316 = vsub.s32 %v4313, %v4315
        %v4317 = vrot.slane %v4303, %v4316
        %v4318 = vcombine.low %v4285, %v4301
        %v4319 = vcombine.high %v4285, %v4301
        %v4321 = vunpack.c.l.s4 1934713408
        %v4322 = vunpack.c.0.s8 %v4321
        %v4323 = vlaneseq
        %v4324 = vshrl.u32 %v4323, 7
        %v4325 = vsub.s32 %v4322, %v4324
        %v4326 = vrot.slane %v4318, %v4325
        %v4328 = vunpack.c.l.s4 1934713408
        %v4329 = vunpack.c.0.s8 %v4328
        %v4330 = vlaneseq
        %v4331 = vshrl.u32 %v4330, 7
        %v4332 = vsub.s32 %v4329, %v4331
        %v4333 = vrot.slane %v4319, %v4332
        %v4334 = vcombine.high %v4310, 0.0
        %v4335 = vcombine.high %v4317, 0.0
        %v4336 = vcombine.high %v4326, 0.0
        %v4337 = vcombine.high %v4333, 0.0
        %v4338 = vcombine.low %v4310, %v4317
        %v4340 = vunpack.c.l.s4 1983009808
        %v4341 = vunpack.c.0.s8 %v4340
        %v4342 = vlaneseq
        %v4343 = vshrl.u32 %v4342, 7
        %v4344 = vsub.s32 %v4341, %v4343
        %v4345 = vrot.slane %v4338, %v4344
        %v4346 = vcombine.low %v4334, %v4335
        %v4348 = vunpack.c.l.s4 1983009808
        %v4349 = vunpack.c.0.s8 %v4348
        %v4350 = vlaneseq
        %v4351 = vshrl.u32 %v4350, 7
        %v4352 = vsub.s32 %v4349, %v4351
        %v4353 = vrot.slane %v4346, %v4352
        %v4354 = vcombine.low %v4326, %v4333
        %v4356 = vunpack.c.l.s4 1983009808
        %v4357 = vunpack.c.0.s8 %v4356
        %v4358 = vlaneseq
        %v4359 = vshrl.u32 %v4358, 7
        %v4360 = vsub.s32 %v4357, %v4359
        %v4361 = vrot.slane %v4354, %v4360
        %v4362 = vcombine.low %v4336, %v4337
        %v4364 = vunpack.c.l.s4 1983009808
        %v4365 = vunpack.c.0.s8 %v4364
        %v4366 = vlaneseq
        %v4367 = vshrl.u32 %v4366, 7
        %v4368 = vsub.s32 %v4365, %v4367
        %v4369 = vrot.slane %v4362, %v4368
        %v4370 = vcombine.low %v4345, %v4353
        %v4371 = vcombine.high %v4345, %v4353
        %v4373 = vunpack.c.l.s4 1934713408
        %v4374 = vunpack.c.0.s8 %v4373
        %v4375 = vlaneseq
        %v4376 = vshrl.u32 %v4375, 7
        %v4377 = vsub.s32 %v4374, %v4376
        %v4378 = vrot.slane %v4370, %v4377
        %v4380 = vunpack.c.l.s4 1934713408
        %v4381 = vunpack.c.0.s8 %v4380
        %v4382 = vlaneseq
        %v4383 = vshrl.u32 %v4382, 7
        %v4384 = vsub.s32 %v4381, %v4383
        %v4385 = vrot.slane %v4371, %v4384
        %v4386 = vcombine.low %v4361, %v4369
        %v4387 = vcombine.high %v4361, %v4369
        %v4389 = vunpack.c.l.s4 1934713408
        %v4390 = vunpack.c.0.s8 %v4389
        %v4391 = vlaneseq
        %v4392 = vshrl.u32 %v4391, 7
        %v4393 = vsub.s32 %v4390, %v4392
        %v4394 = vrot.slane %v4386, %v4393
        %v4396 = vunpack.c.l.s4 1934713408
        %v4397 = vunpack.c.0.s8 %v4396
        %v4398 = vlaneseq
        %v4399 = vshrl.u32 %v4398, 7
        %v4400 = vsub.s32 %v4397, %v4399
        %v4401 = vrot.slane %v4387, %v4400
        %v4402 = vcombine.low %v4378, %v4394
        %v4403 = vcombine.high %v4378, %v4394
        %v4404 = vcombine.low %v4385, %v4401
        %v4405 = vcombine.high %v4385, %v4401
        %4407 = vrot.lane.b32.xlu0 %v4403, 8
        %v4408 = vpop.permute.xlu0 %4407
        %4411 = vrot.lane.b32.xlu0 %v4404, 16
        %v4412 = vpop.permute.xlu0 %4411
        %4415 = vrot.lane.b32.xlu0 %v4405, 24
        %v4416 = vpop.permute.xlu0 %4415
        %v4418 = vsel %vm1151, %v4402, %v4408
        %v4419 = vsel %vm2272, %v4418, %v4412
        %v4420 = vsel %vm2274, %v4419, %v4416
        %v4421 = vpack.c.bf16 %v4420, %v4420
        %s4422 = scalar_lea.vmem %s3, 16
        %v4423 = vld [vmem:[%s4422] sm:$0xf]
        %v4424 = vld [vmem:[%s4422 + $0x4] sm:$0xf]
        %v4425 = vld [vmem:[%s4422 + $0x8] sm:$0xf]
        %v4426 = vld [vmem:[%s4422 + $0xc] sm:$0xf]
        %s4427 = scalar_lea.vmem %s4, 1
        %v4428 = vld [vmem:[%s4427] sm:$0x1]
        %v4430 = vlaneseq
        %v4431 = vshrl.u32 %v4430, 7
        %v4432 = vsub.s32 0, %v4431
        %v4433 = vrot.slane %v4428, %v4432
        %v4439 = vunpack.c.l.b16 %v4423
        %v4440 = vunpack.c.l.b16 %v4424
        %v4441 = vunpack.c.l.b16 %v4425
        %v4442 = vunpack.c.l.b16 %v4426
        %v4443 = vpack.c.b16 %v4440, %v4439
        %v4444 = vpack.c.b16 %v4442, %v4441
        %v4448 = vsel %vm373, %v4421, 0
        %4450 = vmatprep.subr.bf16.mxu0 0
        %4451 = vmatpush1.bf16.msra.mxu0 %v4443
        %4452 = vmatprep.subr.bf16.mxu0 0
        %4453 = vmatpush1.bf16.msra.mxu0 %v4444
        %4454 = vmatprep.subr.bf16.mxu0 0
        %4455 = vmatpush1.bf16.msra.mxu0 0
        %4456 = vmatprep.subr.bf16.mxu0 0
        %4457 = vmatpush1.bf16.msra.mxu0 0
        %4458 = vmatprep.subr.bf16.mxu0 0
        %4459 = vmatpush1.bf16.msra.mxu0 0
        %4460 = vmatprep.subr.bf16.mxu0 0
        %4461 = vmatpush1.bf16.msra.mxu0 0
        %4462 = vmatprep.subr.bf16.mxu0 0
        %4463 = vmatpush1.bf16.msra.mxu0 0
        %4464 = vmatprep.subr.bf16.mxu0 0
        %4465 = vmatpush1.bf16.msra.mxu0 0
        %4466 = vmatprep.subr.bf16.mxu0 0
        %4467 = vmatpush1.bf16.msra.mxu0 0
        %4468 = vmatprep.subr.bf16.mxu0 0
        %4469 = vmatpush1.bf16.msra.mxu0 0
        %4470 = vmatprep.subr.bf16.mxu0 0
        %4471 = vmatpush1.bf16.msra.mxu0 0
        %4472 = vmatprep.subr.bf16.mxu0 0
        %4473 = vmatpush1.bf16.msra.mxu0 0
        %4474 = vmatprep.subr.bf16.mxu0 0
        %4475 = vmatpush1.bf16.msra.mxu0 0
        %4476 = vmatprep.subr.bf16.mxu0 0
        %4477 = vmatpush1.bf16.msra.mxu0 0
        %4478 = vmatprep.subr.bf16.mxu0 0
        %4479 = vmatpush1.bf16.msra.mxu0 0
        %4480 = vmatprep.subr.bf16.mxu0 0
        %4481 = vmatpush1.bf16.msra.mxu0 0
        %4482 = vmatprep.mubr.bf16.mxu0 0
        %4483 = vmatmul.mubr.bf16.gmra.mrb[0].mxu0 %v4448
        %v4484 = vpop.f32.mrb[0].mxu0
        %v4485 = vadd.f32 %v4433, %v4484
        %v4486 = vpop.f32.mrb[0].mxu0
        %v4487 = vpop.f32.mrb[0].mxu0
        %v4488 = vpop.f32.mrb[0].mxu0
        %4489 = vdwg.mxu0
        %v4490 = vadd.f32 %v2496, %v4485
        %v4491 = vpack.c.bf16 %v4490, %v4490
        %s4492 = scalar_lea.vmem %s5, 16
        %v4493 = vld [vmem:[%s4492] sm:$0xf]
        %v4494 = vld [vmem:[%s4492 + $0x4] sm:$0xf]
        %v4495 = vld [vmem:[%s4492 + $0x8] sm:$0xf]
        %v4496 = vld [vmem:[%s4492 + $0xc] sm:$0xf]
        %s4497 = scalar_lea.vmem %s6, 1
        %v4498 = vld [vmem:[%s4497] sm:$0x1]
        %v4500 = vlaneseq
        %v4501 = vshrl.u32 %v4500, 7
        %v4502 = vsub.s32 0, %v4501
        %v4503 = vrot.slane %v4498, %v4502
        %v4509 = vunpack.c.l.b16 %v4493
        %v4510 = vunpack.c.l.b16 %v4494
        %v4511 = vunpack.c.l.b16 %v4495
        %v4512 = vunpack.c.l.b16 %v4496
        %v4513 = vpack.c.b16 %v4510, %v4509
        %v4514 = vpack.c.b16 %v4512, %v4511
        %v4518 = vsel %vm373, %v4491, 0
        %4520 = vmatprep.subr.bf16.mxu0 0
        %4521 = vmatpush1.bf16.msra.mxu0 %v4513
        %4522 = vmatprep.subr.bf16.mxu0 0
        %4523 = vmatpush1.bf16.msra.mxu0 %v4514
        %4524 = vmatprep.subr.bf16.mxu0 0
        %4525 = vmatpush1.bf16.msra.mxu0 0
        %4526 = vmatprep.subr.bf16.mxu0 0
        %4527 = vmatpush1.bf16.msra.mxu0 0
        %4528 = vmatprep.subr.bf16.mxu0 0
        %4529 = vmatpush1.bf16.msra.mxu0 0
        %4530 = vmatprep.subr.bf16.mxu0 0
        %4531 = vmatpush1.bf16.msra.mxu0 0
        %4532 = vmatprep.subr.bf16.mxu0 0
        %4533 = vmatpush1.bf16.msra.mxu0 0
        %4534 = vmatprep.subr.bf16.mxu0 0
        %4535 = vmatpush1.bf16.msra.mxu0 0
        %4536 = vmatprep.subr.bf16.mxu0 0
        %4537 = vmatpush1.bf16.msra.mxu0 0
        %4538 = vmatprep.subr.bf16.mxu0 0
        %4539 = vmatpush1.bf16.msra.mxu0 0
        %4540 = vmatprep.subr.bf16.mxu0 0
        %4541 = vmatpush1.bf16.msra.mxu0 0
        %4542 = vmatprep.subr.bf16.mxu0 0
        %4543 = vmatpush1.bf16.msra.mxu0 0
        %4544 = vmatprep.subr.bf16.mxu0 0
        %4545 = vmatpush1.bf16.msra.mxu0 0
        %4546 = vmatprep.subr.bf16.mxu0 0
        %4547 = vmatpush1.bf16.msra.mxu0 0
        %4548 = vmatprep.subr.bf16.mxu0 0
        %4549 = vmatpush1.bf16.msra.mxu0 0
        %4550 = vmatprep.subr.bf16.mxu0 0
        %4551 = vmatpush1.bf16.msra.mxu0 0
        %4552 = vmatprep.mubr.bf16.mxu0 0
        %4553 = vmatmul.mubr.bf16.gmra.mrb[0].mxu0 %v4518
        %v4554 = vpop.f32.mrb[0].mxu0
        %v4555 = vadd.f32 %v4503, %v4554
        %v4556 = vpop.f32.mrb[0].mxu0
        %v4557 = vpop.f32.mrb[0].mxu0
        %v4558 = vpop.f32.mrb[0].mxu0
        %4559 = vdwg.mxu0
        %v4560 = vmax.f32 %v4555, 0.0
        %v4561 = vpack.c.bf16 %v4560, %v4560
        %s4562 = scalar_lea.vmem %s7, 32
        %v4563 = vld [vmem:[%s4562] sm:$0xf]
        %v4564 = vld [vmem:[%s4562 + $0x4] sm:$0xf]
        %v4565 = vld [vmem:[%s4562 + $0x8] sm:$0xf]
        %v4566 = vld [vmem:[%s4562 + $0xc] sm:$0xf]
        %v4567 = vld [vmem:[%s4562 + $0x10] sm:$0xf]
        %v4568 = vld [vmem:[%s4562 + $0x14] sm:$0xf]
        %v4569 = vld [vmem:[%s4562 + $0x18] sm:$0xf]
        %v4570 = vld [vmem:[%s4562 + $0x1c] sm:$0xf]
        %s4571 = scalar_lea.vmem %s8, 1
        %v4572 = vld [vmem:[%s4571] sm:$0x1]
        %v4574 = vlaneseq
        %v4575 = vshrl.u32 %v4574, 7
        %v4576 = vsub.s32 0, %v4575
        %v4577 = vrot.slane %v4572, %v4576
        %v4587 = vunpack.c.l.b16 %v4563
        %v4588 = vunpack.c.l.b16 %v4564
        %v4589 = vunpack.c.l.b16 %v4565
        %v4590 = vunpack.c.l.b16 %v4566
        %v4591 = vunpack.c.l.b16 %v4567
        %v4592 = vunpack.c.l.b16 %v4568
        %v4593 = vunpack.c.l.b16 %v4569
        %v4594 = vunpack.c.l.b16 %v4570
        %v4595 = vpack.c.b16 %v4588, %v4587
        %v4596 = vpack.c.b16 %v4590, %v4589
        %v4597 = vpack.c.b16 %v4592, %v4591
        %v4598 = vpack.c.b16 %v4594, %v4593
        %v4604 = vsel %vm2452, %v4561, 0
        %4606 = vmatprep.subr.bf16.mxu0 0
        %4607 = vmatpush1.bf16.msra.mxu0 %v4595
        %4608 = vmatprep.subr.bf16.mxu0 0
        %4609 = vmatpush1.bf16.msra.mxu0 %v4596
        %4610 = vmatprep.subr.bf16.mxu0 0
        %4611 = vmatpush1.bf16.msra.mxu0 %v4597
        %4612 = vmatprep.subr.bf16.mxu0 0
        %4613 = vmatpush1.bf16.msra.mxu0 %v4598
        %4614 = vmatprep.subr.bf16.mxu0 0
        %4615 = vmatpush1.bf16.msra.mxu0 0
        %4616 = vmatprep.subr.bf16.mxu0 0
        %4617 = vmatpush1.bf16.msra.mxu0 0
        %4618 = vmatprep.subr.bf16.mxu0 0
        %4619 = vmatpush1.bf16.msra.mxu0 0
        %4620 = vmatprep.subr.bf16.mxu0 0
        %4621 = vmatpush1.bf16.msra.mxu0 0
        %4622 = vmatprep.subr.bf16.mxu0 0
        %4623 = vmatpush1.bf16.msra.mxu0 0
        %4624 = vmatprep.subr.bf16.mxu0 0
        %4625 = vmatpush1.bf16.msra.mxu0 0
        %4626 = vmatprep.subr.bf16.mxu0 0
        %4627 = vmatpush1.bf16.msra.mxu0 0
        %4628 = vmatprep.subr.bf16.mxu0 0
        %4629 = vmatpush1.bf16.msra.mxu0 0
        %4630 = vmatprep.subr.bf16.mxu0 0
        %4631 = vmatpush1.bf16.msra.mxu0 0
        %4632 = vmatprep.subr.bf16.mxu0 0
        %4633 = vmatpush1.bf16.msra.mxu0 0
        %4634 = vmatprep.subr.bf16.mxu0 0
        %4635 = vmatpush1.bf16.msra.mxu0 0
        %4636 = vmatprep.subr.bf16.mxu0 0
        %4637 = vmatpush1.bf16.msra.mxu0 0
        %4638 = vmatprep.mubr.bf16.mxu0 0
        %4639 = vmatmul.mubr.bf16.gmra.mrb[0].mxu0 %v4604
        %v4640 = vpop.f32.mrb[0].mxu0
        %v4641 = vadd.f32 %v4577, %v4640
        %v4642 = vpop.f32.mrb[0].mxu0
        %v4643 = vpop.f32.mrb[0].mxu0
        %v4644 = vpop.f32.mrb[0].mxu0
        %4645 = vdwg.mxu0
        %v4646 = vadd.f32 %v4490, %v4641
        %v4647 = vsel %vm373, %v4646, 0.0
        %v4648 = vrot.slane %v4647, 4
        %v4649 = vadd.f32 %v4647, %v4648
        %v4650 = vrot.slane %v4649, 2
        %v4651 = vadd.f32 %v4649, %v4650
        %v4652 = vrot.slane %v4651, 1
        %v4653 = vadd.f32 %v4651, %v4652
        %v4654 = vrcp.pop 8.0
        %v4655 = vmul.f32 %v4653, %v4654
        %vm4656 = vcmask 253952
        %4657 = vst.msk [vmem:[%s346] sm:$0x1] %vm4656, %v4655
        %s4658 = sand.u32 %s228, 1
        %s4659 = scalar_lea.sflag [#allocation4], %s4658
        %s4660 = sand.u32 %s228, 1
        %s4661 = scalar_lea.vmem [#allocation5], %s4660
        // Predicated region
        $region61: #{tpu_custom_call.1} parent=55 // pred_check
          %p4662 = pneg %p238
        $region62: #{tpu_custom_call.1} parent=55 // pred_check_branch
          %4664 = sbr.rel (%p4662) target = $region64
        $region63: #{tpu_custom_call.1} parent=55 // pred_region
          %s4666 = ssub.s32 16, 16
          %4667 = vsyncadd %s4659, %s4666
          %s4668 = smul.addr %s26, 16
          %s4669 = scalar_lea.hbm %s9, %s4668
          %s4671 = sshll.u32 %s4661, 4
          %s4672 = int_to_ptr.vmem [resolvable:$true] %s4671
          %4674 = dma.vmem_to_hbm [thread:$0]  %s4672, 16, %s4669, %s4659
        $region64: #{tpu_custom_call.1} parent=55 // pred_fallthru
          _
      $region56: #{tpu_custom_call.1} parent=5 // pred_fallthru
        _
      %p4675 = scmp.le.s32.totalorder 2, %s21
      // Predicated region
      $region65: #{tpu_custom_call.1} parent=5 // pred_check
        %p4676 = pneg %p4675
      $region66: #{tpu_custom_call.1} parent=5 // pred_check_branch
        %4678 = sbr.rel (%p4676) target = $region68
      $region67: #{tpu_custom_call.1} parent=5 // pred_region
        %s4679 = ssub.s32 %s21, 2
        // Predicated region
        $region69: #{tpu_custom_call.1} parent=67 // pred_check
          %p4680 = pneg %p244
        $region70: #{tpu_custom_call.1} parent=67 // pred_check_branch
          %4682 = sbr.rel (%p4680) target = $region72
        $region71: #{tpu_custom_call.1} parent=67 // pred_region
          %s4683 = sand.u32 %s229, 1
          %s4684 = scalar_lea.sflag [#allocation4], %s4683
          %s4685 = sand.u32 %s229, 1
          %s4686 = scalar_lea.vmem [#allocation5], %s4685
          %4687 = dma.done %s4684, 16
        $region72: #{tpu_custom_call.1} parent=67 // pred_fallthru
          _
      $region68: #{tpu_custom_call.1} parent=5 // pred_fallthru
        _
    $region6: #{tpu_custom_call.1} parent=1 // loop_footer
      %s25 = sadd.s32 1, %s21
    $region7: #{tpu_custom_call.1} parent=1 // loop_footer_branch
      %20 = sbr.rel target = $region3
    $region8: #{tpu_custom_call.1} parent=1 // loop_exit
      _
    %4688 = vsyncpa [#allocation3], 1
    %s4689 = scalar_lea.sflag [#allocation3], 1
    %4690 = vsyncpa %s4689, 1
    %4691 = vsyncpa [#allocation4], 1
    %s4692 = scalar_lea.sflag [#allocation4], 1
    %4693 = vsyncpa %s4692, 1

</llo_original>
